<compile_context>
chip_gen: v6e
topology: v6e:2x2x1
jax: 0.10.0
libtpu: 0.0.40
codegen_flags: <defaults>
</compile_context>

<pallas_src>
import math

import jax
import jax.numpy as jnp
from jax.experimental import pallas as pl
from jax.experimental.pallas import tpu as pltpu

BN_EPS = 1e-5


# ----------------------------------------------------------------------------
# Pallas kernels
# ----------------------------------------------------------------------------
def bn_stats_kernel(x_ref, sum_ref, sq_ref):
    """Accumulate per-channel sum and sum-of-squares over (TN, C) row tiles."""
    @pl.when(pl.program_id(0) == 0)
    def _init():
        sum_ref[...] = jnp.zeros_like(sum_ref)
        sq_ref[...] = jnp.zeros_like(sq_ref)

    blk = x_ref[...]                                          # (TN, C)
    sum_ref[...] += jnp.sum(blk, axis=0, keepdims=True)
    sq_ref[...] += jnp.sum(blk * blk, axis=0, keepdims=True)


def _repeat_rows_2x(v):
    # nearest-neighbour 2x duplication along the leading (row) axis of a 3-D
    # value: broadcast + leading-dim collapse (layout-preserving, no HBM traffic).
    r, c, ch = v.shape
    return jnp.broadcast_to(v[:, None, :, :], (r, 2, c, ch)).reshape(r * 2, c, ch)


def conv1_fused_kernel(x_ref, sc_ref, sh_ref, w_ref, b_ref, o_ref):
    """BN1 + ReLU + 2x nearest upsample + 3x3 conv (padding=1) for one row tile.

    x_ref : (1, H+2, 2W+4, Cin)  zero-padded low-res input, columns pre-duplicated
    sc/sh : (1, Cin)             BatchNorm scale / shift (batch statistics)
    w_ref : (9*Cin, Cout)        conv weight, 3x3 taps flattened along K
    b_ref : (1, Cout)
    o_ref : (1, TH, 2W, Cout)
    """
    t = pl.program_id(1)
    TH, W2, Cout = o_ref.shape[1], o_ref.shape[2], o_ref.shape[3]
    TH_LO = TH // 2
    H_lo = x_ref.shape[1] - 2
    Cin = x_ref.shape[3]

    r0_lo = pl.multiple_of(t * TH_LO, TH_LO)
    xlo = x_ref[0, pl.ds(r0_lo, TH_LO + 2), :, :]             # (TH_LO+2, W2+4, Cin)

    # fused BatchNorm (training-mode batch stats) + ReLU
    a = jnp.maximum(xlo * sc_ref[...] + sh_ref[...], 0.0)

    # the conv zero-padding border must stay exactly 0 *after* BN+ReLU
    rows = r0_lo + jax.lax.broadcasted_iota(jnp.int32, a.shape, 0)
    cols = jax.lax.broadcasted_iota(jnp.int32, a.shape, 1)
    valid = (rows >= 1) & (rows <= H_lo) & (cols >= 2) & (cols <= W2 + 1)
    a = jnp.where(valid, a, 0.0)

    # nearest upsample: columns were duplicated in glue, rows here (in VMEM)
    u = _repeat_rows_2x(a)                                    # (TH+4, W2+4, Cin)

    # 9 shifted taps -> one (TH*W2, 9*Cin) operand -> single MXU matmul
    taps = jnp.concatenate(
        [u[1 + kh:1 + kh + TH, 1 + kw:1 + kw + W2, :].reshape(TH * W2, Cin)
         for kh in range(3) for kw in range(3)],
        axis=-1,
    )
    acc = jnp.dot(taps, w_ref[...], preferred_element_type=jnp.float32)
    acc = acc + b_ref[...]
    o_ref[0] = acc.reshape(TH, W2, Cout).astype(o_ref.dtype)


def conv2_fused_kernel(h_ref, sc_ref, sh_ref, w_ref, b_ref,
                       x_ref, wb_ref, bb_ref, o_ref):
    """BN2 + ReLU + 3x3 conv (padding=1) + fused bypass (upsample + 1x1 conv) + add.

    h_ref : (1, 2H+2, 2W+2, Cout)  zero-padded conv1 output
    x_ref : (1, H+2, 2W+4, Cin)    same padded / column-duplicated raw input as conv1
    wb/bb : (Cin, Cout), (1, Cout) bypass 1x1 conv parameters
    o_ref : (1, TH, 2W, Cout)
    """
    t = pl.program_id(1)
    TH, W2, Cout = o_ref.shape[1], o_ref.shape[2], o_ref.shape[3]
    TH_LO = TH // 2
    H2 = h_ref.shape[1] - 2

    r0 = pl.multiple_of(t * TH, TH)
    hp = h_ref[0, pl.ds(r0, TH + 2), :, :]                    # (TH+2, W2+2, Cout)

    a = jnp.maximum(hp * sc_ref[...] + sh_ref[...], 0.0)
    rows = r0 + jax.lax.broadcasted_iota(jnp.int32, a.shape, 0)
    cols = jax.lax.broadcasted_iota(jnp.int32, a.shape, 1)
    valid = (rows >= 1) & (rows <= H2) & (cols >= 1) & (cols <= W2)
    a = jnp.where(valid, a, 0.0)

    taps = jnp.concatenate(
        [a[kh:kh + TH, kw:kw + W2, :].reshape(TH * W2, Cout)
         for kh in range(3) for kw in range(3)],
        axis=-1,
    )
    acc = jnp.dot(taps, w_ref[...], preferred_element_type=jnp.float32)
    acc = acc + b_ref[...]

    # fused bypass: 1x1 conv on the nearest-upsampled raw input + residual add
    r0_lo = pl.multiple_of(t * TH_LO, TH_LO)
    xb = x_ref[0, pl.ds(1 + r0_lo, TH_LO), :, :]              # (TH_LO, W2+4, Cin)
    xb = xb[:, 2:2 + W2, :]                                   # drop pad columns
    xb = _repeat_rows_2x(xb)                                  # (TH, W2, Cin)
    Cin = xb.shape[-1]
    acc = acc + jnp.dot(xb.reshape(TH * W2, Cin), wb_ref[...],
                        preferred_element_type=jnp.float32)
    acc = acc + bb_ref[...]

    o_ref[0] = acc.reshape(TH, W2, Cout).astype(o_ref.dtype)


# ----------------------------------------------------------------------------
# Wrappers
# ----------------------------------------------------------------------------
def _row_tile(n, cap=256):
    top = min(n, cap)
    top -= top % 8
    for t in range(top, 0, -8):
        if n % t == 0:
            return t
    return n


def bn_scale_shift(x_nhwc, gamma, beta):
    """BatchNorm2d (training-mode) normalisation constants from batch statistics,
    computed with a Pallas reduction kernel.  Returns (scale, shift), each (1, C)."""
    B, H, W, C = x_nhwc.shape
    n = B * H * W
    xf = x_nhwc.reshape(n, C)
    tn = _row_tile(n)
    sums, sqs = pl.pallas_call(
        bn_stats_kernel,
        out_shape=(jax.ShapeDtypeStruct((1, C), jnp.float32),
                   jax.ShapeDtypeStruct((1, C), jnp.float32)),
        grid=(n // tn,),
        in_specs=[pl.BlockSpec((tn, C), lambda i: (i, 0))],
        out_specs=(pl.BlockSpec((1, C), lambda i: (0, 0)),
                   pl.BlockSpec((1, C), lambda i: (0, 0))),
        compiler_params=pltpu.CompilerParams(dimension_semantics=("arbitrary",)),
    )(xf)
    mean = sums[0] / n
    var = jnp.maximum(sqs[0] / n - mean * mean, 0.0)   # biased var (PyTorch training mode)
    inv = gamma * jax.lax.rsqrt(var + BN_EPS)
    return inv.reshape(1, C), (beta - mean * inv).reshape(1, C)


def resblock_forward(params, x_nchw, *, tile_rows=None):
    """ResBlockGenerator forward: NCHW in -> NCHW out with 2x spatial upsample."""
    x = jnp.transpose(x_nchw, (0, 2, 3, 1)).astype(jnp.float32)    # NHWC
    B, H, W, Cin = x.shape
    Cout = params["conv1_b"].shape[-1]
    H2, W2 = 2 * H, 2 * W
    TH = tile_rows if tile_rows is not None else (8 if H2 % 8 == 0 else H2)
    assert TH % 2 == 0 and H2 % TH == 0 and H % (TH // 2) == 0

    sem = pltpu.CompilerParams(dimension_semantics=("parallel", "parallel"))
    grid = (B, H2 // TH)

    # BN1 batch statistics (Pallas reduction instead of an XLA mean/var sweep)
    sc1, sh1 = bn_scale_shift(x, params["bn1_gamma"], params["bn1_beta"])

    # Zero-padded low-res input with columns duplicated once (glue); shared by
    # the fused upsample+conv1 main path and the fused bypass inside conv2.
    # TODO(synk): the 2x column duplication stays in XLA glue; an in-kernel
    # sublane interleave would remove this remaining 2x low-res read.
    xp = jnp.pad(x, ((0, 0), (1, 1), (1, 1), (0, 0)))
    xcd = jnp.repeat(xp, 2, axis=2)                            # (B, H+2, 2W+4, Cin)

    h1 = pl.pallas_call(
        conv1_fused_kernel,
        out_shape=jax.ShapeDtypeStruct((B, H2, W2, Cout), jnp.float32),
        grid=grid,
        in_specs=[
            pl.BlockSpec((1, H + 2, W2 + 4, Cin), lambda b, t: (b, 0, 0, 0)),
            pl.BlockSpec((1, Cin), lambda b, t: (0, 0)),
            pl.BlockSpec((1, Cin), lambda b, t: (0, 0)),
            pl.BlockSpec((9 * Cin, Cout), lambda b, t: (0, 0)),
            pl.BlockSpec((1, Cout), lambda b, t: (0, 0)),
        ],
        out_specs=pl.BlockSpec((1, TH, W2, Cout), lambda b, t: (b, t, 0, 0)),
        compiler_params=sem,
    )(xcd, sc1, sh1, params["conv1_w"], params["conv1_b"])

    # BN2 batch statistics
    sc2, sh2 = bn_scale_shift(h1, params["bn2_gamma"], params["bn2_beta"])

    # conv2's zero padding (the kernel masks the border after BN+ReLU so the
    # padding stays exactly zero)
    h1p = jnp.pad(h1, ((0, 0), (1, 1), (1, 1), (0, 0)))

    out = pl.pallas_call(
        conv2_fused_kernel,
        out_shape=jax.ShapeDtypeStruct((B, H2, W2, Cout), jnp.float32),
        grid=grid,
        in_specs=[
            pl.BlockSpec((1, H2 + 2, W2 + 2, Cout), lambda b, t: (b, 0, 0, 0)),
            pl.BlockSpec((1, Cout), lambda b, t: (0, 0)),
            pl.BlockSpec((1, Cout), lambda b, t: (0, 0)),
            pl.BlockSpec((9 * Cout, Cout), lambda b, t: (0, 0)),
            pl.BlockSpec((1, Cout), lambda b, t: (0, 0)),
            pl.BlockSpec((1, H + 2, W2 + 4, Cin), lambda b, t: (b, 0, 0, 0)),
            pl.BlockSpec((Cin, Cout), lambda b, t: (0, 0)),
            pl.BlockSpec((1, Cout), lambda b, t: (0, 0)),
        ],
        out_specs=pl.BlockSpec((1, TH, W2, Cout), lambda b, t: (b, t, 0, 0)),
        compiler_params=sem,
    )(h1p, sc2, sh2, params["conv2_w"], params["conv2_b"],
      xcd, params["bypass_w"], params["bypass_b"])

    return jnp.transpose(out, (0, 3, 1, 2))


# ----------------------------------------------------------------------------
# Parameter init (matches the PyTorch module's init) and pure-JAX reference
# ----------------------------------------------------------------------------
def xavier_uniform(key, shape, fan_in, fan_out, gain):
    bound = gain * math.sqrt(6.0 / (fan_in + fan_out))
    return jax.random.uniform(key, shape, jnp.float32, -bound, bound)


def uniform_bias(key, shape, fan_in):
    bound = 1.0 / math.sqrt(fan_in)
    return jax.random.uniform(key, shape, jnp.float32, -bound, bound)


def init_params(key, cin, cout):
    ks = jax.random.split(key, 6)
    s2 = math.sqrt(2.0)
    # conv weights stored directly in the (9*C, Cout) layout used by the kernels:
    # row (kh*3 + kw)*C + c  <->  PyTorch weight[cout, c, kh, kw]
    w1 = xavier_uniform(ks[0], (3, 3, cin, cout), cin * 9, cout * 9, s2)
    w2 = xavier_uniform(ks[1], (3, 3, cout, cout), cout * 9, cout * 9, s2)
    return {
        "bn1_gamma": jnp.ones((cin,), jnp.float32),
        "bn1_beta": jnp.zeros((cin,), jnp.float32),
        "conv1_w": w1.reshape(9 * cin, cout),
        "conv1_b": uniform_bias(ks[2], (1, cout), cin * 9),
        "bn2_gamma": jnp.ones((cout,), jnp.float32),
        "bn2_beta": jnp.zeros((cout,), jnp.float32),
        "conv2_w": w2.reshape(9 * cout, cout),
        "conv2_b": uniform_bias(ks[3], (1, cout), cout * 9),
        "bypass_w": xavier_uniform(ks[4], (cin, cout), cin, cout, 1.0),
        "bypass_b": uniform_bias(ks[5], (1, cout), cin),
    }


def ref_forward(params, x_nchw):
    """Pure-JAX (XLA) reference of the PyTorch module, for the correctness check."""
    x = jnp.transpose(x_nchw, (0, 2, 3, 1)).astype(jnp.float32)
    Cin = x.shape[-1]
    Cout = params["conv1_b"].shape[-1]
    dn = ("NHWC", "HWIO", "NHWC")

    def bn(v, g, b):
        m = jnp.mean(v, axis=(0, 1, 2))
        va = jnp.var(v, axis=(0, 1, 2))
        return (v - m) * (g / jnp.sqrt(va + BN_EPS)) + b

    def up2(v):
        return jnp.repeat(jnp.repeat(v, 2, axis=1), 2, axis=2)

    a = up2(jax.nn.relu(bn(x, params["bn1_gamma"], params["bn1_beta"])))
    h1 = jax.lax.conv_general_dilated(
        a, params["conv1_w"].reshape(3, 3, Cin, Cout), (1, 1), "SAME",
        dimension_numbers=dn) + params["conv1_b"].reshape(1, 1, 1, Cout)
    a2 = jax.nn.relu(bn(h1, params["bn2_gamma"], params["bn2_beta"]))
    h2 = jax.lax.conv_general_dilated(
        a2, params["conv2_w"].reshape(3, 3, Cout, Cout), (1, 1), "SAME",
        dimension_numbers=dn) + params["conv2_b"].reshape(1, 1, 1, Cout)
    byp = jax.lax.conv_general_dilated(
        up2(x), params["bypass_w"].reshape(1, 1, Cin, Cout), (1, 1), "VALID",
        dimension_numbers=dn) + params["bypass_b"].reshape(1, 1, 1, Cout)
    return jnp.transpose(h2 + byp, (0, 3, 1, 2))


# TODO(synk): BatchNorm2d running_mean/running_var buffers are not tracked
# (forward-only; normalization uses training-mode batch statistics like PyTorch).

# ----------------------------------------------------------------------------
if __name__ == "__main__":
    key = jax.random.PRNGKey(0)
    kp, kx = jax.random.split(key)

    # scaled-down GAN generator resblock: 128 -> 128 channels, 8x8 -> 16x16
    B, Cin, Cout, H, W = 2, 128, 128, 8, 8
    params = init_params(kp, Cin, Cout)
    x = jax.random.normal(kx, (B, Cin, H, W), jnp.float32)

    fwd = jax.jit(resblock_forward, static_argnames=("tile_rows",))
    out = jax.block_until_ready(fwd(params, x))

    assert out.shape == (B, Cout, 2 * H, 2 * W), out.shape
    assert bool(jnp.all(jnp.isfinite(out)))

    ref = jax.block_until_ready(jax.jit(ref_forward)(params, x))
    err = float(jnp.max(jnp.abs(out - ref)))
    assert err < 2e-3, f"max abs err vs reference: {err}"

    print("KERNEL_OK")
</pallas_src>

<mosaic_0001>
module attributes {stable_mosaic.version = 11 : i64} {
  func.func @bn_stats_kernel(%arg0: i32, %arg1: memref<128x128xf32, #tpu.memory_space<vmem>>, %arg2: memref<1x128xf32, #tpu.memory_space<vmem>>, %arg3: memref<1x128xf32, #tpu.memory_space<vmem>>) attributes {dimension_semantics = [#tpu.dimension_semantics<arbitrary>], iteration_bounds = array<i64: 1>, scalar_prefetch = 0 : i64, scratch_operands = 0 : i64, tpu.core_type = #tpu.core_type<tc>, window_params = [{transform_indices = @transform_0, window_bounds = array<i64: 128, 128>}, {pipeline_mode = #tpu.pipeline_mode<synchronous>, transform_indices = @transform_1, window_bounds = array<i64: 1, 128>}, {pipeline_mode = #tpu.pipeline_mode<synchronous>, transform_indices = @transform_2, window_bounds = array<i64: 1, 128>}]} {
    %c0_i32 = arith.constant 0 : i32
    %0 = arith.cmpi eq, %arg0, %c0_i32 : i32
    %1 = arith.extui %0 : i1 to i32
    %c0_i32_0 = arith.constant 0 : i32
    %2 = arith.cmpi ne, %1, %c0_i32_0 : i32
    scf.if %2 {
      %cst_11 = arith.constant 0.000000e+00 : f32
      %15 = vector.broadcast %cst_11 : f32 to vector<1x128xf32>
      %c0_12 = arith.constant 0 : index
      %c0_13 = arith.constant 0 : index
      %16 = vector.load %arg2[%c0_12, %c0_13] : memref<1x128xf32, #tpu.memory_space<vmem>>, vector<1x128xf32>
      tpu.vector_store %arg2[%c0_12, %c0_13], %15 {strides = array<i32>} : memref<1x128xf32, #tpu.memory_space<vmem>>, vector<1x128xf32>,
      %cst_14 = arith.constant 0.000000e+00 : f32
      %17 = vector.broadcast %cst_14 : f32 to vector<1x128xf32>
      %c0_15 = arith.constant 0 : index
      %c0_16 = arith.constant 0 : index
      %18 = vector.load %arg3[%c0_15, %c0_16] : memref<1x128xf32, #tpu.memory_space<vmem>>, vector<1x128xf32>
      tpu.vector_store %arg3[%c0_15, %c0_16], %17 {strides = array<i32>} : memref<1x128xf32, #tpu.memory_space<vmem>>, vector<1x128xf32>,
    } else {
    }
    %c0 = arith.constant 0 : index
    %c0_1 = arith.constant 0 : index
    %3 = vector.load %arg1[%c0, %c0_1] : memref<128x128xf32, #tpu.memory_space<vmem>>, vector<128x128xf32>
    %c0_2 = arith.constant 0 : index
    %c0_3 = arith.constant 0 : index
    %4 = vector.load %arg2[%c0_2, %c0_3] : memref<1x128xf32, #tpu.memory_space<vmem>>, vector<1x128xf32>
    %cst = arith.constant dense<0.000000e+00> : vector<128xf32>
    %5 = vector.multi_reduction <add>, %3, %cst [0] : vector<128x128xf32> to vector<128xf32>
    %6 = vector.shape_cast %5 : vector<128xf32> to vector<1x128xf32>
    %7 = arith.addf %4, %6 : vector<1x128xf32>
    %c0_4 = arith.constant 0 : index
    %c0_5 = arith.constant 0 : index
    %8 = vector.load %arg2[%c0_4, %c0_5] : memref<1x128xf32, #tpu.memory_space<vmem>>, vector<1x128xf32>
    tpu.vector_store %arg2[%c0_4, %c0_5], %7 {strides = array<i32>} : memref<1x128xf32, #tpu.memory_space<vmem>>, vector<1x128xf32>,
    %c0_6 = arith.constant 0 : index
    %c0_7 = arith.constant 0 : index
    %9 = vector.load %arg3[%c0_6, %c0_7] : memref<1x128xf32, #tpu.memory_space<vmem>>, vector<1x128xf32>
    %10 = arith.mulf %3, %3 : vector<128x128xf32>
    %cst_8 = arith.constant dense<0.000000e+00> : vector<128xf32>
    %11 = vector.multi_reduction <add>, %10, %cst_8 [0] : vector<128x128xf32> to vector<128xf32>
    %12 = vector.shape_cast %11 : vector<128xf32> to vector<1x128xf32>
    %13 = arith.addf %9, %12 : vector<1x128xf32>
    %c0_9 = arith.constant 0 : index
    %c0_10 = arith.constant 0 : index
    %14 = vector.load %arg3[%c0_9, %c0_10] : memref<1x128xf32, #tpu.memory_space<vmem>>, vector<1x128xf32>
    tpu.vector_store %arg3[%c0_9, %c0_10], %13 {strides = array<i32>} : memref<1x128xf32, #tpu.memory_space<vmem>>, vector<1x128xf32>,
    return
  }
  func.func @transform_0(%arg0: i32) -> (i32, i32) {
    %c0_i32 = arith.constant 0 : i32
    %c0_i32_0 = arith.constant 0 : i32
    return %arg0, %c0_i32 : i32, i32
  }
  func.func @transform_1(%arg0: i32) -> (i32, i32) {
    %c0_i32 = arith.constant 0 : i32
    %c0_i32_0 = arith.constant 0 : i32
    %c0_i32_1 = arith.constant 0 : i32
    return %c0_i32, %c0_i32_0 : i32, i32
  }
  func.func @transform_2(%arg0: i32) -> (i32, i32) {
    %c0_i32 = arith.constant 0 : i32
    %c0_i32_0 = arith.constant 0 : i32
    %c0_i32_1 = arith.constant 0 : i32
    return %c0_i32, %c0_i32_0 : i32, i32
  }
}

module attributes {stable_mosaic.version = 11 : i64} {
  func.func @bn_stats_kernel(%arg0: i32, %arg1: memref<256x128xf32, #tpu.memory_space<vmem>>, %arg2: memref<1x128xf32, #tpu.memory_space<vmem>>, %arg3: memref<1x128xf32, #tpu.memory_space<vmem>>) attributes {dimension_semantics = [#tpu.dimension_semantics<arbitrary>], iteration_bounds = array<i64: 2>, scalar_prefetch = 0 : i64, scratch_operands = 0 : i64, tpu.core_type = #tpu.core_type<tc>, window_params = [{transform_indices = @transform_0, window_bounds = array<i64: 256, 128>}, {pipeline_mode = #tpu.pipeline_mode<synchronous>, transform_indices = @transform_1, window_bounds = array<i64: 1, 128>}, {pipeline_mode = #tpu.pipeline_mode<synchronous>, transform_indices = @transform_2, window_bounds = array<i64: 1, 128>}]} {
    %c0_i32 = arith.constant 0 : i32
    %0 = arith.cmpi eq, %arg0, %c0_i32 : i32
    %1 = arith.extui %0 : i1 to i32
    %c0_i32_0 = arith.constant 0 : i32
    %2 = arith.cmpi ne, %1, %c0_i32_0 : i32
    scf.if %2 {
      %cst_11 = arith.constant 0.000000e+00 : f32
      %15 = vector.broadcast %cst_11 : f32 to vector<1x128xf32>
      %c0_12 = arith.constant 0 : index
      %c0_13 = arith.constant 0 : index
      %16 = vector.load %arg2[%c0_12, %c0_13] : memref<1x128xf32, #tpu.memory_space<vmem>>, vector<1x128xf32>
      tpu.vector_store %arg2[%c0_12, %c0_13], %15 {strides = array<i32>} : memref<1x128xf32, #tpu.memory_space<vmem>>, vector<1x128xf32>,
      %cst_14 = arith.constant 0.000000e+00 : f32
      %17 = vector.broadcast %cst_14 : f32 to vector<1x128xf32>
      %c0_15 = arith.constant 0 : index
      %c0_16 = arith.constant 0 : index
      %18 = vector.load %arg3[%c0_15, %c0_16] : memref<1x128xf32, #tpu.memory_space<vmem>>, vector<1x128xf32>
      tpu.vector_store %arg3[%c0_15, %c0_16], %17 {strides = array<i32>} : memref<1x128xf32, #tpu.memory_space<vmem>>, vector<1x128xf32>,
    } else {
    }
    %c0 = arith.constant 0 : index
    %c0_1 = arith.constant 0 : index
    %3 = vector.load %arg1[%c0, %c0_1] : memref<256x128xf32, #tpu.memory_space<vmem>>, vector<256x128xf32>
    %c0_2 = arith.constant 0 : index
    %c0_3 = arith.constant 0 : index
    %4 = vector.load %arg2[%c0_2, %c0_3] : memref<1x128xf32, #tpu.memory_space<vmem>>, vector<1x128xf32>
    %cst = arith.constant dense<0.000000e+00> : vector<128xf32>
    %5 = vector.multi_reduction <add>, %3, %cst [0] : vector<256x128xf32> to vector<128xf32>
    %6 = vector.shape_cast %5 : vector<128xf32> to vector<1x128xf32>
    %7 = arith.addf %4, %6 : vector<1x128xf32>
    %c0_4 = arith.constant 0 : index
    %c0_5 = arith.constant 0 : index
    %8 = vector.load %arg2[%c0_4, %c0_5] : memref<1x128xf32, #tpu.memory_space<vmem>>, vector<1x128xf32>
    tpu.vector_store %arg2[%c0_4, %c0_5], %7 {strides = array<i32>} : memref<1x128xf32, #tpu.memory_space<vmem>>, vector<1x128xf32>,
    %c0_6 = arith.constant 0 : index
    %c0_7 = arith.constant 0 : index
    %9 = vector.load %arg3[%c0_6, %c0_7] : memref<1x128xf32, #tpu.memory_space<vmem>>, vector<1x128xf32>
    %10 = arith.mulf %3, %3 : vector<256x128xf32>
    %cst_8 = arith.constant dense<0.000000e+00> : vector<128xf32>
    %11 = vector.multi_reduction <add>, %10, %cst_8 [0] : vector<256x128xf32> to vector<128xf32>
    %12 = vector.shape_cast %11 : vector<128xf32> to vector<1x128xf32>
    %13 = arith.addf %9, %12 : vector<1x128xf32>
    %c0_9 = arith.constant 0 : index
    %c0_10 = arith.constant 0 : index
    %14 = vector.load %arg3[%c0_9, %c0_10] : memref<1x128xf32, #tpu.memory_space<vmem>>, vector<1x128xf32>
    tpu.vector_store %arg3[%c0_9, %c0_10], %13 {strides = array<i32>} : memref<1x128xf32, #tpu.memory_space<vmem>>, vector<1x128xf32>,
    return
  }
  func.func @transform_0(%arg0: i32) -> (i32, i32) {
    %c0_i32 = arith.constant 0 : i32
    %c0_i32_0 = arith.constant 0 : i32
    return %arg0, %c0_i32 : i32, i32
  }
  func.func @transform_1(%arg0: i32) -> (i32, i32) {
    %c0_i32 = arith.constant 0 : i32
    %c0_i32_0 = arith.constant 0 : i32
    %c0_i32_1 = arith.constant 0 : i32
    return %c0_i32, %c0_i32_0 : i32, i32
  }
  func.func @transform_2(%arg0: i32) -> (i32, i32) {
    %c0_i32 = arith.constant 0 : i32
    %c0_i32_0 = arith.constant 0 : i32
    %c0_i32_1 = arith.constant 0 : i32
    return %c0_i32, %c0_i32_0 : i32, i32
  }
}

module attributes {stable_mosaic.version = 11 : i64} {
  func.func @conv1_fused_kernel(%arg0: i32, %arg1: i32, %arg2: memref<1x10x20x128xf32, #tpu.memory_space<vmem>>, %arg3: memref<1x128xf32, #tpu.memory_space<vmem>>, %arg4: memref<1x128xf32, #tpu.memory_space<vmem>>, %arg5: memref<1152x128xf32, #tpu.memory_space<vmem>>, %arg6: memref<1x128xf32, #tpu.memory_space<vmem>>, %arg7: memref<1x8x16x128xf32, #tpu.memory_space<vmem>>) attributes {dimension_semantics = [#tpu.dimension_semantics<parallel>, #tpu.dimension_semantics<parallel>], iteration_bounds = array<i64: 2, 2>, scalar_prefetch = 0 : i64, scratch_operands = 0 : i64, tpu.core_type = #tpu.core_type<tc>, window_params = [{transform_indices = @transform_0, window_bounds = array<i64: 1, 10, 20, 128>}, {pipeline_mode = #tpu.pipeline_mode<synchronous>, transform_indices = @transform_1, window_bounds = array<i64: 1, 128>}, {pipeline_mode = #tpu.pipeline_mode<synchronous>, transform_indices = @transform_2, window_bounds = array<i64: 1, 128>}, {pipeline_mode = #tpu.pipeline_mode<synchronous>, transform_indices = @transform_3, window_bounds = array<i64: 1152, 128>}, {pipeline_mode = #tpu.pipeline_mode<synchronous>, transform_indices = @transform_4, window_bounds = array<i64: 1, 128>}, {transform_indices = @transform_5, window_bounds = array<i64: 1, 8, 16, 128>}]} {
    %c4_i32 = arith.constant 4 : i32
    %0 = arith.muli %arg1, %c4_i32 : i32
    %1 = tpu.assume_multiple %0, 4 : i32
    %c0 = arith.constant 0 : index
    %2 = arith.index_cast %1 : i32 to index
    %c0_0 = arith.constant 0 : index
    %c0_1 = arith.constant 0 : index
    %3 = vector.load %arg2[%c0, %2, %c0_0, %c0_1] : memref<1x10x20x128xf32, #tpu.memory_space<vmem>>, vector<1x6x20x128xf32>
    %4 = vector.shape_cast %3 : vector<1x6x20x128xf32> to vector<6x20x128xf32>
    %c0_2 = arith.constant 0 : index
    %c0_3 = arith.constant 0 : index
    %5 = vector.load %arg3[%c0_2, %c0_3] : memref<1x128xf32, #tpu.memory_space<vmem>>, vector<1x128xf32>
    %6 = vector.shape_cast %5 : vector<1x128xf32> to vector<1x1x128xf32>
    %7 = vector.broadcast %6 : vector<1x1x128xf32> to vector<6x20x128xf32>
    %8 = arith.mulf %4, %7 : vector<6x20x128xf32>
    %c0_4 = arith.constant 0 : index
    %c0_5 = arith.constant 0 : index
    %9 = vector.load %arg4[%c0_4, %c0_5] : memref<1x128xf32, #tpu.memory_space<vmem>>, vector<1x128xf32>
    %10 = vector.shape_cast %9 : vector<1x128xf32> to vector<1x1x128xf32>
    %11 = vector.broadcast %10 : vector<1x1x128xf32> to vector<6x20x128xf32>
    %12 = arith.addf %8, %11 : vector<6x20x128xf32>
    %cst = arith.constant 0.000000e+00 : f32
    %13 = vector.broadcast %cst : f32 to vector<6x20x128xf32>
    %14 = arith.maximumf %12, %13 : vector<6x20x128xf32>
    %15 = tpu.iota {dimensions = array<i32: 0>} : vector<6x20x128xi32>
    %16 = vector.broadcast %1 : i32 to vector<6x20x128xi32>
    %17 = arith.addi %16, %15 : vector<6x20x128xi32>
    %18 = tpu.iota {dimensions = array<i32: 1>} : vector<6x20x128xi32>
    %c1_i32 = arith.constant 1 : i32
    %19 = vector.broadcast %c1_i32 : i32 to vector<6x20x128xi32>
    %20 = arith.cmpi sge, %17, %19 : vector<6x20x128xi32>
    %c8_i32 = arith.constant 8 : i32
    %21 = vector.broadcast %c8_i32 : i32 to vector<6x20x128xi32>
    %22 = arith.cmpi sle, %17, %21 : vector<6x20x128xi32>
    %23 = arith.andi %20, %22 : vector<6x20x128xi1>
    %c2_i32 = arith.constant 2 : i32
    %24 = vector.broadcast %c2_i32 : i32 to vector<6x20x128xi32>
    %25 = arith.cmpi sge, %18, %24 : vector<6x20x128xi32>
    %26 = arith.andi %23, %25 : vector<6x20x128xi1>
    %c17_i32 = arith.constant 17 : i32
    %27 = vector.broadcast %c17_i32 : i32 to vector<6x20x128xi32>
    %28 = arith.cmpi sle, %18, %27 : vector<6x20x128xi32>
    %29 = arith.andi %26, %28 : vector<6x20x128xi1>
    %cst_6 = arith.constant 0.000000e+00 : f32
    %30 = vector.broadcast %cst_6 : f32 to vector<6x20x128xf32>
    %31 = arith.select %29, %14, %30 : vector<6x20x128xi1>, vector<6x20x128xf32>
    %32 = vector.shape_cast %31 : vector<6x20x128xf32> to vector<6x1x20x128xf32>
    %33 = vector.shape_cast %32 : vector<6x1x20x128xf32> to vector<6x1x20x128xf32>
    %34 = vector.broadcast %33 : vector<6x1x20x128xf32> to vector<6x2x20x128xf32>
    %35 = vector.shape_cast %34 : vector<6x2x20x128xf32> to vector<12x20x128xf32>
    %36 = vector.extract_strided_slice %35 {offsets = [1, 1, 0], sizes = [8, 16, 128], strides = [1, 1, 1]} : vector<12x20x128xf32> to vector<8x16x128xf32>
    %37 = vector.shape_cast %36 : vector<8x16x128xf32> to vector<128x128xf32>
    %38 = vector.extract_strided_slice %35 {offsets = [1, 2, 0], sizes = [8, 16, 128], strides = [1, 1, 1]} : vector<12x20x128xf32> to vector<8x16x128xf32>
    %39 = vector.shape_cast %38 : vector<8x16x128xf32> to vector<128x128xf32>
    %40 = vector.extract_strided_slice %35 {offsets = [1, 3, 0], sizes = [8, 16, 128], strides = [1, 1, 1]} : vector<12x20x128xf32> to vector<8x16x128xf32>
    %41 = vector.shape_cast %40 : vector<8x16x128xf32> to vector<128x128xf32>
    %42 = vector.extract_strided_slice %35 {offsets = [2, 1, 0], sizes = [8, 16, 128], strides = [1, 1, 1]} : vector<12x20x128xf32> to vector<8x16x128xf32>
    %43 = vector.shape_cast %42 : vector<8x16x128xf32> to vector<128x128xf32>
    %44 = vector.extract_strided_slice %35 {offsets = [2, 2, 0], sizes = [8, 16, 128], strides = [1, 1, 1]} : vector<12x20x128xf32> to vector<8x16x128xf32>
    %45 = vector.shape_cast %44 : vector<8x16x128xf32> to vector<128x128xf32>
    %46 = vector.extract_strided_slice %35 {offsets = [2, 3, 0], sizes = [8, 16, 128], strides = [1, 1, 1]} : vector<12x20x128xf32> to vector<8x16x128xf32>
    %47 = vector.shape_cast %46 : vector<8x16x128xf32> to vector<128x128xf32>
    %48 = vector.extract_strided_slice %35 {offsets = [3, 1, 0], sizes = [8, 16, 128], strides = [1, 1, 1]} : vector<12x20x128xf32> to vector<8x16x128xf32>
    %49 = vector.shape_cast %48 : vector<8x16x128xf32> to vector<128x128xf32>
    %50 = vector.extract_strided_slice %35 {offsets = [3, 2, 0], sizes = [8, 16, 128], strides = [1, 1, 1]} : vector<12x20x128xf32> to vector<8x16x128xf32>
    %51 = vector.shape_cast %50 : vector<8x16x128xf32> to vector<128x128xf32>
    %52 = vector.extract_strided_slice %35 {offsets = [3, 3, 0], sizes = [8, 16, 128], strides = [1, 1, 1]} : vector<12x20x128xf32> to vector<8x16x128xf32>
    %53 = vector.shape_cast %52 : vector<8x16x128xf32> to vector<128x128xf32>
    %54 = tpu.concatenate %37, %39, %41, %43, %45, %47, %49, %51, %53 in 1 : vector<128x128xf32>, vector<128x128xf32>, vector<128x128xf32>, vector<128x128xf32>, vector<128x128xf32>, vector<128x128xf32>, vector<128x128xf32>, vector<128x128xf32>, vector<128x128xf32> -> vector<128x1152xf32>
    %c0_7 = arith.constant 0 : index
    %c0_8 = arith.constant 0 : index
    %55 = vector.load %arg5[%c0_7, %c0_8] : memref<1152x128xf32, #tpu.memory_space<vmem>>, vector<1152x128xf32>
    %cst_9 = arith.constant dense<0.000000e+00> : vector<128x128xf32>
    %56 = tpu.matmul %54, %55, %cst_9 {dimension_numbers = #tpu.dot_dimension_numbers<[1], [0], [0], [1], [0, 0, 1, 1], [], []>} : vector<128x1152xf32>, vector<1152x128xf32>, vector<128x128xf32> -> vector<128x128xf32>
    %c0_10 = arith.constant 0 : index
    %c0_11 = arith.constant 0 : index
    %57 = vector.load %arg6[%c0_10, %c0_11] : memref<1x128xf32, #tpu.memory_space<vmem>>, vector<1x128xf32>
    %58 = vector.broadcast %57 : vector<1x128xf32> to vector<128x128xf32>
    %59 = arith.addf %56, %58 : vector<128x128xf32>
    %60 = vector.shape_cast %59 : vector<128x128xf32> to vector<8x16x128xf32>
    %c0_12 = arith.constant 0 : index
    %c0_13 = arith.constant 0 : index
    %c0_14 = arith.constant 0 : index
    %c0_15 = arith.constant 0 : index
    %61 = vector.load %arg7[%c0_12, %c0_13, %c0_14, %c0_15] : memref<1x8x16x128xf32, #tpu.memory_space<vmem>>, vector<1x8x16x128xf32>
    %62 = vector.shape_cast %61 : vector<1x8x16x128xf32> to vector<8x16x128xf32>
    %63 = vector.shape_cast %60 : vector<8x16x128xf32> to vector<1x8x16x128xf32>
    tpu.vector_store %arg7[%c0_12, %c0_13, %c0_14, %c0_15], %63 {strides = array<i32>} : memref<1x8x16x128xf32, #tpu.memory_space<vmem>>, vector<1x8x16x128xf32>,
    return
  }
  func.func @transform_0(%arg0: i32, %arg1: i32) -> (i32, i32, i32, i32) {
    %c0_i32 = arith.constant 0 : i32
    %c0_i32_0 = arith.constant 0 : i32
    %c0_i32_1 = arith.constant 0 : i32
    %c0_i32_2 = arith.constant 0 : i32
    return %arg0, %c0_i32, %c0_i32_0, %c0_i32_1 : i32, i32, i32, i32
  }
  func.func @transform_1(%arg0: i32, %arg1: i32) -> (i32, i32) {
    %c0_i32 = arith.constant 0 : i32
    %c0_i32_0 = arith.constant 0 : i32
    %c0_i32_1 = arith.constant 0 : i32
    return %c0_i32, %c0_i32_0 : i32, i32
  }
  func.func @transform_2(%arg0: i32, %arg1: i32) -> (i32, i32) {
    %c0_i32 = arith.constant 0 : i32
    %c0_i32_0 = arith.constant 0 : i32
    %c0_i32_1 = arith.constant 0 : i32
    return %c0_i32, %c0_i32_0 : i32, i32
  }
  func.func @transform_3(%arg0: i32, %arg1: i32) -> (i32, i32) {
    %c0_i32 = arith.constant 0 : i32
    %c0_i32_0 = arith.constant 0 : i32
    %c0_i32_1 = arith.constant 0 : i32
    return %c0_i32, %c0_i32_0 : i32, i32
  }
  func.func @transform_4(%arg0: i32, %arg1: i32) -> (i32, i32) {
    %c0_i32 = arith.constant 0 : i32
    %c0_i32_0 = arith.constant 0 : i32
    %c0_i32_1 = arith.constant 0 : i32
    return %c0_i32, %c0_i32_0 : i32, i32
  }
  func.func @transform_5(%arg0: i32, %arg1: i32) -> (i32, i32, i32, i32) {
    %c0_i32 = arith.constant 0 : i32
    %c0_i32_0 = arith.constant 0 : i32
    %c0_i32_1 = arith.constant 0 : i32
    return %arg0, %arg1, %c0_i32, %c0_i32_0 : i32, i32, i32, i32
  }
}

module attributes {stable_mosaic.version = 11 : i64} {
  func.func @conv2_fused_kernel(%arg0: i32, %arg1: i32, %arg2: memref<1x18x18x128xf32, #tpu.memory_space<vmem>>, %arg3: memref<1x128xf32, #tpu.memory_space<vmem>>, %arg4: memref<1x128xf32, #tpu.memory_space<vmem>>, %arg5: memref<1152x128xf32, #tpu.memory_space<vmem>>, %arg6: memref<1x128xf32, #tpu.memory_space<vmem>>, %arg7: memref<1x10x20x128xf32, #tpu.memory_space<vmem>>, %arg8: memref<128x128xf32, #tpu.memory_space<vmem>>, %arg9: memref<1x128xf32, #tpu.memory_space<vmem>>, %arg10: memref<1x8x16x128xf32, #tpu.memory_space<vmem>>) attributes {dimension_semantics = [#tpu.dimension_semantics<parallel>, #tpu.dimension_semantics<parallel>], iteration_bounds = array<i64: 2, 2>, scalar_prefetch = 0 : i64, scratch_operands = 0 : i64, tpu.core_type = #tpu.core_type<tc>, window_params = [{transform_indices = @transform_0, window_bounds = array<i64: 1, 18, 18, 128>}, {pipeline_mode = #tpu.pipeline_mode<synchronous>, transform_indices = @transform_1, window_bounds = array<i64: 1, 128>}, {pipeline_mode = #tpu.pipeline_mode<synchronous>, transform_indices = @transform_2, window_bounds = array<i64: 1, 128>}, {pipeline_mode = #tpu.pipeline_mode<synchronous>, transform_indices = @transform_3, window_bounds = array<i64: 1152, 128>}, {pipeline_mode = #tpu.pipeline_mode<synchronous>, transform_indices = @transform_4, window_bounds = array<i64: 1, 128>}, {transform_indices = @transform_5, window_bounds = array<i64: 1, 10, 20, 128>}, {pipeline_mode = #tpu.pipeline_mode<synchronous>, transform_indices = @transform_6, window_bounds = array<i64: 128, 128>}, {pipeline_mode = #tpu.pipeline_mode<synchronous>, transform_indices = @transform_7, window_bounds = array<i64: 1, 128>}, {transform_indices = @transform_8, window_bounds = array<i64: 1, 8, 16, 128>}]} {
    %c8_i32 = arith.constant 8 : i32
    %0 = arith.muli %arg1, %c8_i32 : i32
    %1 = tpu.assume_multiple %0, 8 : i32
    %c0 = arith.constant 0 : index
    %2 = arith.index_cast %1 : i32 to index
    %c0_0 = arith.constant 0 : index
    %c0_1 = arith.constant 0 : index
    %3 = vector.load %arg2[%c0, %2, %c0_0, %c0_1] : memref<1x18x18x128xf32, #tpu.memory_space<vmem>>, vector<1x10x18x128xf32>
    %4 = vector.shape_cast %3 : vector<1x10x18x128xf32> to vector<10x18x128xf32>
    %c0_2 = arith.constant 0 : index
    %c0_3 = arith.constant 0 : index
    %5 = vector.load %arg3[%c0_2, %c0_3] : memref<1x128xf32, #tpu.memory_space<vmem>>, vector<1x128xf32>
    %6 = vector.shape_cast %5 : vector<1x128xf32> to vector<1x1x128xf32>
    %7 = vector.broadcast %6 : vector<1x1x128xf32> to vector<10x18x128xf32>
    %8 = arith.mulf %4, %7 : vector<10x18x128xf32>
    %c0_4 = arith.constant 0 : index
    %c0_5 = arith.constant 0 : index
    %9 = vector.load %arg4[%c0_4, %c0_5] : memref<1x128xf32, #tpu.memory_space<vmem>>, vector<1x128xf32>
    %10 = vector.shape_cast %9 : vector<1x128xf32> to vector<1x1x128xf32>
    %11 = vector.broadcast %10 : vector<1x1x128xf32> to vector<10x18x128xf32>
    %12 = arith.addf %8, %11 : vector<10x18x128xf32>
    %cst = arith.constant 0.000000e+00 : f32
    %13 = vector.broadcast %cst : f32 to vector<10x18x128xf32>
    %14 = arith.maximumf %12, %13 : vector<10x18x128xf32>
    %15 = tpu.iota {dimensions = array<i32: 0>} : vector<10x18x128xi32>
    %16 = vector.broadcast %1 : i32 to vector<10x18x128xi32>
    %17 = arith.addi %16, %15 : vector<10x18x128xi32>
    %18 = tpu.iota {dimensions = array<i32: 1>} : vector<10x18x128xi32>
    %c1_i32 = arith.constant 1 : i32
    %19 = vector.broadcast %c1_i32 : i32 to vector<10x18x128xi32>
    %20 = arith.cmpi sge, %17, %19 : vector<10x18x128xi32>
    %c16_i32 = arith.constant 16 : i32
    %21 = vector.broadcast %c16_i32 : i32 to vector<10x18x128xi32>
    %22 = arith.cmpi sle, %17, %21 : vector<10x18x128xi32>
    %23 = arith.andi %20, %22 : vector<10x18x128xi1>
    %c1_i32_6 = arith.constant 1 : i32
    %24 = vector.broadcast %c1_i32_6 : i32 to vector<10x18x128xi32>
    %25 = arith.cmpi sge, %18, %24 : vector<10x18x128xi32>
    %26 = arith.andi %23, %25 : vector<10x18x128xi1>
    %c16_i32_7 = arith.constant 16 : i32
    %27 = vector.broadcast %c16_i32_7 : i32 to vector<10x18x128xi32>
    %28 = arith.cmpi sle, %18, %27 : vector<10x18x128xi32>
    %29 = arith.andi %26, %28 : vector<10x18x128xi1>
    %cst_8 = arith.constant 0.000000e+00 : f32
    %30 = vector.broadcast %cst_8 : f32 to vector<10x18x128xf32>
    %31 = arith.select %29, %14, %30 : vector<10x18x128xi1>, vector<10x18x128xf32>
    %32 = vector.extract_strided_slice %31 {offsets = [0, 0, 0], sizes = [8, 16, 128], strides = [1, 1, 1]} : vector<10x18x128xf32> to vector<8x16x128xf32>
    %33 = vector.shape_cast %32 : vector<8x16x128xf32> to vector<128x128xf32>
    %34 = vector.extract_strided_slice %31 {offsets = [0, 1, 0], sizes = [8, 16, 128], strides = [1, 1, 1]} : vector<10x18x128xf32> to vector<8x16x128xf32>
    %35 = vector.shape_cast %34 : vector<8x16x128xf32> to vector<128x128xf32>
    %36 = vector.extract_strided_slice %31 {offsets = [0, 2, 0], sizes = [8, 16, 128], strides = [1, 1, 1]} : vector<10x18x128xf32> to vector<8x16x128xf32>
    %37 = vector.shape_cast %36 : vector<8x16x128xf32> to vector<128x128xf32>
    %38 = vector.extract_strided_slice %31 {offsets = [1, 0, 0], sizes = [8, 16, 128], strides = [1, 1, 1]} : vector<10x18x128xf32> to vector<8x16x128xf32>
    %39 = vector.shape_cast %38 : vector<8x16x128xf32> to vector<128x128xf32>
    %40 = vector.extract_strided_slice %31 {offsets = [1, 1, 0], sizes = [8, 16, 128], strides = [1, 1, 1]} : vector<10x18x128xf32> to vector<8x16x128xf32>
    %41 = vector.shape_cast %40 : vector<8x16x128xf32> to vector<128x128xf32>
    %42 = vector.extract_strided_slice %31 {offsets = [1, 2, 0], sizes = [8, 16, 128], strides = [1, 1, 1]} : vector<10x18x128xf32> to vector<8x16x128xf32>
    %43 = vector.shape_cast %42 : vector<8x16x128xf32> to vector<128x128xf32>
    %44 = vector.extract_strided_slice %31 {offsets = [2, 0, 0], sizes = [8, 16, 128], strides = [1, 1, 1]} : vector<10x18x128xf32> to vector<8x16x128xf32>
    %45 = vector.shape_cast %44 : vector<8x16x128xf32> to vector<128x128xf32>
    %46 = vector.extract_strided_slice %31 {offsets = [2, 1, 0], sizes = [8, 16, 128], strides = [1, 1, 1]} : vector<10x18x128xf32> to vector<8x16x128xf32>
    %47 = vector.shape_cast %46 : vector<8x16x128xf32> to vector<128x128xf32>
    %48 = vector.extract_strided_slice %31 {offsets = [2, 2, 0], sizes = [8, 16, 128], strides = [1, 1, 1]} : vector<10x18x128xf32> to vector<8x16x128xf32>
    %49 = vector.shape_cast %48 : vector<8x16x128xf32> to vector<128x128xf32>
    %50 = tpu.concatenate %33, %35, %37, %39, %41, %43, %45, %47, %49 in 1 : vector<128x128xf32>, vector<128x128xf32>, vector<128x128xf32>, vector<128x128xf32>, vector<128x128xf32>, vector<128x128xf32>, vector<128x128xf32>, vector<128x128xf32>, vector<128x128xf32> -> vector<128x1152xf32>
    %c0_9 = arith.constant 0 : index
    %c0_10 = arith.constant 0 : index
    %51 = vector.load %arg5[%c0_9, %c0_10] : memref<1152x128xf32, #tpu.memory_space<vmem>>, vector<1152x128xf32>
    %cst_11 = arith.constant dense<0.000000e+00> : vector<128x128xf32>
    %52 = tpu.matmul %50, %51, %cst_11 {dimension_numbers = #tpu.dot_dimension_numbers<[1], [0], [0], [1], [0, 0, 1, 1], [], []>} : vector<128x1152xf32>, vector<1152x128xf32>, vector<128x128xf32> -> vector<128x128xf32>
    %c0_12 = arith.constant 0 : index
    %c0_13 = arith.constant 0 : index
    %53 = vector.load %arg6[%c0_12, %c0_13] : memref<1x128xf32, #tpu.memory_space<vmem>>, vector<1x128xf32>
    %54 = vector.broadcast %53 : vector<1x128xf32> to vector<128x128xf32>
    %55 = arith.addf %52, %54 : vector<128x128xf32>
    %c4_i32 = arith.constant 4 : i32
    %56 = arith.muli %arg1, %c4_i32 : i32
    %57 = tpu.assume_multiple %56, 4 : i32
    %c1_i32_14 = arith.constant 1 : i32
    %58 = arith.addi %c1_i32_14, %57 : i32
    %c0_15 = arith.constant 0 : index
    %59 = arith.index_cast %58 : i32 to index
    %c0_16 = arith.constant 0 : index
    %c0_17 = arith.constant 0 : index
    %60 = vector.load %arg7[%c0_15, %59, %c0_16, %c0_17] : memref<1x10x20x128xf32, #tpu.memory_space<vmem>>, vector<1x4x20x128xf32>
    %61 = vector.shape_cast %60 : vector<1x4x20x128xf32> to vector<4x20x128xf32>
    %62 = vector.extract_strided_slice %61 {offsets = [0, 2, 0], sizes = [4, 16, 128], strides = [1, 1, 1]} : vector<4x20x128xf32> to vector<4x16x128xf32>
    %63 = vector.shape_cast %62 : vector<4x16x128xf32> to vector<4x1x16x128xf32>
    %64 = vector.shape_cast %63 : vector<4x1x16x128xf32> to vector<4x1x16x128xf32>
    %65 = vector.broadcast %64 : vector<4x1x16x128xf32> to vector<4x2x16x128xf32>
    %66 = vector.shape_cast %65 : vector<4x2x16x128xf32> to vector<8x16x128xf32>
    %67 = vector.shape_cast %66 : vector<8x16x128xf32> to vector<128x128xf32>
    %c0_18 = arith.constant 0 : index
    %c0_19 = arith.constant 0 : index
    %68 = vector.load %arg8[%c0_18, %c0_19] : memref<128x128xf32, #tpu.memory_space<vmem>>, vector<128x128xf32>
    %cst_20 = arith.constant dense<0.000000e+00> : vector<128x128xf32>
    %69 = tpu.matmul %67, %68, %cst_20 {dimension_numbers = #tpu.dot_dimension_numbers<[1], [0], [0], [1], [0, 0, 1, 1], [], []>} : vector<128x128xf32>, vector<128x128xf32>, vector<128x128xf32> -> vector<128x128xf32>
    %70 = arith.addf %55, %69 : vector<128x128xf32>
    %c0_21 = arith.constant 0 : index
    %c0_22 = arith.constant 0 : index
    %71 = vector.load %arg9[%c0_21, %c0_22] : memref<1x128xf32, #tpu.memory_space<vmem>>, vector<1x128xf32>
    %72 = vector.broadcast %71 : vector<1x128xf32> to vector<128x128xf32>
    %73 = arith.addf %70, %72 : vector<128x128xf32>
    %74 = vector.shape_cast %73 : vector<128x128xf32> to vector<8x16x128xf32>
    %c0_23 = arith.constant 0 : index
    %c0_24 = arith.constant 0 : index
    %c0_25 = arith.constant 0 : index
    %c0_26 = arith.constant 0 : index
    %75 = vector.load %arg10[%c0_23, %c0_24, %c0_25, %c0_26] : memref<1x8x16x128xf32, #tpu.memory_space<vmem>>, vector<1x8x16x128xf32>
    %76 = vector.shape_cast %75 : vector<1x8x16x128xf32> to vector<8x16x128xf32>
    %77 = vector.shape_cast %74 : vector<8x16x128xf32> to vector<1x8x16x128xf32>
    tpu.vector_store %arg10[%c0_23, %c0_24, %c0_25, %c0_26], %77 {strides = array<i32>} : memref<1x8x16x128xf32, #tpu.memory_space<vmem>>, vector<1x8x16x128xf32>,
    return
  }
  func.func @transform_0(%arg0: i32, %arg1: i32) -> (i32, i32, i32, i32) {
    %c0_i32 = arith.constant 0 : i32
    %c0_i32_0 = arith.constant 0 : i32
    %c0_i32_1 = arith.constant 0 : i32
    %c0_i32_2 = arith.constant 0 : i32
    return %arg0, %c0_i32, %c0_i32_0, %c0_i32_1 : i32, i32, i32, i32
  }
  func.func @transform_1(%arg0: i32, %arg1: i32) -> (i32, i32) {
    %c0_i32 = arith.constant 0 : i32
    %c0_i32_0 = arith.constant 0 : i32
    %c0_i32_1 = arith.constant 0 : i32
    return %c0_i32, %c0_i32_0 : i32, i32
  }
  func.func @transform_2(%arg0: i32, %arg1: i32) -> (i32, i32) {
    %c0_i32 = arith.constant 0 : i32
    %c0_i32_0 = arith.constant 0 : i32
    %c0_i32_1 = arith.constant 0 : i32
    return %c0_i32, %c0_i32_0 : i32, i32
  }
  func.func @transform_3(%arg0: i32, %arg1: i32) -> (i32, i32) {
    %c0_i32 = arith.constant 0 : i32
    %c0_i32_0 = arith.constant 0 : i32
    %c0_i32_1 = arith.constant 0 : i32
    return %c0_i32, %c0_i32_0 : i32, i32
  }
  func.func @transform_4(%arg0: i32, %arg1: i32) -> (i32, i32) {
    %c0_i32 = arith.constant 0 : i32
    %c0_i32_0 = arith.constant 0 : i32
    %c0_i32_1 = arith.constant 0 : i32
    return %c0_i32, %c0_i32_0 : i32, i32
  }
  func.func @transform_5(%arg0: i32, %arg1: i32) -> (i32, i32, i32, i32) {
    %c0_i32 = arith.constant 0 : i32
    %c0_i32_0 = arith.constant 0 : i32
    %c0_i32_1 = arith.constant 0 : i32
    %c0_i32_2 = arith.constant 0 : i32
    return %arg0, %c0_i32, %c0_i32_0, %c0_i32_1 : i32, i32, i32, i32
  }
  func.func @transform_6(%arg0: i32, %arg1: i32) -> (i32, i32) {
    %c0_i32 = arith.constant 0 : i32
    %c0_i32_0 = arith.constant 0 : i32
    %c0_i32_1 = arith.constant 0 : i32
    return %c0_i32, %c0_i32_0 : i32, i32
  }
  func.func @transform_7(%arg0: i32, %arg1: i32) -> (i32, i32) {
    %c0_i32 = arith.constant 0 : i32
    %c0_i32_0 = arith.constant 0 : i32
    %c0_i32_1 = arith.constant 0 : i32
    return %c0_i32, %c0_i32_0 : i32, i32
  }
  func.func @transform_8(%arg0: i32, %arg1: i32) -> (i32, i32, i32, i32) {
    %c0_i32 = arith.constant 0 : i32
    %c0_i32_0 = arith.constant 0 : i32
    %c0_i32_1 = arith.constant 0 : i32
    return %arg0, %arg1, %c0_i32, %c0_i32_0 : i32, i32, i32, i32
  }
}

</mosaic_0001>

<llo_original>
// kernel: resblock_forward.4
$region0: #{resblock_forward.4}
  #allocation0 [shape = 'u32[]', space=smem, size = 0x4, offset = 0x4, fixed_abs, tag = 'smem constant byte address 0x4 - core index']
  #allocation1 [shape = 'u32[144,128]{1,0:T(1,128)}', space=vmem, size = 0x12000, scoped, tag = 'internal scratch']
  %s0 = inlined_call_operand.hbm [shape: f32[128,128], index: 0, kind: input, shape index: {}]
  %s1 = inlined_call_operand.vmem [shape: f32[1,128], index: 1, kind: output, shape index: {0}]
  %s2 = inlined_call_operand.vmem [shape: f32[1,128], index: 2, kind: output, shape index: {1}]
  %3 = xla_tuple %s1, %s2
  %s4 = sld [smem:[#allocation0]]
  $region30: #{resblock_forward.4} parent=0
    _
  %s6 = ssub.s32 1, %s4
  %s7 = scalar_select 0, %s6, %s4
  $region1: #{resblock_forward.4} parent=0
    #allocation2 [shape = 'u8[65536]{0}', space=vmem, size = 0x10000, scoped, tag = 'input window, operand 0, single buffered']
    #allocation3 [shape = 's32[1]{0}', space=sflag, size = 0x4, scoped, tag = 'scoped memory for resblock_forward.4']
    %8 = vsyncpa [#allocation3], 0
    // Predicated region
    $region2: #{resblock_forward.4} parent=1 // pred_check
      _
    $region3: #{resblock_forward.4} parent=1 // pred_check_branch
      %10 = sbr.rel (0) target = $region5
    $region4: #{resblock_forward.4} parent=1 // pred_region
      %s12 = ssub.s32 2048, 2048
      %13 = vsyncadd [#allocation3], %s12
      %s14 = sshll.u32 [#allocation2], 4
      %s15 = int_to_ptr.vmem [resolvable:$true] %s14
      %20 = dma.hbm_to_vmem [thread:$0]  %s0, 2048, %s15, [#allocation3], 128, 128, 8
    $region5: #{resblock_forward.4} parent=1 // pred_fallthru
      _
    // Predicated region
    $region6: #{resblock_forward.4} parent=1 // pred_check
      _
    $region7: #{resblock_forward.4} parent=1 // pred_check_branch
      %22 = sbr.rel (0) target = $region9
    $region8: #{resblock_forward.4} parent=1 // pred_region
      %23 = dma.done [#allocation3], 2048
    $region9: #{resblock_forward.4} parent=1 // pred_fallthru
      _
    %p24 = scmp.eq.s32.totalorder 0, 0
    // Predicated region
    $region10: #{resblock_forward.4} parent=1 // pred_check
      %p25 = pneg %p24
    $region11: #{resblock_forward.4} parent=1 // pred_check_branch
      %27 = sbr.rel (%p25) target = $region13
    $region12: #{resblock_forward.4} parent=1 // pred_region
      %28 = vst [vmem:[%s1] sm:$0x1] 0.0
      %29 = vst [vmem:[%s2] sm:$0x1] 0.0
    $region13: #{resblock_forward.4} parent=1 // pred_fallthru
      _
    %v30 = vld [vmem:[#allocation2] sm:$0xff]
    %v31 = vld [vmem:[#allocation2 + $0x8] sm:$0xff]
    %v32 = vld [vmem:[#allocation2 + $0x10] sm:$0xff]
    %v33 = vld [vmem:[#allocation2 + $0x18] sm:$0xff]
    %v34 = vld [vmem:[#allocation2 + $0x20] sm:$0xff]
    %v35 = vld [vmem:[#allocation2 + $0x28] sm:$0xff]
    %v36 = vld [vmem:[#allocation2 + $0x30] sm:$0xff]
    %v37 = vld [vmem:[#allocation2 + $0x38] sm:$0xff]
    %v38 = vld [vmem:[#allocation2 + $0x40] sm:$0xff]
    %v39 = vld [vmem:[#allocation2 + $0x48] sm:$0xff]
    %v40 = vld [vmem:[#allocation2 + $0x50] sm:$0xff]
    %v41 = vld [vmem:[#allocation2 + $0x58] sm:$0xff]
    %v42 = vld [vmem:[#allocation2 + $0x60] sm:$0xff]
    %v43 = vld [vmem:[#allocation2 + $0x68] sm:$0xff]
    %v44 = vld [vmem:[#allocation2 + $0x70] sm:$0xff]
    %v45 = vld [vmem:[#allocation2 + $0x78] sm:$0xff]
    %v46 = vld [vmem:[%s1] sm:$0x1]
    %v47 = vadd.f32 %v30, %v31
    %v48 = vadd.f32 %v47, %v32
    %v49 = vadd.f32 %v48, %v33
    %v50 = vadd.f32 %v49, %v34
    %v51 = vadd.f32 %v50, %v35
    %v52 = vadd.f32 %v51, %v36
    %v53 = vadd.f32 %v52, %v37
    %v54 = vadd.f32 %v53, %v38
    %v55 = vadd.f32 %v54, %v39
    %v56 = vadd.f32 %v55, %v40
    %v57 = vadd.f32 %v56, %v41
    %v58 = vadd.f32 %v57, %v42
    %v59 = vadd.f32 %v58, %v43
    %v60 = vadd.f32 %v59, %v44
    %v61 = vadd.f32 %v60, %v45
    %v62 = vrot.slane %v61, 4
    %v63 = vadd.f32 %v61, %v62
    %v64 = vrot.slane %v63, 2
    %v65 = vadd.f32 %v63, %v64
    %v66 = vrot.slane %v65, 1
    %v67 = vadd.f32 %v65, %v66
    %v68 = vadd.f32 %v46, %v67
    %69 = vst [vmem:[%s1] sm:$0x1] %v68
    %v70 = vld [vmem:[%s2] sm:$0x1]
    %v71 = vmul.f32 %v30, %v30
    %v72 = vmul.f32 %v31, %v31
    %v73 = vmul.f32 %v32, %v32
    %v74 = vmul.f32 %v33, %v33
    %v75 = vmul.f32 %v34, %v34
    %v76 = vmul.f32 %v35, %v35
    %v77 = vmul.f32 %v36, %v36
    %v78 = vmul.f32 %v37, %v37
    %v79 = vmul.f32 %v38, %v38
    %v80 = vmul.f32 %v39, %v39
    %v81 = vmul.f32 %v40, %v40
    %v82 = vmul.f32 %v41, %v41
    %v83 = vmul.f32 %v42, %v42
    %v84 = vmul.f32 %v43, %v43
    %v85 = vmul.f32 %v44, %v44
    %v86 = vmul.f32 %v45, %v45
    %v87 = vadd.f32 %v71, %v72
    %v88 = vadd.f32 %v87, %v73
    %v89 = vadd.f32 %v88, %v74
    %v90 = vadd.f32 %v89, %v75
    %v91 = vadd.f32 %v90, %v76
    %v92 = vadd.f32 %v91, %v77
    %v93 = vadd.f32 %v92, %v78
    %v94 = vadd.f32 %v93, %v79
    %v95 = vadd.f32 %v94, %v80
    %v96 = vadd.f32 %v95, %v81
    %v97 = vadd.f32 %v96, %v82
    %v98 = vadd.f32 %v97, %v83
    %v99 = vadd.f32 %v98, %v84
    %v100 = vadd.f32 %v99, %v85
    %v101 = vadd.f32 %v100, %v86
    %v102 = vrot.slane %v101, 4
    %v103 = vadd.f32 %v101, %v102
    %v104 = vrot.slane %v103, 2
    %v105 = vadd.f32 %v103, %v104
    %v106 = vrot.slane %v105, 1
    %v107 = vadd.f32 %v105, %v106
    %v108 = vadd.f32 %v70, %v107
    %109 = vst [vmem:[%s2] sm:$0x1] %v108
    // Predicated region
    $region14: #{resblock_forward.4} parent=1 // pred_check
      _
    $region15: #{resblock_forward.4} parent=1 // pred_check_branch
      %111 = sbr.rel (0) target = $region17
    $region16: #{resblock_forward.4} parent=1 // pred_region
      _
    $region17: #{resblock_forward.4} parent=1 // pred_fallthru
      _
    // Predicated region
    $region18: #{resblock_forward.4} parent=1 // pred_check
      _
    $region19: #{resblock_forward.4} parent=1 // pred_check_branch
      %113 = sbr.rel (0) target = $region21
    $region20: #{resblock_forward.4} parent=1 // pred_region
      _
    $region21: #{resblock_forward.4} parent=1 // pred_fallthru
      _
    // Predicated region
    $region22: #{resblock_forward.4} parent=1 // pred_check
      _
    $region23: #{resblock_forward.4} parent=1 // pred_check_branch
      %115 = sbr.rel (0) target = $region25
    $region24: #{resblock_forward.4} parent=1 // pred_region
      _
    $region25: #{resblock_forward.4} parent=1 // pred_fallthru
      _
    // Predicated region
    $region26: #{resblock_forward.4} parent=1 // pred_check
      _
    $region27: #{resblock_forward.4} parent=1 // pred_check_branch
      %117 = sbr.rel (0) target = $region29
    $region28: #{resblock_forward.4} parent=1 // pred_region
      _
    $region29: #{resblock_forward.4} parent=1 // pred_fallthru
      _
    %118 = vsyncpa [#allocation3], 1

// kernel: resblock_forward.6
$region0: #{resblock_forward.6}
  #allocation0 [shape = 'u32[]', space=smem, size = 0x4, offset = 0x4, fixed_abs, tag = 'smem constant byte address 0x4 - core index']
  #allocation1 [shape = 'u32[144,128]{1,0:T(1,128)}', space=vmem, size = 0x12000, scoped, tag = 'internal scratch']
  %s0 = inlined_call_operand.vmem [shape: f32[512,128], index: 0, kind: input, shape index: {}]
  %s1 = inlined_call_operand.vmem [shape: f32[1,128], index: 1, kind: output, shape index: {0}]
  %s2 = inlined_call_operand.vmem [shape: f32[1,128], index: 2, kind: output, shape index: {1}]
  %3 = xla_tuple %s1, %s2
  %s4 = sld [smem:[#allocation0]]
  $region49: #{resblock_forward.6} parent=0
    _
  %s6 = ssub.s32 1, %s4
  %s7 = scalar_select 0, %s6, %s4
  loop: start=0, step=1, limit=4
  $region2: #{resblock_forward.6} parent=0 // loop_pre_header
    _
  $region3: #{resblock_forward.6} parent=0 // loop_header
    %s9 = sphi 0, %s13
    %p10 = scmp.ge.s32.totalorder %s9, 4
    %s19 = sphi 0, %s21
    %s22 = sphi 0, %s19
    %s23 = sphi 0, %s22
    %s39 = sphi 0, %s23
    %s43 = sphi 0, %s43
    %s45 = sphi 0, %s43
    %s46 = sphi 0, %s45
    %s60 = sphi 0, %s46
    %s64 = sphi 0, %s64
    %s66 = sphi 0, %s64
    %s67 = sphi 0, %s66
    %s81 = sphi 0, %s67
  $region4: #{resblock_forward.6} parent=0 // loop_header_branch
    %12 = sbr.rel (%p10) target = $region8
  $region5: #{resblock_forward.6} parent=0 // loop_body
    %s14 = ssub.s32 %s9, 1
    %s15 = ssub.s32 %s9, 2
    %s16 = sadd.s32 %s9, 1
    %s17 = ssub.s32 %s9, %s16
    %p18 = scmp.eq.s32.totalorder %s17, 0
    %s20 = sadd.s32 %s19, 1
    %s21 = scalar_select %p18, %s19, %s20
    %p24 = pneg %p18
    %p25 = scmp.eq.s32.totalorder %s9, 1
    %p26 = por %p24, %p25
    %p27 = scmp.ne.s32.totalorder %s19, %s22
    %p28 = scmp.eq.s32.totalorder %s9, 0
    %p29 = por %p27, %p28
    %p30 = scmp.ne.s32.totalorder %s19, %s22
    %p31 = scmp.eq.s32.totalorder %s14, 1
    %p32 = por %p30, %p31
    %p33 = scmp.ne.s32.totalorder %s22, %s23
    %p34 = scmp.eq.s32.totalorder %s14, 0
    %p35 = por %p33, %p34
    %p36 = scmp.ne.s32.totalorder %s22, %s23
    %p37 = scmp.eq.s32.totalorder %s15, 1
    %p38 = por %p36, %p37
    %p40 = scmp.ne.s32.totalorder %s23, %s39
    %p41 = scmp.eq.s32.totalorder %s15, 0
    %p42 = por %p40, %p41
    %s44 = sadd.s32 %s43, 1
    %p47 = scmp.eq.s32.totalorder %s9, 1
    %p48 = scmp.ne.s32.totalorder %s43, %s45
    %p49 = scmp.eq.s32.totalorder %s9, 0
    %p50 = por %p48, %p49
    %p51 = scmp.ne.s32.totalorder %s43, %s45
    %p52 = scmp.eq.s32.totalorder %s14, 1
    %p53 = por %p51, %p52
    %p54 = scmp.ne.s32.totalorder %s45, %s46
    %p55 = scmp.eq.s32.totalorder %s14, 0
    %p56 = por %p54, %p55
    %p57 = scmp.ne.s32.totalorder %s45, %s46
    %p58 = scmp.eq.s32.totalorder %s15, 1
    %p59 = por %p57, %p58
    %p61 = scmp.ne.s32.totalorder %s46, %s60
    %p62 = scmp.eq.s32.totalorder %s15, 0
    %p63 = por %p61, %p62
    %s65 = sadd.s32 %s64, 1
    %p68 = scmp.eq.s32.totalorder %s9, 1
    %p69 = scmp.ne.s32.totalorder %s64, %s66
    %p70 = scmp.eq.s32.totalorder %s9, 0
    %p71 = por %p69, %p70
    %p72 = scmp.ne.s32.totalorder %s64, %s66
    %p73 = scmp.eq.s32.totalorder %s14, 1
    %p74 = por %p72, %p73
    %p75 = scmp.ne.s32.totalorder %s66, %s67
    %p76 = scmp.eq.s32.totalorder %s14, 0
    %p77 = por %p75, %p76
    %p78 = scmp.ne.s32.totalorder %s66, %s67
    %p79 = scmp.eq.s32.totalorder %s15, 1
    %p80 = por %p78, %p79
    %p82 = scmp.ne.s32.totalorder %s67, %s81
    %p83 = scmp.eq.s32.totalorder %s15, 0
    %p84 = por %p82, %p83
    %p85 = scmp.le.s32.totalorder 1, %s9
    %p86 = scmp.lt.s32.totalorder %s9, 3
    %p87 = pnand %p85, %p86
    %p88 = pneg %p87
    // Predicated region
    $region9: #{resblock_forward.6} parent=5 // pred_check
      _
    $region10: #{resblock_forward.6} parent=5 // pred_check_branch
      %90 = sbr.rel (%p87) target = $region12
    $region11: #{resblock_forward.6} parent=5 // pred_region
      %s91 = ssub.s32 %s9, 1
    $region12: #{resblock_forward.6} parent=5 // pred_fallthru
      _
    %p92 = scmp.lt.s32.totalorder %s9, 2
    // Predicated region
    $region13: #{resblock_forward.6} parent=5 // pred_check
      %p93 = pneg %p92
    $region14: #{resblock_forward.6} parent=5 // pred_check_branch
      %95 = sbr.rel (%p93) target = $region16
    $region15: #{resblock_forward.6} parent=5 // pred_region
      // Predicated region
      $region17: #{resblock_forward.6} parent=15 // pred_check
        %p96 = pneg %p29
      $region18: #{resblock_forward.6} parent=15 // pred_check_branch
        %98 = sbr.rel (%p96) target = $region20
      $region19: #{resblock_forward.6} parent=15 // pred_region
        %s99 = smul.u32 32, %s9
        %p100 = scmp.lt.s32.totalorder %s99, 63
        %s101 = scalar_select %p100, %s99, 63
        %s102 = smul.addr %s101, 8
        %s103 = scalar_lea.vmem %s0, %s102
        %s104 = smul.u32 32, %s9
      $region20: #{resblock_forward.6} parent=15 // pred_fallthru
        _
    $region16: #{resblock_forward.6} parent=5 // pred_fallthru
      _
    %p105 = scmp.le.s32.totalorder 1, %s9
    %p106 = scmp.lt.s32.totalorder %s9, 3
    %p107 = pnand %p105, %p106
    %p108 = pneg %p107
    // Predicated region
    $region21: #{resblock_forward.6} parent=5 // pred_check
      _
    $region22: #{resblock_forward.6} parent=5 // pred_check_branch
      %110 = sbr.rel (%p107) target = $region24
    $region23: #{resblock_forward.6} parent=5 // pred_region
      %s111 = ssub.s32 %s9, 1
      %s112 = smul.u32 32, %s14
      %p113 = scmp.lt.s32.totalorder %s112, 63
      %s114 = scalar_select %p113, %s112, 63
      %s115 = smul.addr %s114, 8
      %s116 = scalar_lea.vmem %s0, %s115
      %p117 = pneg %p35
      %p118 = pneg %p32
      %p119 = pneg %p56
      %p120 = pneg %p53
      %p121 = pneg %p77
      %p122 = pneg %p74
      %s123 = smul.u32 32, %s14
      %p124 = scmp.lt.s32.totalorder %s123, 63
      %s125 = scalar_select %p124, %s123, 63
      %s126 = smul.addr %s125, 8
      %s127 = scalar_lea.vmem %s0, %s126
      %s128 = smul.u32 32, %s14
      %p129 = scmp.eq.s32.totalorder %s14, 0
      // Predicated region
      $region25: #{resblock_forward.6} parent=23 // pred_check
        %p130 = pneg %p129
      $region26: #{resblock_forward.6} parent=23 // pred_check_branch
        %132 = sbr.rel (%p130) target = $region28
      $region27: #{resblock_forward.6} parent=23 // pred_region
        %133 = vst [vmem:[%s1] sm:$0x1] 0.0
        %134 = vst [vmem:[%s2] sm:$0x1] 0.0
      $region28: #{resblock_forward.6} parent=23 // pred_fallthru
        _
      %v135 = vld [vmem:[%s127] sm:$0xff]
      %v136 = vld [vmem:[%s127 + $0x8] sm:$0xff]
      %v137 = vld [vmem:[%s127 + $0x10] sm:$0xff]
      %v138 = vld [vmem:[%s127 + $0x18] sm:$0xff]
      %v139 = vld [vmem:[%s127 + $0x20] sm:$0xff]
      %v140 = vld [vmem:[%s127 + $0x28] sm:$0xff]
      %v141 = vld [vmem:[%s127 + $0x30] sm:$0xff]
      %v142 = vld [vmem:[%s127 + $0x38] sm:$0xff]
      %v143 = vld [vmem:[%s127 + $0x40] sm:$0xff]
      %v144 = vld [vmem:[%s127 + $0x48] sm:$0xff]
      %v145 = vld [vmem:[%s127 + $0x50] sm:$0xff]
      %v146 = vld [vmem:[%s127 + $0x58] sm:$0xff]
      %v147 = vld [vmem:[%s127 + $0x60] sm:$0xff]
      %v148 = vld [vmem:[%s127 + $0x68] sm:$0xff]
      %v149 = vld [vmem:[%s127 + $0x70] sm:$0xff]
      %v150 = vld [vmem:[%s127 + $0x78] sm:$0xff]
      %v151 = vld [vmem:[%s127 + $0x80] sm:$0xff]
      %v152 = vld [vmem:[%s127 + $0x88] sm:$0xff]
      %v153 = vld [vmem:[%s127 + $0x90] sm:$0xff]
      %v154 = vld [vmem:[%s127 + $0x98] sm:$0xff]
      %v155 = vld [vmem:[%s127 + $0xa0] sm:$0xff]
      %v156 = vld [vmem:[%s127 + $0xa8] sm:$0xff]
      %v157 = vld [vmem:[%s127 + $0xb0] sm:$0xff]
      %v158 = vld [vmem:[%s127 + $0xb8] sm:$0xff]
      %v159 = vld [vmem:[%s127 + $0xc0] sm:$0xff]
      %v160 = vld [vmem:[%s127 + $0xc8] sm:$0xff]
      %v161 = vld [vmem:[%s127 + $0xd0] sm:$0xff]
      %v162 = vld [vmem:[%s127 + $0xd8] sm:$0xff]
      %v163 = vld [vmem:[%s127 + $0xe0] sm:$0xff]
      %v164 = vld [vmem:[%s127 + $0xe8] sm:$0xff]
      %v165 = vld [vmem:[%s127 + $0xf0] sm:$0xff]
      %v166 = vld [vmem:[%s127 + $0xf8] sm:$0xff]
      %v167 = vld [vmem:[%s1] sm:$0x1]
      %v168 = vadd.f32 %v135, %v136
      %v169 = vadd.f32 %v168, %v137
      %v170 = vadd.f32 %v169, %v138
      %v171 = vadd.f32 %v170, %v139
      %v172 = vadd.f32 %v171, %v140
      %v173 = vadd.f32 %v172, %v141
      %v174 = vadd.f32 %v173, %v142
      %v175 = vadd.f32 %v174, %v143
      %v176 = vadd.f32 %v175, %v144
      %v177 = vadd.f32 %v176, %v145
      %v178 = vadd.f32 %v177, %v146
      %v179 = vadd.f32 %v178, %v147
      %v180 = vadd.f32 %v179, %v148
      %v181 = vadd.f32 %v180, %v149
      %v182 = vadd.f32 %v181, %v150
      %v183 = vadd.f32 %v182, %v151
      %v184 = vadd.f32 %v183, %v152
      %v185 = vadd.f32 %v184, %v153
      %v186 = vadd.f32 %v185, %v154
      %v187 = vadd.f32 %v186, %v155
      %v188 = vadd.f32 %v187, %v156
      %v189 = vadd.f32 %v188, %v157
      %v190 = vadd.f32 %v189, %v158
      %v191 = vadd.f32 %v190, %v159
      %v192 = vadd.f32 %v191, %v160
      %v193 = vadd.f32 %v192, %v161
      %v194 = vadd.f32 %v193, %v162
      %v195 = vadd.f32 %v194, %v163
      %v196 = vadd.f32 %v195, %v164
      %v197 = vadd.f32 %v196, %v165
      %v198 = vadd.f32 %v197, %v166
      %v199 = vrot.slane %v198, 4
      %v200 = vadd.f32 %v198, %v199
      %v201 = vrot.slane %v200, 2
      %v202 = vadd.f32 %v200, %v201
      %v203 = vrot.slane %v202, 1
      %v204 = vadd.f32 %v202, %v203
      %v205 = vadd.f32 %v167, %v204
      %206 = vst [vmem:[%s1] sm:$0x1] %v205
      %v207 = vld [vmem:[%s2] sm:$0x1]
      %v208 = vmul.f32 %v135, %v135
      %v209 = vmul.f32 %v136, %v136
      %v210 = vmul.f32 %v137, %v137
      %v211 = vmul.f32 %v138, %v138
      %v212 = vmul.f32 %v139, %v139
      %v213 = vmul.f32 %v140, %v140
      %v214 = vmul.f32 %v141, %v141
      %v215 = vmul.f32 %v142, %v142
      %v216 = vmul.f32 %v143, %v143
      %v217 = vmul.f32 %v144, %v144
      %v218 = vmul.f32 %v145, %v145
      %v219 = vmul.f32 %v146, %v146
      %v220 = vmul.f32 %v147, %v147
      %v221 = vmul.f32 %v148, %v148
      %v222 = vmul.f32 %v149, %v149
      %v223 = vmul.f32 %v150, %v150
      %v224 = vmul.f32 %v151, %v151
      %v225 = vmul.f32 %v152, %v152
      %v226 = vmul.f32 %v153, %v153
      %v227 = vmul.f32 %v154, %v154
      %v228 = vmul.f32 %v155, %v155
      %v229 = vmul.f32 %v156, %v156
      %v230 = vmul.f32 %v157, %v157
      %v231 = vmul.f32 %v158, %v158
      %v232 = vmul.f32 %v159, %v159
      %v233 = vmul.f32 %v160, %v160
      %v234 = vmul.f32 %v161, %v161
      %v235 = vmul.f32 %v162, %v162
      %v236 = vmul.f32 %v163, %v163
      %v237 = vmul.f32 %v164, %v164
      %v238 = vmul.f32 %v165, %v165
      %v239 = vmul.f32 %v166, %v166
      %v240 = vadd.f32 %v208, %v209
      %v241 = vadd.f32 %v240, %v210
      %v242 = vadd.f32 %v241, %v211
      %v243 = vadd.f32 %v242, %v212
      %v244 = vadd.f32 %v243, %v213
      %v245 = vadd.f32 %v244, %v214
      %v246 = vadd.f32 %v245, %v215
      %v247 = vadd.f32 %v246, %v216
      %v248 = vadd.f32 %v247, %v217
      %v249 = vadd.f32 %v248, %v218
      %v250 = vadd.f32 %v249, %v219
      %v251 = vadd.f32 %v250, %v220
      %v252 = vadd.f32 %v251, %v221
      %v253 = vadd.f32 %v252, %v222
      %v254 = vadd.f32 %v253, %v223
      %v255 = vadd.f32 %v254, %v224
      %v256 = vadd.f32 %v255, %v225
      %v257 = vadd.f32 %v256, %v226
      %v258 = vadd.f32 %v257, %v227
      %v259 = vadd.f32 %v258, %v228
      %v260 = vadd.f32 %v259, %v229
      %v261 = vadd.f32 %v260, %v230
      %v262 = vadd.f32 %v261, %v231
      %v263 = vadd.f32 %v262, %v232
      %v264 = vadd.f32 %v263, %v233
      %v265 = vadd.f32 %v264, %v234
      %v266 = vadd.f32 %v265, %v235
      %v267 = vadd.f32 %v266, %v236
      %v268 = vadd.f32 %v267, %v237
      %v269 = vadd.f32 %v268, %v238
      %v270 = vadd.f32 %v269, %v239
      %v271 = vrot.slane %v270, 4
      %v272 = vadd.f32 %v270, %v271
      %v273 = vrot.slane %v272, 2
      %v274 = vadd.f32 %v272, %v273
      %v275 = vrot.slane %v274, 1
      %v276 = vadd.f32 %v274, %v275
      %v277 = vadd.f32 %v207, %v276
      %278 = vst [vmem:[%s2] sm:$0x1] %v277
      // Predicated region
      $region29: #{resblock_forward.6} parent=23 // pred_check
        %p279 = pneg %p53
      $region30: #{resblock_forward.6} parent=23 // pred_check_branch
        %281 = sbr.rel (%p279) target = $region32
      $region31: #{resblock_forward.6} parent=23 // pred_region
        _
      $region32: #{resblock_forward.6} parent=23 // pred_fallthru
        _
      // Predicated region
      $region33: #{resblock_forward.6} parent=23 // pred_check
        %p282 = pneg %p74
      $region34: #{resblock_forward.6} parent=23 // pred_check_branch
        %284 = sbr.rel (%p282) target = $region36
      $region35: #{resblock_forward.6} parent=23 // pred_region
        _
      $region36: #{resblock_forward.6} parent=23 // pred_fallthru
        _
      // Predicated region
      $region37: #{resblock_forward.6} parent=23 // pred_check
        %p285 = pneg %p53
      $region38: #{resblock_forward.6} parent=23 // pred_check_branch
        %287 = sbr.rel (%p285) target = $region40
      $region39: #{resblock_forward.6} parent=23 // pred_region
        _
      $region40: #{resblock_forward.6} parent=23 // pred_fallthru
        _
      // Predicated region
      $region41: #{resblock_forward.6} parent=23 // pred_check
        %p288 = pneg %p74
      $region42: #{resblock_forward.6} parent=23 // pred_check_branch
        %290 = sbr.rel (%p288) target = $region44
      $region43: #{resblock_forward.6} parent=23 // pred_region
        _
      $region44: #{resblock_forward.6} parent=23 // pred_fallthru
        _
    $region24: #{resblock_forward.6} parent=5 // pred_fallthru
      _
    %p291 = scmp.le.s32.totalorder 2, %s9
    // Predicated region
    $region45: #{resblock_forward.6} parent=5 // pred_check
      %p292 = pneg %p291
    $region46: #{resblock_forward.6} parent=5 // pred_check_branch
      %294 = sbr.rel (%p292) target = $region48
    $region47: #{resblock_forward.6} parent=5 // pred_region
      %s295 = ssub.s32 %s9, 2
    $region48: #{resblock_forward.6} parent=5 // pred_fallthru
      _
  $region6: #{resblock_forward.6} parent=0 // loop_footer
    %s13 = sadd.s32 1, %s9
  $region7: #{resblock_forward.6} parent=0 // loop_footer_branch
    %8 = sbr.rel target = $region3
  $region8: #{resblock_forward.6} parent=0 // loop_exit
    _

// kernel: resblock_forward.5
$region0: #{resblock_forward.5}
  #allocation0 [shape = 'u32[]', space=smem, size = 0x4, offset = 0x4, fixed_abs, tag = 'smem constant byte address 0x4 - core index']
  #allocation1 [shape = 'u32[144,128]{1,0:T(1,128)}', space=vmem, size = 0x12000, scoped, tag = 'internal scratch']
  %s0 = inlined_call_operand.vmem [shape: f32[2,10,20,128], index: 0, kind: input, shape index: {}]
  %s1 = inlined_call_operand.vmem [shape: f32[1,128], index: 1, kind: input, shape index: {}]
  %s2 = inlined_call_operand.vmem [shape: f32[1,128], index: 2, kind: input, shape index: {}]
  %s3 = inlined_call_operand.vmem [shape: f32[1152,128], index: 3, kind: input, shape index: {}]
  %s4 = inlined_call_operand.vmem [shape: f32[1,128], index: 4, kind: input, shape index: {}]
  %s5 = inlined_call_operand.vmem [shape: f32[2,16,16,128], index: 5, kind: output, shape index: {}]
  %s6 = sld [smem:[#allocation0]]
  $region53: #{resblock_forward.5} parent=0
    _
  %s8 = ssub.s32 1, %s6
  %s9 = scalar_select 0, %s8, %s6
  loop: start=0, step=1, limit=6
  $region2: #{resblock_forward.5} parent=0 // loop_pre_header
    _
  $region3: #{resblock_forward.5} parent=0 // loop_header
    %s11 = sphi 0, %s15
    %p12 = scmp.ge.s32.totalorder %s11, 6
    %s18 = sphi 0, %s30
    %s19 = sphi 0, %s26
    %s20 = sphi 0, %s18
    %s21 = sphi 0, %s19
    %s22 = sphi 0, %s20
    %s23 = sphi 0, %s21
    %s33 = sphi 0, %s35
    %s36 = sphi 0, %s33
    %s37 = sphi 0, %s36
    %s53 = sphi 0, %s37
    %s57 = sphi 0, %s57
    %s59 = sphi 0, %s57
    %s60 = sphi 0, %s59
    %s74 = sphi 0, %s60
    %s78 = sphi 0, %s78
    %s80 = sphi 0, %s78
    %s81 = sphi 0, %s80
    %s95 = sphi 0, %s81
    %s99 = sphi 0, %s99
    %s101 = sphi 0, %s99
    %s102 = sphi 0, %s101
    %s116 = sphi 0, %s102
    %s120 = sphi 0, %s120
    %s122 = sphi 0, %s120
    %s123 = sphi 0, %s122
    %s137 = sphi 0, %s123
    %s145 = sphi 0, %s147
    %s148 = sphi 0, %s145
    %s149 = sphi 0, %s148
    %s165 = sphi 0, %s149
  $region4: #{resblock_forward.5} parent=0 // loop_header_branch
    %14 = sbr.rel (%p12) target = $region8
  $region5: #{resblock_forward.5} parent=0 // loop_body
    %s16 = ssub.s32 %s11, 1
    %s17 = ssub.s32 %s11, 2
    %s24 = sadd.s32 1, %s19
    %p25 = scmp.ge.s32.totalorder %s24, 2
    %s26 = scalar_select %p25, 0, %s24
    %s27 = sadd.s32 1, %s18
    %s28 = scalar_select %p25, %s27, %s18
    %p29 = scmp.ge.s32.totalorder %s28, 2
    %s30 = scalar_select %p29, 0, %s28
    %s31 = ssub.s32 %s18, %s30
    %p32 = scmp.eq.s32.totalorder %s31, 0
    %s34 = sadd.s32 %s33, 1
    %s35 = scalar_select %p32, %s33, %s34
    %p38 = pneg %p32
    %p39 = scmp.eq.s32.totalorder %s11, 3
    %p40 = por %p38, %p39
    %p41 = scmp.ne.s32.totalorder %s33, %s36
    %p42 = scmp.eq.s32.totalorder %s11, 0
    %p43 = por %p41, %p42
    %p44 = scmp.ne.s32.totalorder %s33, %s36
    %p45 = scmp.eq.s32.totalorder %s16, 3
    %p46 = por %p44, %p45
    %p47 = scmp.ne.s32.totalorder %s36, %s37
    %p48 = scmp.eq.s32.totalorder %s16, 0
    %p49 = por %p47, %p48
    %p50 = scmp.ne.s32.totalorder %s36, %s37
    %p51 = scmp.eq.s32.totalorder %s17, 3
    %p52 = por %p50, %p51
    %p54 = scmp.ne.s32.totalorder %s37, %s53
    %p55 = scmp.eq.s32.totalorder %s17, 0
    %p56 = por %p54, %p55
    %s58 = sadd.s32 %s57, 1
    %p61 = scmp.eq.s32.totalorder %s11, 3
    %p62 = scmp.ne.s32.totalorder %s57, %s59
    %p63 = scmp.eq.s32.totalorder %s11, 0
    %p64 = por %p62, %p63
    %p65 = scmp.ne.s32.totalorder %s57, %s59
    %p66 = scmp.eq.s32.totalorder %s16, 3
    %p67 = por %p65, %p66
    %p68 = scmp.ne.s32.totalorder %s59, %s60
    %p69 = scmp.eq.s32.totalorder %s16, 0
    %p70 = por %p68, %p69
    %p71 = scmp.ne.s32.totalorder %s59, %s60
    %p72 = scmp.eq.s32.totalorder %s17, 3
    %p73 = por %p71, %p72
    %p75 = scmp.ne.s32.totalorder %s60, %s74
    %p76 = scmp.eq.s32.totalorder %s17, 0
    %p77 = por %p75, %p76
    %s79 = sadd.s32 %s78, 1
    %p82 = scmp.eq.s32.totalorder %s11, 3
    %p83 = scmp.ne.s32.totalorder %s78, %s80
    %p84 = scmp.eq.s32.totalorder %s11, 0
    %p85 = por %p83, %p84
    %p86 = scmp.ne.s32.totalorder %s78, %s80
    %p87 = scmp.eq.s32.totalorder %s16, 3
    %p88 = por %p86, %p87
    %p89 = scmp.ne.s32.totalorder %s80, %s81
    %p90 = scmp.eq.s32.totalorder %s16, 0
    %p91 = por %p89, %p90
    %p92 = scmp.ne.s32.totalorder %s80, %s81
    %p93 = scmp.eq.s32.totalorder %s17, 3
    %p94 = por %p92, %p93
    %p96 = scmp.ne.s32.totalorder %s81, %s95
    %p97 = scmp.eq.s32.totalorder %s17, 0
    %p98 = por %p96, %p97
    %s100 = sadd.s32 %s99, 1
    %p103 = scmp.eq.s32.totalorder %s11, 3
    %p104 = scmp.ne.s32.totalorder %s99, %s101
    %p105 = scmp.eq.s32.totalorder %s11, 0
    %p106 = por %p104, %p105
    %p107 = scmp.ne.s32.totalorder %s99, %s101
    %p108 = scmp.eq.s32.totalorder %s16, 3
    %p109 = por %p107, %p108
    %p110 = scmp.ne.s32.totalorder %s101, %s102
    %p111 = scmp.eq.s32.totalorder %s16, 0
    %p112 = por %p110, %p111
    %p113 = scmp.ne.s32.totalorder %s101, %s102
    %p114 = scmp.eq.s32.totalorder %s17, 3
    %p115 = por %p113, %p114
    %p117 = scmp.ne.s32.totalorder %s102, %s116
    %p118 = scmp.eq.s32.totalorder %s17, 0
    %p119 = por %p117, %p118
    %s121 = sadd.s32 %s120, 1
    %p124 = scmp.eq.s32.totalorder %s11, 3
    %p125 = scmp.ne.s32.totalorder %s120, %s122
    %p126 = scmp.eq.s32.totalorder %s11, 0
    %p127 = por %p125, %p126
    %p128 = scmp.ne.s32.totalorder %s120, %s122
    %p129 = scmp.eq.s32.totalorder %s16, 3
    %p130 = por %p128, %p129
    %p131 = scmp.ne.s32.totalorder %s122, %s123
    %p132 = scmp.eq.s32.totalorder %s16, 0
    %p133 = por %p131, %p132
    %p134 = scmp.ne.s32.totalorder %s122, %s123
    %p135 = scmp.eq.s32.totalorder %s17, 3
    %p136 = por %p134, %p135
    %p138 = scmp.ne.s32.totalorder %s123, %s137
    %p139 = scmp.eq.s32.totalorder %s17, 0
    %p140 = por %p138, %p139
    %s141 = ssub.s32 %s18, %s30
    %s142 = ssub.s32 %s19, %s26
    %s143 = sor.u32 %s141, %s142
    %p144 = scmp.eq.s32.totalorder %s143, 0
    %s146 = sadd.s32 %s145, 1
    %s147 = scalar_select %p144, %s145, %s146
    %p150 = pneg %p144
    %p151 = scmp.eq.s32.totalorder %s11, 3
    %p152 = por %p150, %p151
    %p153 = scmp.ne.s32.totalorder %s145, %s148
    %p154 = scmp.eq.s32.totalorder %s11, 0
    %p155 = por %p153, %p154
    %p156 = scmp.ne.s32.totalorder %s145, %s148
    %p157 = scmp.eq.s32.totalorder %s16, 3
    %p158 = por %p156, %p157
    %p159 = scmp.ne.s32.totalorder %s148, %s149
    %p160 = scmp.eq.s32.totalorder %s16, 0
    %p161 = por %p159, %p160
    %p162 = scmp.ne.s32.totalorder %s148, %s149
    %p163 = scmp.eq.s32.totalorder %s17, 3
    %p164 = por %p162, %p163
    %p166 = scmp.ne.s32.totalorder %s149, %s165
    %p167 = scmp.eq.s32.totalorder %s17, 0
    %p168 = por %p166, %p167
    %p169 = scmp.le.s32.totalorder 1, %s11
    %p170 = scmp.lt.s32.totalorder %s11, 5
    %p171 = pnand %p169, %p170
    %p172 = pneg %p171
    // Predicated region
    $region9: #{resblock_forward.5} parent=5 // pred_check
      _
    $region10: #{resblock_forward.5} parent=5 // pred_check_branch
      %174 = sbr.rel (%p171) target = $region12
    $region11: #{resblock_forward.5} parent=5 // pred_region
      %s175 = ssub.s32 %s11, 1
      // Predicated region
      $region13: #{resblock_forward.5} parent=11 // pred_check
        %p176 = pneg %p70
      $region14: #{resblock_forward.5} parent=11 // pred_check_branch
        %178 = sbr.rel (%p176) target = $region16
      $region15: #{resblock_forward.5} parent=11 // pred_region
        _
      $region16: #{resblock_forward.5} parent=11 // pred_fallthru
        _
      // Predicated region
      $region17: #{resblock_forward.5} parent=11 // pred_check
        %p179 = pneg %p91
      $region18: #{resblock_forward.5} parent=11 // pred_check_branch
        %181 = sbr.rel (%p179) target = $region20
      $region19: #{resblock_forward.5} parent=11 // pred_region
        _
      $region20: #{resblock_forward.5} parent=11 // pred_fallthru
        _
      // Predicated region
      $region21: #{resblock_forward.5} parent=11 // pred_check
        %p182 = pneg %p112
      $region22: #{resblock_forward.5} parent=11 // pred_check_branch
        %184 = sbr.rel (%p182) target = $region24
      $region23: #{resblock_forward.5} parent=11 // pred_region
        _
      $region24: #{resblock_forward.5} parent=11 // pred_fallthru
        _
      // Predicated region
      $region25: #{resblock_forward.5} parent=11 // pred_check
        %p185 = pneg %p133
      $region26: #{resblock_forward.5} parent=11 // pred_check_branch
        %187 = sbr.rel (%p185) target = $region28
      $region27: #{resblock_forward.5} parent=11 // pred_region
        _
      $region28: #{resblock_forward.5} parent=11 // pred_fallthru
        _
    $region12: #{resblock_forward.5} parent=5 // pred_fallthru
      _
    %p188 = scmp.lt.s32.totalorder %s11, 4
    // Predicated region
    $region29: #{resblock_forward.5} parent=5 // pred_check
      %p189 = pneg %p188
    $region30: #{resblock_forward.5} parent=5 // pred_check_branch
      %191 = sbr.rel (%p189) target = $region32
    $region31: #{resblock_forward.5} parent=5 // pred_region
      // Predicated region
      $region33: #{resblock_forward.5} parent=31 // pred_check
        %p192 = pneg %p43
      $region34: #{resblock_forward.5} parent=31 // pred_check_branch
        %194 = sbr.rel (%p192) target = $region36
      $region35: #{resblock_forward.5} parent=31 // pred_region
        %p195 = scmp.lt.s32.totalorder %s18, 1
        %s196 = scalar_select %p195, %s18, 1
        %s197 = smul.addr %s196, 30
        %s198 = smul.addr %s197, 8
        %s199 = scalar_lea.vmem %s0, %s198
      $region36: #{resblock_forward.5} parent=31 // pred_fallthru
        _
    $region32: #{resblock_forward.5} parent=5 // pred_fallthru
      _
    %p200 = scmp.le.s32.totalorder 1, %s11
    %p201 = scmp.lt.s32.totalorder %s11, 5
    %p202 = pnand %p200, %p201
    %p203 = pneg %p202
    // Predicated region
    $region37: #{resblock_forward.5} parent=5 // pred_check
      _
    $region38: #{resblock_forward.5} parent=5 // pred_check_branch
      %205 = sbr.rel (%p202) target = $region40
    $region39: #{resblock_forward.5} parent=5 // pred_region
      %s206 = ssub.s32 %s11, 1
      %p207 = scmp.lt.s32.totalorder %s20, 1
      %s208 = scalar_select %p207, %s20, 1
      %s209 = smul.addr %s208, 30
      %s210 = smul.addr %s209, 8
      %s211 = scalar_lea.vmem %s0, %s210
      %p212 = pneg %p49
      %p213 = pneg %p46
      %p214 = pneg %p70
      %p215 = pneg %p67
      %p216 = pneg %p91
      %p217 = pneg %p88
      %p218 = pneg %p112
      %p219 = pneg %p109
      %p220 = pneg %p133
      %p221 = pneg %p130
      %p222 = pneg %p161
      %p223 = pneg %p158
      %s224 = smul.u32 8, %s21
      %p225 = scmp.lt.s32.totalorder %s20, 1
      %s226 = scalar_select %p225, %s20, 1
      %p227 = scmp.lt.s32.totalorder %s224, 15
      %s228 = scalar_select %p227, %s224, 15
      %s229 = smul.addr %s228, 2
      %s230 = smul.addr %s226, 32
      %s231 = sadd.s32 %s229, %s230
      %s232 = smul.addr %s231, 8
      %s233 = scalar_lea.vmem %s5, %s232
      %p234 = scmp.lt.s32.totalorder %s20, 1
      %s235 = scalar_select %p234, %s20, 1
      %s236 = smul.addr %s235, 30
      %s237 = smul.addr %s236, 8
      %s238 = scalar_lea.vmem %s0, %s237
      %s239 = smul.u32 8, %s21
      %p240 = scmp.lt.s32.totalorder %s20, 1
      %s241 = scalar_select %p240, %s20, 1
      %p242 = scmp.lt.s32.totalorder %s239, 15
      %s243 = scalar_select %p242, %s239, 15
      %s244 = smul.addr %s243, 2
      %s245 = smul.addr %s241, 32
      %s246 = sadd.s32 %s244, %s245
      %s247 = smul.addr %s246, 8
      %s248 = scalar_lea.vmem %s5, %s247
      %s249 = smul.u32 8, %s21
      %s250 = smul.u32 %s21, 4
      %s251 = smul.u32 %s250, 24
      %s252 = scalar_lea.vmem %s238, %s251
      %v253 = vld [vmem:[%s252] sm:$0xff]
      %v254 = vld [vmem:[%s252 + $0x8] sm:$0xff]
      %v255 = vld [vmem:[%s252 + $0x10] sm:$0xf]
      %v256 = vld [vmem:[%s252 + $0x18] sm:$0xff]
      %v257 = vld [vmem:[%s252 + $0x20] sm:$0xff]
      %v258 = vld [vmem:[%s252 + $0x28] sm:$0xf]
      %v259 = vld [vmem:[%s252 + $0x30] sm:$0xff]
      %v260 = vld [vmem:[%s252 + $0x38] sm:$0xff]
      %v261 = vld [vmem:[%s252 + $0x40] sm:$0xf]
      %v262 = vld [vmem:[%s252 + $0x48] sm:$0xff]
      %v263 = vld [vmem:[%s252 + $0x50] sm:$0xff]
      %v264 = vld [vmem:[%s252 + $0x58] sm:$0xf]
      %v265 = vld [vmem:[%s252 + $0x60] sm:$0xff]
      %v266 = vld [vmem:[%s252 + $0x68] sm:$0xff]
      %v267 = vld [vmem:[%s252 + $0x70] sm:$0xf]
      %v268 = vld [vmem:[%s252 + $0x78] sm:$0xff]
      %v269 = vld [vmem:[%s252 + $0x80] sm:$0xff]
      %v270 = vld [vmem:[%s252 + $0x88] sm:$0xf]
      %v271 = vld [vmem:[%s1] sm:$0x1]
      %v273 = vlaneseq
      %v274 = vshrl.u32 %v273, 7
      %v275 = vsub.s32 0, %v274
      %v276 = vrot.slane %v271, %v275
      %v278 = vmul.f32 %v253, %v276
      %v279 = vmul.f32 %v254, %v276
      %v280 = vmul.f32 %v255, %v276
      %v281 = vmul.f32 %v256, %v276
      %v282 = vmul.f32 %v257, %v276
      %v283 = vmul.f32 %v258, %v276
      %v284 = vmul.f32 %v259, %v276
      %v285 = vmul.f32 %v260, %v276
      %v286 = vmul.f32 %v261, %v276
      %v287 = vmul.f32 %v262, %v276
      %v288 = vmul.f32 %v263, %v276
      %v289 = vmul.f32 %v264, %v276
      %v290 = vmul.f32 %v265, %v276
      %v291 = vmul.f32 %v266, %v276
      %v292 = vmul.f32 %v267, %v276
      %v293 = vmul.f32 %v268, %v276
      %v294 = vmul.f32 %v269, %v276
      %v295 = vmul.f32 %v270, %v276
      %v296 = vld [vmem:[%s2] sm:$0x1]
      %v298 = vlaneseq
      %v299 = vshrl.u32 %v298, 7
      %v300 = vsub.s32 0, %v299
      %v301 = vrot.slane %v296, %v300
      %v303 = vadd.f32 %v278, %v301
      %v304 = vadd.f32 %v279, %v301
      %v305 = vadd.f32 %v280, %v301
      %v306 = vadd.f32 %v281, %v301
      %v307 = vadd.f32 %v282, %v301
      %v308 = vadd.f32 %v283, %v301
      %v309 = vadd.f32 %v284, %v301
      %v310 = vadd.f32 %v285, %v301
      %v311 = vadd.f32 %v286, %v301
      %v312 = vadd.f32 %v287, %v301
      %v313 = vadd.f32 %v288, %v301
      %v314 = vadd.f32 %v289, %v301
      %v315 = vadd.f32 %v290, %v301
      %v316 = vadd.f32 %v291, %v301
      %v317 = vadd.f32 %v292, %v301
      %v318 = vadd.f32 %v293, %v301
      %v319 = vadd.f32 %v294, %v301
      %v320 = vadd.f32 %v295, %v301
      %v321 = vmax.f32 %v303, 0.0
      %v322 = vmax.f32 %v304, 0.0
      %v323 = vmax.f32 %v305, 0.0
      %v324 = vmax.f32 %v306, 0.0
      %v325 = vmax.f32 %v307, 0.0
      %v326 = vmax.f32 %v308, 0.0
      %v327 = vmax.f32 %v309, 0.0
      %v328 = vmax.f32 %v310, 0.0
      %v329 = vmax.f32 %v311, 0.0
      %v330 = vmax.f32 %v312, 0.0
      %v331 = vmax.f32 %v313, 0.0
      %v332 = vmax.f32 %v314, 0.0
      %v333 = vmax.f32 %v315, 0.0
      %v334 = vmax.f32 %v316, 0.0
      %v335 = vmax.f32 %v317, 0.0
      %v336 = vmax.f32 %v318, 0.0
      %v337 = vmax.f32 %v319, 0.0
      %v338 = vmax.f32 %v320, 0.0
      %v339 = vstv %s250
      %v340 = vadd.s32 %v339, 1
      %v341 = vadd.s32 %v339, 2
      %v342 = vadd.s32 %v339, 3
      %v343 = vadd.s32 %v339, 4
      %v344 = vadd.s32 %v339, 5
      %v345 = vlaneseq
      %v346 = vshrl.u32 %v345, 7
      %v347 = vadd.s32 %v346, 8
      %v348 = vadd.s32 %v346, 16
      %vm349 = vcmp.ge.s32.totalorder %v339, 1
      %vm350 = vcmp.ge.s32.totalorder %v340, 1
      %vm351 = vcmp.ge.s32.totalorder %v341, 1
      %vm352 = vcmp.ge.s32.totalorder %v342, 1
      %vm353 = vcmp.ge.s32.totalorder %v343, 1
      %vm354 = vcmp.ge.s32.totalorder %v344, 1
      %vm355 = vcmp.le.s32.totalorder %v339, 8
      %vm356 = vcmp.le.s32.totalorder %v340, 8
      %vm357 = vcmp.le.s32.totalorder %v341, 8
      %vm358 = vcmp.le.s32.totalorder %v342, 8
      %vm359 = vcmp.le.s32.totalorder %v343, 8
      %vm360 = vcmp.le.s32.totalorder %v344, 8
      %vm361 = vmand %vm349, %vm355
      %vm362 = vmand %vm350, %vm356
      %vm363 = vmand %vm351, %vm357
      %vm364 = vmand %vm352, %vm358
      %vm365 = vmand %vm353, %vm359
      %vm366 = vmand %vm354, %vm360
      %vm367 = vcmp.ge.s32.totalorder %v346, 2
      %vm368 = vcmp.ge.s32.totalorder %v347, 2
      %vm369 = vcmp.ge.s32.totalorder %v348, 2
      %vm370 = vmand %vm361, %vm367
      %vm371 = vmand %vm361, %vm368
      %vm372 = vmand %vm361, %vm369
      %vm373 = vmand %vm362, %vm367
      %vm374 = vmand %vm362, %vm368
      %vm375 = vmand %vm362, %vm369
      %vm376 = vmand %vm363, %vm367
      %vm377 = vmand %vm363, %vm368
      %vm378 = vmand %vm363, %vm369
      %vm379 = vmand %vm364, %vm367
      %vm380 = vmand %vm364, %vm368
      %vm381 = vmand %vm364, %vm369
      %vm382 = vmand %vm365, %vm367
      %vm383 = vmand %vm365, %vm368
      %vm384 = vmand %vm365, %vm369
      %vm385 = vmand %vm366, %vm367
      %vm386 = vmand %vm366, %vm368
      %vm387 = vmand %vm366, %vm369
      %vm388 = vcmp.le.s32.totalorder %v346, 17
      %vm389 = vcmp.le.s32.totalorder %v347, 17
      %vm390 = vcmp.le.s32.totalorder %v348, 17
      %vm391 = vmand %vm370, %vm388
      %vm392 = vmand %vm371, %vm389
      %vm393 = vmand %vm372, %vm390
      %vm394 = vmand %vm373, %vm388
      %vm395 = vmand %vm374, %vm389
      %vm396 = vmand %vm375, %vm390
      %vm397 = vmand %vm376, %vm388
      %vm398 = vmand %vm377, %vm389
      %vm399 = vmand %vm378, %vm390
      %vm400 = vmand %vm379, %vm388
      %vm401 = vmand %vm380, %vm389
      %vm402 = vmand %vm381, %vm390
      %vm403 = vmand %vm382, %vm388
      %vm404 = vmand %vm383, %vm389
      %vm405 = vmand %vm384, %vm390
      %vm406 = vmand %vm385, %vm388
      %vm407 = vmand %vm386, %vm389
      %vm408 = vmand %vm387, %vm390
      %v409 = vsel %vm391, %v321, 0.0
      %v410 = vsel %vm392, %v322, 0.0
      %v411 = vsel %vm393, %v323, 0.0
      %v412 = vsel %vm394, %v324, 0.0
      %v413 = vsel %vm395, %v325, 0.0
      %v414 = vsel %vm396, %v326, 0.0
      %v415 = vsel %vm397, %v327, 0.0
      %v416 = vsel %vm398, %v328, 0.0
      %v417 = vsel %vm399, %v329, 0.0
      %v418 = vsel %vm400, %v330, 0.0
      %v419 = vsel %vm401, %v331, 0.0
      %v420 = vsel %vm402, %v332, 0.0
      %v421 = vsel %vm403, %v333, 0.0
      %v422 = vsel %vm404, %v334, 0.0
      %v423 = vsel %vm405, %v335, 0.0
      %v424 = vsel %vm406, %v336, 0.0
      %v425 = vsel %vm407, %v337, 0.0
      %v426 = vsel %vm408, %v338, 0.0
      %vm442 = vcmask 1046528
      %v443 = vrot.slane %v409, 1
      %v444 = vrot.slane %v410, 1
      %v445 = vsel %vm442, %v443, %v444
      %v446 = vrot.slane %v411, 1
      %v447 = vsel %vm442, %v444, %v446
      %v448 = vrot.slane %v412, 1
      %v449 = vrot.slane %v413, 1
      %v450 = vsel %vm442, %v448, %v449
      %v451 = vrot.slane %v414, 1
      %v452 = vsel %vm442, %v449, %v451
      %v453 = vrot.slane %v415, 1
      %v454 = vrot.slane %v416, 1
      %v455 = vsel %vm442, %v453, %v454
      %v456 = vrot.slane %v417, 1
      %v457 = vsel %vm442, %v454, %v456
      %v458 = vrot.slane %v418, 1
      %v459 = vrot.slane %v419, 1
      %v460 = vsel %vm442, %v458, %v459
      %v461 = vrot.slane %v420, 1
      %v462 = vsel %vm442, %v459, %v461
      %v463 = vrot.slane %v421, 1
      %v464 = vrot.slane %v422, 1
      %v465 = vsel %vm442, %v463, %v464
      %v466 = vrot.slane %v423, 1
      %v467 = vsel %vm442, %v464, %v466
      %vm478 = vcmask 1045504
      %v479 = vrot.slane %v409, 2
      %v480 = vrot.slane %v410, 2
      %v481 = vsel %vm478, %v479, %v480
      %v482 = vrot.slane %v411, 2
      %v483 = vsel %vm478, %v480, %v482
      %v484 = vrot.slane %v412, 2
      %v485 = vrot.slane %v413, 2
      %v486 = vsel %vm478, %v484, %v485
      %v487 = vrot.slane %v414, 2
      %v488 = vsel %vm478, %v485, %v487
      %v489 = vrot.slane %v415, 2
      %v490 = vrot.slane %v416, 2
      %v491 = vsel %vm478, %v489, %v490
      %v492 = vrot.slane %v417, 2
      %v493 = vsel %vm478, %v490, %v492
      %v494 = vrot.slane %v418, 2
      %v495 = vrot.slane %v419, 2
      %v496 = vsel %vm478, %v494, %v495
      %v497 = vrot.slane %v420, 2
      %v498 = vsel %vm478, %v495, %v497
      %v499 = vrot.slane %v421, 2
      %v500 = vrot.slane %v422, 2
      %v501 = vsel %vm478, %v499, %v500
      %v502 = vrot.slane %v423, 2
      %v503 = vsel %vm478, %v500, %v502
      %vm514 = vcmask 1044480
      %v515 = vrot.slane %v409, 3
      %v516 = vrot.slane %v410, 3
      %v517 = vsel %vm514, %v515, %v516
      %v518 = vrot.slane %v411, 3
      %v519 = vsel %vm514, %v516, %v518
      %v520 = vrot.slane %v412, 3
      %v521 = vrot.slane %v413, 3
      %v522 = vsel %vm514, %v520, %v521
      %v523 = vrot.slane %v414, 3
      %v524 = vsel %vm514, %v521, %v523
      %v525 = vrot.slane %v415, 3
      %v526 = vrot.slane %v416, 3
      %v527 = vsel %vm514, %v525, %v526
      %v528 = vrot.slane %v417, 3
      %v529 = vsel %vm514, %v526, %v528
      %v530 = vrot.slane %v418, 3
      %v531 = vrot.slane %v419, 3
      %v532 = vsel %vm514, %v530, %v531
      %v533 = vrot.slane %v420, 3
      %v534 = vsel %vm514, %v531, %v533
      %v535 = vrot.slane %v421, 3
      %v536 = vrot.slane %v422, 3
      %v537 = vsel %vm514, %v535, %v536
      %v538 = vrot.slane %v423, 3
      %v539 = vsel %vm514, %v536, %v538
      %v553 = vrot.slane %v424, 1
      %v554 = vrot.slane %v425, 1
      %v555 = vsel %vm442, %v553, %v554
      %v556 = vrot.slane %v426, 1
      %v557 = vsel %vm442, %v554, %v556
      %v560 = vrot.slane %v424, 2
      %v561 = vrot.slane %v425, 2
      %v562 = vsel %vm478, %v560, %v561
      %v563 = vrot.slane %v426, 2
      %v564 = vsel %vm478, %v561, %v563
      %v567 = vrot.slane %v424, 3
      %v568 = vrot.slane %v425, 3
      %v569 = vsel %vm514, %v567, %v568
      %v570 = vrot.slane %v426, 3
      %v571 = vsel %vm514, %v568, %v570
      %v574 = vld [vmem:[%s3] sm:$0xff]
      %v575 = vld [vmem:[%s3 + $0x8] sm:$0xff]
      %v576 = vld [vmem:[%s3 + $0x10] sm:$0xff]
      %v577 = vld [vmem:[%s3 + $0x18] sm:$0xff]
      %v578 = vld [vmem:[%s3 + $0x20] sm:$0xff]
      %v579 = vld [vmem:[%s3 + $0x28] sm:$0xff]
      %v580 = vld [vmem:[%s3 + $0x30] sm:$0xff]
      %v581 = vld [vmem:[%s3 + $0x38] sm:$0xff]
      %v582 = vld [vmem:[%s3 + $0x40] sm:$0xff]
      %v583 = vld [vmem:[%s3 + $0x48] sm:$0xff]
      %v584 = vld [vmem:[%s3 + $0x50] sm:$0xff]
      %v585 = vld [vmem:[%s3 + $0x58] sm:$0xff]
      %v586 = vld [vmem:[%s3 + $0x60] sm:$0xff]
      %v587 = vld [vmem:[%s3 + $0x68] sm:$0xff]
      %v588 = vld [vmem:[%s3 + $0x70] sm:$0xff]
      %v589 = vld [vmem:[%s3 + $0x78] sm:$0xff]
      %v590 = vld [vmem:[%s3 + $0x80] sm:$0xff]
      %v591 = vld [vmem:[%s3 + $0x88] sm:$0xff]
      %v592 = vld [vmem:[%s3 + $0x90] sm:$0xff]
      %v593 = vld [vmem:[%s3 + $0x98] sm:$0xff]
      %v594 = vld [vmem:[%s3 + $0xa0] sm:$0xff]
      %v595 = vld [vmem:[%s3 + $0xa8] sm:$0xff]
      %v596 = vld [vmem:[%s3 + $0xb0] sm:$0xff]
      %v597 = vld [vmem:[%s3 + $0xb8] sm:$0xff]
      %v598 = vld [vmem:[%s3 + $0xc0] sm:$0xff]
      %v599 = vld [vmem:[%s3 + $0xc8] sm:$0xff]
      %v600 = vld [vmem:[%s3 + $0xd0] sm:$0xff]
      %v601 = vld [vmem:[%s3 + $0xd8] sm:$0xff]
      %v602 = vld [vmem:[%s3 + $0xe0] sm:$0xff]
      %v603 = vld [vmem:[%s3 + $0xe8] sm:$0xff]
      %v604 = vld [vmem:[%s3 + $0xf0] sm:$0xff]
      %v605 = vld [vmem:[%s3 + $0xf8] sm:$0xff]
      %v606 = vld [vmem:[%s3 + $0x100] sm:$0xff]
      %v607 = vld [vmem:[%s3 + $0x108] sm:$0xff]
      %v608 = vld [vmem:[%s3 + $0x110] sm:$0xff]
      %v609 = vld [vmem:[%s3 + $0x118] sm:$0xff]
      %v610 = vld [vmem:[%s3 + $0x120] sm:$0xff]
      %v611 = vld [vmem:[%s3 + $0x128] sm:$0xff]
      %v612 = vld [vmem:[%s3 + $0x130] sm:$0xff]
      %v613 = vld [vmem:[%s3 + $0x138] sm:$0xff]
      %v614 = vld [vmem:[%s3 + $0x140] sm:$0xff]
      %v615 = vld [vmem:[%s3 + $0x148] sm:$0xff]
      %v616 = vld [vmem:[%s3 + $0x150] sm:$0xff]
      %v617 = vld [vmem:[%s3 + $0x158] sm:$0xff]
      %v618 = vld [vmem:[%s3 + $0x160] sm:$0xff]
      %v619 = vld [vmem:[%s3 + $0x168] sm:$0xff]
      %v620 = vld [vmem:[%s3 + $0x170] sm:$0xff]
      %v621 = vld [vmem:[%s3 + $0x178] sm:$0xff]
      %v622 = vld [vmem:[%s3 + $0x180] sm:$0xff]
      %v623 = vld [vmem:[%s3 + $0x188] sm:$0xff]
      %v624 = vld [vmem:[%s3 + $0x190] sm:$0xff]
      %v625 = vld [vmem:[%s3 + $0x198] sm:$0xff]
      %v626 = vld [vmem:[%s3 + $0x1a0] sm:$0xff]
      %v627 = vld [vmem:[%s3 + $0x1a8] sm:$0xff]
      %v628 = vld [vmem:[%s3 + $0x1b0] sm:$0xff]
      %v629 = vld [vmem:[%s3 + $0x1b8] sm:$0xff]
      %v630 = vld [vmem:[%s3 + $0x1c0] sm:$0xff]
      %v631 = vld [vmem:[%s3 + $0x1c8] sm:$0xff]
      %v632 = vld [vmem:[%s3 + $0x1d0] sm:$0xff]
      %v633 = vld [vmem:[%s3 + $0x1d8] sm:$0xff]
      %v634 = vld [vmem:[%s3 + $0x1e0] sm:$0xff]
      %v635 = vld [vmem:[%s3 + $0x1e8] sm:$0xff]
      %v636 = vld [vmem:[%s3 + $0x1f0] sm:$0xff]
      %v637 = vld [vmem:[%s3 + $0x1f8] sm:$0xff]
      %v638 = vld [vmem:[%s3 + $0x200] sm:$0xff]
      %v639 = vld [vmem:[%s3 + $0x208] sm:$0xff]
      %v640 = vld [vmem:[%s3 + $0x210] sm:$0xff]
      %v641 = vld [vmem:[%s3 + $0x218] sm:$0xff]
      %v642 = vld [vmem:[%s3 + $0x220] sm:$0xff]
      %v643 = vld [vmem:[%s3 + $0x228] sm:$0xff]
      %v644 = vld [vmem:[%s3 + $0x230] sm:$0xff]
      %v645 = vld [vmem:[%s3 + $0x238] sm:$0xff]
      %v646 = vld [vmem:[%s3 + $0x240] sm:$0xff]
      %v647 = vld [vmem:[%s3 + $0x248] sm:$0xff]
      %v648 = vld [vmem:[%s3 + $0x250] sm:$0xff]
      %v649 = vld [vmem:[%s3 + $0x258] sm:$0xff]
      %v650 = vld [vmem:[%s3 + $0x260] sm:$0xff]
      %v651 = vld [vmem:[%s3 + $0x268] sm:$0xff]
      %v652 = vld [vmem:[%s3 + $0x270] sm:$0xff]
      %v653 = vld [vmem:[%s3 + $0x278] sm:$0xff]
      %v654 = vld [vmem:[%s3 + $0x280] sm:$0xff]
      %v655 = vld [vmem:[%s3 + $0x288] sm:$0xff]
      %v656 = vld [vmem:[%s3 + $0x290] sm:$0xff]
      %v657 = vld [vmem:[%s3 + $0x298] sm:$0xff]
      %v658 = vld [vmem:[%s3 + $0x2a0] sm:$0xff]
      %v659 = vld [vmem:[%s3 + $0x2a8] sm:$0xff]
      %v660 = vld [vmem:[%s3 + $0x2b0] sm:$0xff]
      %v661 = vld [vmem:[%s3 + $0x2b8] sm:$0xff]
      %v662 = vld [vmem:[%s3 + $0x2c0] sm:$0xff]
      %v663 = vld [vmem:[%s3 + $0x2c8] sm:$0xff]
      %v664 = vld [vmem:[%s3 + $0x2d0] sm:$0xff]
      %v665 = vld [vmem:[%s3 + $0x2d8] sm:$0xff]
      %v666 = vld [vmem:[%s3 + $0x2e0] sm:$0xff]
      %v667 = vld [vmem:[%s3 + $0x2e8] sm:$0xff]
      %v668 = vld [vmem:[%s3 + $0x2f0] sm:$0xff]
      %v669 = vld [vmem:[%s3 + $0x2f8] sm:$0xff]
      %v670 = vld [vmem:[%s3 + $0x300] sm:$0xff]
      %v671 = vld [vmem:[%s3 + $0x308] sm:$0xff]
      %v672 = vld [vmem:[%s3 + $0x310] sm:$0xff]
      %v673 = vld [vmem:[%s3 + $0x318] sm:$0xff]
      %v674 = vld [vmem:[%s3 + $0x320] sm:$0xff]
      %v675 = vld [vmem:[%s3 + $0x328] sm:$0xff]
      %v676 = vld [vmem:[%s3 + $0x330] sm:$0xff]
      %v677 = vld [vmem:[%s3 + $0x338] sm:$0xff]
      %v678 = vld [vmem:[%s3 + $0x340] sm:$0xff]
      %v679 = vld [vmem:[%s3 + $0x348] sm:$0xff]
      %v680 = vld [vmem:[%s3 + $0x350] sm:$0xff]
      %v681 = vld [vmem:[%s3 + $0x358] sm:$0xff]
      %v682 = vld [vmem:[%s3 + $0x360] sm:$0xff]
      %v683 = vld [vmem:[%s3 + $0x368] sm:$0xff]
      %v684 = vld [vmem:[%s3 + $0x370] sm:$0xff]
      %v685 = vld [vmem:[%s3 + $0x378] sm:$0xff]
      %v686 = vld [vmem:[%s3 + $0x380] sm:$0xff]
      %v687 = vld [vmem:[%s3 + $0x388] sm:$0xff]
      %v688 = vld [vmem:[%s3 + $0x390] sm:$0xff]
      %v689 = vld [vmem:[%s3 + $0x398] sm:$0xff]
      %v690 = vld [vmem:[%s3 + $0x3a0] sm:$0xff]
      %v691 = vld [vmem:[%s3 + $0x3a8] sm:$0xff]
      %v692 = vld [vmem:[%s3 + $0x3b0] sm:$0xff]
      %v693 = vld [vmem:[%s3 + $0x3b8] sm:$0xff]
      %v694 = vld [vmem:[%s3 + $0x3c0] sm:$0xff]
      %v695 = vld [vmem:[%s3 + $0x3c8] sm:$0xff]
      %v696 = vld [vmem:[%s3 + $0x3d0] sm:$0xff]
      %v697 = vld [vmem:[%s3 + $0x3d8] sm:$0xff]
      %v698 = vld [vmem:[%s3 + $0x3e0] sm:$0xff]
      %v699 = vld [vmem:[%s3 + $0x3e8] sm:$0xff]
      %v700 = vld [vmem:[%s3 + $0x3f0] sm:$0xff]
      %v701 = vld [vmem:[%s3 + $0x3f8] sm:$0xff]
      %v702 = vld [vmem:[%s3 + $0x400] sm:$0xff]
      %v703 = vld [vmem:[%s3 + $0x408] sm:$0xff]
      %v704 = vld [vmem:[%s3 + $0x410] sm:$0xff]
      %v705 = vld [vmem:[%s3 + $0x418] sm:$0xff]
      %v706 = vld [vmem:[%s3 + $0x420] sm:$0xff]
      %v707 = vld [vmem:[%s3 + $0x428] sm:$0xff]
      %v708 = vld [vmem:[%s3 + $0x430] sm:$0xff]
      %v709 = vld [vmem:[%s3 + $0x438] sm:$0xff]
      %v710 = vld [vmem:[%s3 + $0x440] sm:$0xff]
      %v711 = vld [vmem:[%s3 + $0x448] sm:$0xff]
      %v712 = vld [vmem:[%s3 + $0x450] sm:$0xff]
      %v713 = vld [vmem:[%s3 + $0x458] sm:$0xff]
      %v714 = vld [vmem:[%s3 + $0x460] sm:$0xff]
      %v715 = vld [vmem:[%s3 + $0x468] sm:$0xff]
      %v716 = vld [vmem:[%s3 + $0x470] sm:$0xff]
      %v717 = vld [vmem:[%s3 + $0x478] sm:$0xff]
      %v718 = vld [vmem:[%s4] sm:$0x1]
      %v720 = vlaneseq
      %v721 = vshrl.u32 %v720, 7
      %v722 = vsub.s32 0, %v721
      %v723 = vrot.slane %v718, %v722
      %725 = vmatprep.subr.mxu0 0.0
      %726 = vmatpush1.msra.mxu0 %v589
      %727 = vmatprep.subr.mxu0 0.0
      %728 = vmatpush1.msra.mxu0 %v588
      %729 = vmatprep.subr.mxu0 0.0
      %730 = vmatpush1.msra.mxu0 %v587
      %731 = vmatprep.subr.mxu0 0.0
      %732 = vmatpush1.msra.mxu0 %v586
      %733 = vmatprep.subr.mxu0 0.0
      %734 = vmatpush1.msra.mxu0 %v585
      %735 = vmatprep.subr.mxu0 0.0
      %736 = vmatpush1.msra.mxu0 %v584
      %737 = vmatprep.subr.mxu0 0.0
      %738 = vmatpush1.msra.mxu0 %v583
      %739 = vmatprep.subr.mxu0 0.0
      %740 = vmatpush1.msra.mxu0 %v582
      %741 = vmatprep.subr.mxu0 0.0
      %742 = vmatpush1.msra.mxu0 %v581
      %743 = vmatprep.subr.mxu0 0.0
      %744 = vmatpush1.msra.mxu0 %v580
      %745 = vmatprep.subr.mxu0 0.0
      %746 = vmatpush1.msra.mxu0 %v579
      %747 = vmatprep.subr.mxu0 0.0
      %748 = vmatpush1.msra.mxu0 %v578
      %749 = vmatprep.subr.mxu0 0.0
      %750 = vmatpush1.msra.mxu0 %v577
      %751 = vmatprep.subr.mxu0 0.0
      %752 = vmatpush1.msra.mxu0 %v576
      %753 = vmatprep.subr.mxu0 0.0
      %754 = vmatpush1.msra.mxu0 %v575
      %755 = vmatprep.subr.mxu0 0.0
      %756 = vmatpush1.msra.mxu0 %v574
      %757 = vmatprep.subr.mxu0 0.0
      %758 = vmatpush2.msra.mxu0 %v605
      %759 = vmatprep.subr.mxu0 0.0
      %760 = vmatpush2.msra.mxu0 %v604
      %761 = vmatprep.subr.mxu0 0.0
      %762 = vmatpush2.msra.mxu0 %v603
      %763 = vmatprep.subr.mxu0 0.0
      %764 = vmatpush2.msra.mxu0 %v602
      %765 = vmatprep.subr.mxu0 0.0
      %766 = vmatpush2.msra.mxu0 %v601
      %767 = vmatprep.subr.mxu0 0.0
      %768 = vmatpush2.msra.mxu0 %v600
      %769 = vmatprep.subr.mxu0 0.0
      %770 = vmatpush2.msra.mxu0 %v599
      %771 = vmatprep.subr.mxu0 0.0
      %772 = vmatpush2.msra.mxu0 %v598
      %773 = vmatprep.subr.mxu0 0.0
      %774 = vmatpush2.msra.mxu0 %v597
      %775 = vmatprep.subr.mxu0 0.0
      %776 = vmatpush2.msra.mxu0 %v596
      %777 = vmatprep.subr.mxu0 0.0
      %778 = vmatpush2.msra.mxu0 %v595
      %779 = vmatprep.subr.mxu0 0.0
      %780 = vmatpush2.msra.mxu0 %v594
      %781 = vmatprep.subr.mxu0 0.0
      %782 = vmatpush2.msra.mxu0 %v593
      %783 = vmatprep.subr.mxu0 0.0
      %784 = vmatpush2.msra.mxu0 %v592
      %785 = vmatprep.subr.mxu0 0.0
      %786 = vmatpush2.msra.mxu0 %v591
      %787 = vmatprep.subr.mxu0 0.0
      %788 = vmatpush2.msra.mxu0 %v590
      %789 = vmatprep.mubr.f32.mxu0 %v481
      %790 = vmatmul.mubr.f32.gmra.mxu0 %v445
      %v791 = vpop.f32.mrf.mxu0
      %v792 = vadd.f32 %v723, %v791
      %v793 = vpop.f32.mrf.mxu0
      %794 = vmatprep.mubr.f32.mxu0 %v483
      %795 = vmatmul.mubr.f32.gmra.mxu0 %v447
      %v796 = vpop.f32.mrf.mxu0
      %v797 = vadd.f32 %v723, %v796
      %v798 = vpop.f32.mrf.mxu0
      %799 = vmatprep.mubr.f32.mxu0 %v486
      %800 = vmatmul.mubr.f32.gmra.mxu0 %v450
      %v801 = vpop.f32.mrf.mxu0
      %v802 = vadd.f32 %v723, %v801
      %v803 = vpop.f32.mrf.mxu0
      %804 = vmatprep.mubr.f32.mxu0 %v488
      %805 = vmatmul.mubr.f32.gmra.mxu0 %v452
      %v806 = vpop.f32.mrf.mxu0
      %v807 = vadd.f32 %v723, %v806
      %v808 = vpop.f32.mrf.mxu0
      %809 = vmatprep.mubr.f32.mxu0 %v486
      %810 = vmatmul.mubr.f32.gmra.mxu0 %v450
      %v811 = vpop.f32.mrf.mxu0
      %v812 = vadd.f32 %v723, %v811
      %v813 = vpop.f32.mrf.mxu0
      %814 = vmatprep.mubr.f32.mxu0 %v488
      %815 = vmatmul.mubr.f32.gmra.mxu0 %v452
      %v816 = vpop.f32.mrf.mxu0
      %v817 = vadd.f32 %v723, %v816
      %v818 = vpop.f32.mrf.mxu0
      %819 = vmatprep.mubr.f32.mxu0 %v491
      %820 = vmatmul.mubr.f32.gmra.mxu0 %v455
      %v821 = vpop.f32.mrf.mxu0
      %v822 = vadd.f32 %v723, %v821
      %v823 = vpop.f32.mrf.mxu0
      %824 = vmatprep.mubr.f32.mxu0 %v493
      %825 = vmatmul.mubr.f32.gmra.mxu0 %v457
      %v826 = vpop.f32.mrf.mxu0
      %v827 = vadd.f32 %v723, %v826
      %v828 = vpop.f32.mrf.mxu0
      %829 = vmatprep.mubr.f32.mxu0 %v491
      %830 = vmatmul.mubr.f32.gmra.mxu0 %v455
      %v831 = vpop.f32.mrf.mxu0
      %v832 = vadd.f32 %v723, %v831
      %v833 = vpop.f32.mrf.mxu0
      %834 = vmatprep.mubr.f32.mxu0 %v493
      %835 = vmatmul.mubr.f32.gmra.mxu0 %v457
      %v836 = vpop.f32.mrf.mxu0
      %v837 = vadd.f32 %v723, %v836
      %v838 = vpop.f32.mrf.mxu0
      %839 = vmatprep.mubr.f32.mxu0 %v496
      %840 = vmatmul.mubr.f32.gmra.mxu0 %v460
      %v841 = vpop.f32.mrf.mxu0
      %v842 = vadd.f32 %v723, %v841
      %v843 = vpop.f32.mrf.mxu0
      %844 = vmatprep.mubr.f32.mxu0 %v498
      %845 = vmatmul.mubr.f32.gmra.mxu0 %v462
      %v846 = vpop.f32.mrf.mxu0
      %v847 = vadd.f32 %v723, %v846
      %v848 = vpop.f32.mrf.mxu0
      %849 = vmatprep.mubr.f32.mxu0 %v496
      %850 = vmatmul.mubr.f32.gmra.mxu0 %v460
      %v851 = vpop.f32.mrf.mxu0
      %v852 = vadd.f32 %v723, %v851
      %v853 = vpop.f32.mrf.mxu0
      %854 = vmatprep.mubr.f32.mxu0 %v498
      %855 = vmatmul.mubr.f32.gmra.mxu0 %v462
      %v856 = vpop.f32.mrf.mxu0
      %v857 = vadd.f32 %v723, %v856
      %v858 = vpop.f32.mrf.mxu0
      %859 = vmatprep.mubr.f32.mxu0 %v501
      %860 = vmatmul.mubr.f32.gmra.mxu0 %v465
      %v861 = vpop.f32.mrf.mxu0
      %v862 = vadd.f32 %v723, %v861
      %v863 = vpop.f32.mrf.mxu0
      %864 = vmatprep.mubr.f32.mxu0 %v503
      %865 = vmatmul.mubr.f32.gmra.mxu0 %v467
      %v866 = vpop.f32.mrf.mxu0
      %v867 = vadd.f32 %v723, %v866
      %v868 = vpop.f32.mrf.mxu0
      %869 = vdwg.mxu0
      %870 = vmatprep.subr.mxu0 0.0
      %871 = vmatpush1.msra.mxu0 %v621
      %872 = vmatprep.subr.mxu0 0.0
      %873 = vmatpush1.msra.mxu0 %v620
      %874 = vmatprep.subr.mxu0 0.0
      %875 = vmatpush1.msra.mxu0 %v619
      %876 = vmatprep.subr.mxu0 0.0
      %877 = vmatpush1.msra.mxu0 %v618
      %878 = vmatprep.subr.mxu0 0.0
      %879 = vmatpush1.msra.mxu0 %v617
      %880 = vmatprep.subr.mxu0 0.0
      %881 = vmatpush1.msra.mxu0 %v616
      %882 = vmatprep.subr.mxu0 0.0
      %883 = vmatpush1.msra.mxu0 %v615
      %884 = vmatprep.subr.mxu0 0.0
      %885 = vmatpush1.msra.mxu0 %v614
      %886 = vmatprep.subr.mxu0 0.0
      %887 = vmatpush1.msra.mxu0 %v613
      %888 = vmatprep.subr.mxu0 0.0
      %889 = vmatpush1.msra.mxu0 %v612
      %890 = vmatprep.subr.mxu0 0.0
      %891 = vmatpush1.msra.mxu0 %v611
      %892 = vmatprep.subr.mxu0 0.0
      %893 = vmatpush1.msra.mxu0 %v610
      %894 = vmatprep.subr.mxu0 0.0
      %895 = vmatpush1.msra.mxu0 %v609
      %896 = vmatprep.subr.mxu0 0.0
      %897 = vmatpush1.msra.mxu0 %v608
      %898 = vmatprep.subr.mxu0 0.0
      %899 = vmatpush1.msra.mxu0 %v607
      %900 = vmatprep.subr.mxu0 0.0
      %901 = vmatpush1.msra.mxu0 %v606
      %902 = vmatprep.subr.mxu0 0.0
      %903 = vmatpush2.msra.mxu0 %v637
      %904 = vmatprep.subr.mxu0 0.0
      %905 = vmatpush2.msra.mxu0 %v636
      %906 = vmatprep.subr.mxu0 0.0
      %907 = vmatpush2.msra.mxu0 %v635
      %908 = vmatprep.subr.mxu0 0.0
      %909 = vmatpush2.msra.mxu0 %v634
      %910 = vmatprep.subr.mxu0 0.0
      %911 = vmatpush2.msra.mxu0 %v633
      %912 = vmatprep.subr.mxu0 0.0
      %913 = vmatpush2.msra.mxu0 %v632
      %914 = vmatprep.subr.mxu0 0.0
      %915 = vmatpush2.msra.mxu0 %v631
      %916 = vmatprep.subr.mxu0 0.0
      %917 = vmatpush2.msra.mxu0 %v630
      %918 = vmatprep.subr.mxu0 0.0
      %919 = vmatpush2.msra.mxu0 %v629
      %920 = vmatprep.subr.mxu0 0.0
      %921 = vmatpush2.msra.mxu0 %v628
      %922 = vmatprep.subr.mxu0 0.0
      %923 = vmatpush2.msra.mxu0 %v627
      %924 = vmatprep.subr.mxu0 0.0
      %925 = vmatpush2.msra.mxu0 %v626
      %926 = vmatprep.subr.mxu0 0.0
      %927 = vmatpush2.msra.mxu0 %v625
      %928 = vmatprep.subr.mxu0 0.0
      %929 = vmatpush2.msra.mxu0 %v624
      %930 = vmatprep.subr.mxu0 0.0
      %931 = vmatpush2.msra.mxu0 %v623
      %932 = vmatprep.subr.mxu0 0.0
      %933 = vmatpush2.msra.mxu0 %v622
      %934 = vmatprep.mubr.f32.mxu0 %v450
      %935 = vmatmul.mubr.f32.gmra.mxu0 %v517
      %v936 = vpop.f32.mrf.mxu0
      %v937 = vadd.f32 %v792, %v936
      %v938 = vpop.f32.mrf.mxu0
      %939 = vmatprep.mubr.f32.mxu0 %v452
      %940 = vmatmul.mubr.f32.gmra.mxu0 %v519
      %v941 = vpop.f32.mrf.mxu0
      %v942 = vadd.f32 %v797, %v941
      %v943 = vpop.f32.mrf.mxu0
      %944 = vmatprep.mubr.f32.mxu0 %v450
      %945 = vmatmul.mubr.f32.gmra.mxu0 %v522
      %v946 = vpop.f32.mrf.mxu0
      %v947 = vadd.f32 %v802, %v946
      %v948 = vpop.f32.mrf.mxu0
      %949 = vmatprep.mubr.f32.mxu0 %v452
      %950 = vmatmul.mubr.f32.gmra.mxu0 %v524
      %v951 = vpop.f32.mrf.mxu0
      %v952 = vadd.f32 %v807, %v951
      %v953 = vpop.f32.mrf.mxu0
      %954 = vmatprep.mubr.f32.mxu0 %v455
      %955 = vmatmul.mubr.f32.gmra.mxu0 %v522
      %v956 = vpop.f32.mrf.mxu0
      %v957 = vadd.f32 %v812, %v956
      %v958 = vpop.f32.mrf.mxu0
      %959 = vmatprep.mubr.f32.mxu0 %v457
      %960 = vmatmul.mubr.f32.gmra.mxu0 %v524
      %v961 = vpop.f32.mrf.mxu0
      %v962 = vadd.f32 %v817, %v961
      %v963 = vpop.f32.mrf.mxu0
      %964 = vmatprep.mubr.f32.mxu0 %v455
      %965 = vmatmul.mubr.f32.gmra.mxu0 %v527
      %v966 = vpop.f32.mrf.mxu0
      %v967 = vadd.f32 %v822, %v966
      %v968 = vpop.f32.mrf.mxu0
      %969 = vmatprep.mubr.f32.mxu0 %v457
      %970 = vmatmul.mubr.f32.gmra.mxu0 %v529
      %v971 = vpop.f32.mrf.mxu0
      %v972 = vadd.f32 %v827, %v971
      %v973 = vpop.f32.mrf.mxu0
      %974 = vmatprep.mubr.f32.mxu0 %v460
      %975 = vmatmul.mubr.f32.gmra.mxu0 %v527
      %v976 = vpop.f32.mrf.mxu0
      %v977 = vadd.f32 %v832, %v976
      %v978 = vpop.f32.mrf.mxu0
      %979 = vmatprep.mubr.f32.mxu0 %v462
      %980 = vmatmul.mubr.f32.gmra.mxu0 %v529
      %v981 = vpop.f32.mrf.mxu0
      %v982 = vadd.f32 %v837, %v981
      %v983 = vpop.f32.mrf.mxu0
      %984 = vmatprep.mubr.f32.mxu0 %v460
      %985 = vmatmul.mubr.f32.gmra.mxu0 %v532
      %v986 = vpop.f32.mrf.mxu0
      %v987 = vadd.f32 %v842, %v986
      %v988 = vpop.f32.mrf.mxu0
      %989 = vmatprep.mubr.f32.mxu0 %v462
      %990 = vmatmul.mubr.f32.gmra.mxu0 %v534
      %v991 = vpop.f32.mrf.mxu0
      %v992 = vadd.f32 %v847, %v991
      %v993 = vpop.f32.mrf.mxu0
      %994 = vmatprep.mubr.f32.mxu0 %v465
      %995 = vmatmul.mubr.f32.gmra.mxu0 %v532
      %v996 = vpop.f32.mrf.mxu0
      %v997 = vadd.f32 %v852, %v996
      %v998 = vpop.f32.mrf.mxu0
      %999 = vmatprep.mubr.f32.mxu0 %v467
      %1000 = vmatmul.mubr.f32.gmra.mxu0 %v534
      %v1001 = vpop.f32.mrf.mxu0
      %v1002 = vadd.f32 %v857, %v1001
      %v1003 = vpop.f32.mrf.mxu0
      %1004 = vmatprep.mubr.f32.mxu0 %v465
      %1005 = vmatmul.mubr.f32.gmra.mxu0 %v537
      %v1006 = vpop.f32.mrf.mxu0
      %v1007 = vadd.f32 %v862, %v1006
      %v1008 = vpop.f32.mrf.mxu0
      %1009 = vmatprep.mubr.f32.mxu0 %v467
      %1010 = vmatmul.mubr.f32.gmra.mxu0 %v539
      %v1011 = vpop.f32.mrf.mxu0
      %v1012 = vadd.f32 %v867, %v1011
      %v1013 = vpop.f32.mrf.mxu0
      %1014 = vdwg.mxu0
      %1015 = vmatprep.subr.mxu0 0.0
      %1016 = vmatpush1.msra.mxu0 %v653
      %1017 = vmatprep.subr.mxu0 0.0
      %1018 = vmatpush1.msra.mxu0 %v652
      %1019 = vmatprep.subr.mxu0 0.0
      %1020 = vmatpush1.msra.mxu0 %v651
      %1021 = vmatprep.subr.mxu0 0.0
      %1022 = vmatpush1.msra.mxu0 %v650
      %1023 = vmatprep.subr.mxu0 0.0
      %1024 = vmatpush1.msra.mxu0 %v649
      %1025 = vmatprep.subr.mxu0 0.0
      %1026 = vmatpush1.msra.mxu0 %v648
      %1027 = vmatprep.subr.mxu0 0.0
      %1028 = vmatpush1.msra.mxu0 %v647
      %1029 = vmatprep.subr.mxu0 0.0
      %1030 = vmatpush1.msra.mxu0 %v646
      %1031 = vmatprep.subr.mxu0 0.0
      %1032 = vmatpush1.msra.mxu0 %v645
      %1033 = vmatprep.subr.mxu0 0.0
      %1034 = vmatpush1.msra.mxu0 %v644
      %1035 = vmatprep.subr.mxu0 0.0
      %1036 = vmatpush1.msra.mxu0 %v643
      %1037 = vmatprep.subr.mxu0 0.0
      %1038 = vmatpush1.msra.mxu0 %v642
      %1039 = vmatprep.subr.mxu0 0.0
      %1040 = vmatpush1.msra.mxu0 %v641
      %1041 = vmatprep.subr.mxu0 0.0
      %1042 = vmatpush1.msra.mxu0 %v640
      %1043 = vmatprep.subr.mxu0 0.0
      %1044 = vmatpush1.msra.mxu0 %v639
      %1045 = vmatprep.subr.mxu0 0.0
      %1046 = vmatpush1.msra.mxu0 %v638
      %1047 = vmatprep.subr.mxu0 0.0
      %1048 = vmatpush2.msra.mxu0 %v669
      %1049 = vmatprep.subr.mxu0 0.0
      %1050 = vmatpush2.msra.mxu0 %v668
      %1051 = vmatprep.subr.mxu0 0.0
      %1052 = vmatpush2.msra.mxu0 %v667
      %1053 = vmatprep.subr.mxu0 0.0
      %1054 = vmatpush2.msra.mxu0 %v666
      %1055 = vmatprep.subr.mxu0 0.0
      %1056 = vmatpush2.msra.mxu0 %v665
      %1057 = vmatprep.subr.mxu0 0.0
      %1058 = vmatpush2.msra.mxu0 %v664
      %1059 = vmatprep.subr.mxu0 0.0
      %1060 = vmatpush2.msra.mxu0 %v663
      %1061 = vmatprep.subr.mxu0 0.0
      %1062 = vmatpush2.msra.mxu0 %v662
      %1063 = vmatprep.subr.mxu0 0.0
      %1064 = vmatpush2.msra.mxu0 %v661
      %1065 = vmatprep.subr.mxu0 0.0
      %1066 = vmatpush2.msra.mxu0 %v660
      %1067 = vmatprep.subr.mxu0 0.0
      %1068 = vmatpush2.msra.mxu0 %v659
      %1069 = vmatprep.subr.mxu0 0.0
      %1070 = vmatpush2.msra.mxu0 %v658
      %1071 = vmatprep.subr.mxu0 0.0
      %1072 = vmatpush2.msra.mxu0 %v657
      %1073 = vmatprep.subr.mxu0 0.0
      %1074 = vmatpush2.msra.mxu0 %v656
      %1075 = vmatprep.subr.mxu0 0.0
      %1076 = vmatpush2.msra.mxu0 %v655
      %1077 = vmatprep.subr.mxu0 0.0
      %1078 = vmatpush2.msra.mxu0 %v654
      %1079 = vmatprep.mubr.f32.mxu0 %v522
      %1080 = vmatmul.mubr.f32.gmra.mxu0 %v486
      %v1081 = vpop.f32.mrf.mxu0
      %v1082 = vadd.f32 %v937, %v1081
      %v1083 = vpop.f32.mrf.mxu0
      %1084 = vmatprep.mubr.f32.mxu0 %v524
      %1085 = vmatmul.mubr.f32.gmra.mxu0 %v488
      %v1086 = vpop.f32.mrf.mxu0
      %v1087 = vadd.f32 %v942, %v1086
      %v1088 = vpop.f32.mrf.mxu0
      %1089 = vmatprep.mubr.f32.mxu0 %v522
      %1090 = vmatmul.mubr.f32.gmra.mxu0 %v486
      %v1091 = vpop.f32.mrf.mxu0
      %v1092 = vadd.f32 %v947, %v1091
      %v1093 = vpop.f32.mrf.mxu0
      %1094 = vmatprep.mubr.f32.mxu0 %v524
      %1095 = vmatmul.mubr.f32.gmra.mxu0 %v488
      %v1096 = vpop.f32.mrf.mxu0
      %v1097 = vadd.f32 %v952, %v1096
      %v1098 = vpop.f32.mrf.mxu0
      %1099 = vmatprep.mubr.f32.mxu0 %v527
      %1100 = vmatmul.mubr.f32.gmra.mxu0 %v491
      %v1101 = vpop.f32.mrf.mxu0
      %v1102 = vadd.f32 %v957, %v1101
      %v1103 = vpop.f32.mrf.mxu0
      %1104 = vmatprep.mubr.f32.mxu0 %v529
      %1105 = vmatmul.mubr.f32.gmra.mxu0 %v493
      %v1106 = vpop.f32.mrf.mxu0
      %v1107 = vadd.f32 %v962, %v1106
      %v1108 = vpop.f32.mrf.mxu0
      %1109 = vmatprep.mubr.f32.mxu0 %v527
      %1110 = vmatmul.mubr.f32.gmra.mxu0 %v491
      %v1111 = vpop.f32.mrf.mxu0
      %v1112 = vadd.f32 %v967, %v1111
      %v1113 = vpop.f32.mrf.mxu0
      %1114 = vmatprep.mubr.f32.mxu0 %v529
      %1115 = vmatmul.mubr.f32.gmra.mxu0 %v493
      %v1116 = vpop.f32.mrf.mxu0
      %v1117 = vadd.f32 %v972, %v1116
      %v1118 = vpop.f32.mrf.mxu0
      %1119 = vmatprep.mubr.f32.mxu0 %v532
      %1120 = vmatmul.mubr.f32.gmra.mxu0 %v496
      %v1121 = vpop.f32.mrf.mxu0
      %v1122 = vadd.f32 %v977, %v1121
      %v1123 = vpop.f32.mrf.mxu0
      %1124 = vmatprep.mubr.f32.mxu0 %v534
      %1125 = vmatmul.mubr.f32.gmra.mxu0 %v498
      %v1126 = vpop.f32.mrf.mxu0
      %v1127 = vadd.f32 %v982, %v1126
      %v1128 = vpop.f32.mrf.mxu0
      %1129 = vmatprep.mubr.f32.mxu0 %v532
      %1130 = vmatmul.mubr.f32.gmra.mxu0 %v496
      %v1131 = vpop.f32.mrf.mxu0
      %v1132 = vadd.f32 %v987, %v1131
      %v1133 = vpop.f32.mrf.mxu0
      %1134 = vmatprep.mubr.f32.mxu0 %v534
      %1135 = vmatmul.mubr.f32.gmra.mxu0 %v498
      %v1136 = vpop.f32.mrf.mxu0
      %v1137 = vadd.f32 %v992, %v1136
      %v1138 = vpop.f32.mrf.mxu0
      %1139 = vmatprep.mubr.f32.mxu0 %v537
      %1140 = vmatmul.mubr.f32.gmra.mxu0 %v501
      %v1141 = vpop.f32.mrf.mxu0
      %v1142 = vadd.f32 %v997, %v1141
      %v1143 = vpop.f32.mrf.mxu0
      %1144 = vmatprep.mubr.f32.mxu0 %v539
      %1145 = vmatmul.mubr.f32.gmra.mxu0 %v503
      %v1146 = vpop.f32.mrf.mxu0
      %v1147 = vadd.f32 %v1002, %v1146
      %v1148 = vpop.f32.mrf.mxu0
      %1149 = vmatprep.mubr.f32.mxu0 %v537
      %1150 = vmatmul.mubr.f32.gmra.mxu0 %v501
      %v1151 = vpop.f32.mrf.mxu0
      %v1152 = vadd.f32 %v1007, %v1151
      %v1153 = vpop.f32.mrf.mxu0
      %1154 = vmatprep.mubr.f32.mxu0 %v539
      %1155 = vmatmul.mubr.f32.gmra.mxu0 %v503
      %v1156 = vpop.f32.mrf.mxu0
      %v1157 = vadd.f32 %v1012, %v1156
      %v1158 = vpop.f32.mrf.mxu0
      %1159 = vdwg.mxu0
      %1160 = vmatprep.subr.mxu0 0.0
      %1161 = vmatpush1.msra.mxu0 %v685
      %1162 = vmatprep.subr.mxu0 0.0
      %1163 = vmatpush1.msra.mxu0 %v684
      %1164 = vmatprep.subr.mxu0 0.0
      %1165 = vmatpush1.msra.mxu0 %v683
      %1166 = vmatprep.subr.mxu0 0.0
      %1167 = vmatpush1.msra.mxu0 %v682
      %1168 = vmatprep.subr.mxu0 0.0
      %1169 = vmatpush1.msra.mxu0 %v681
      %1170 = vmatprep.subr.mxu0 0.0
      %1171 = vmatpush1.msra.mxu0 %v680
      %1172 = vmatprep.subr.mxu0 0.0
      %1173 = vmatpush1.msra.mxu0 %v679
      %1174 = vmatprep.subr.mxu0 0.0
      %1175 = vmatpush1.msra.mxu0 %v678
      %1176 = vmatprep.subr.mxu0 0.0
      %1177 = vmatpush1.msra.mxu0 %v677
      %1178 = vmatprep.subr.mxu0 0.0
      %1179 = vmatpush1.msra.mxu0 %v676
      %1180 = vmatprep.subr.mxu0 0.0
      %1181 = vmatpush1.msra.mxu0 %v675
      %1182 = vmatprep.subr.mxu0 0.0
      %1183 = vmatpush1.msra.mxu0 %v674
      %1184 = vmatprep.subr.mxu0 0.0
      %1185 = vmatpush1.msra.mxu0 %v673
      %1186 = vmatprep.subr.mxu0 0.0
      %1187 = vmatpush1.msra.mxu0 %v672
      %1188 = vmatprep.subr.mxu0 0.0
      %1189 = vmatpush1.msra.mxu0 %v671
      %1190 = vmatprep.subr.mxu0 0.0
      %1191 = vmatpush1.msra.mxu0 %v670
      %1192 = vmatprep.subr.mxu0 0.0
      %1193 = vmatpush2.msra.mxu0 %v701
      %1194 = vmatprep.subr.mxu0 0.0
      %1195 = vmatpush2.msra.mxu0 %v700
      %1196 = vmatprep.subr.mxu0 0.0
      %1197 = vmatpush2.msra.mxu0 %v699
      %1198 = vmatprep.subr.mxu0 0.0
      %1199 = vmatpush2.msra.mxu0 %v698
      %1200 = vmatprep.subr.mxu0 0.0
      %1201 = vmatpush2.msra.mxu0 %v697
      %1202 = vmatprep.subr.mxu0 0.0
      %1203 = vmatpush2.msra.mxu0 %v696
      %1204 = vmatprep.subr.mxu0 0.0
      %1205 = vmatpush2.msra.mxu0 %v695
      %1206 = vmatprep.subr.mxu0 0.0
      %1207 = vmatpush2.msra.mxu0 %v694
      %1208 = vmatprep.subr.mxu0 0.0
      %1209 = vmatpush2.msra.mxu0 %v693
      %1210 = vmatprep.subr.mxu0 0.0
      %1211 = vmatpush2.msra.mxu0 %v692
      %1212 = vmatprep.subr.mxu0 0.0
      %1213 = vmatpush2.msra.mxu0 %v691
      %1214 = vmatprep.subr.mxu0 0.0
      %1215 = vmatpush2.msra.mxu0 %v690
      %1216 = vmatprep.subr.mxu0 0.0
      %1217 = vmatpush2.msra.mxu0 %v689
      %1218 = vmatprep.subr.mxu0 0.0
      %1219 = vmatpush2.msra.mxu0 %v688
      %1220 = vmatprep.subr.mxu0 0.0
      %1221 = vmatpush2.msra.mxu0 %v687
      %1222 = vmatprep.subr.mxu0 0.0
      %1223 = vmatpush2.msra.mxu0 %v686
      %1224 = vmatprep.mubr.f32.mxu0 %v486
      %1225 = vmatmul.mubr.f32.gmra.mxu0 %v450
      %v1226 = vpop.f32.mrf.mxu0
      %v1227 = vadd.f32 %v1082, %v1226
      %v1228 = vpop.f32.mrf.mxu0
      %1229 = vmatprep.mubr.f32.mxu0 %v488
      %1230 = vmatmul.mubr.f32.gmra.mxu0 %v452
      %v1231 = vpop.f32.mrf.mxu0
      %v1232 = vadd.f32 %v1087, %v1231
      %v1233 = vpop.f32.mrf.mxu0
      %1234 = vmatprep.mubr.f32.mxu0 %v491
      %1235 = vmatmul.mubr.f32.gmra.mxu0 %v455
      %v1236 = vpop.f32.mrf.mxu0
      %v1237 = vadd.f32 %v1092, %v1236
      %v1238 = vpop.f32.mrf.mxu0
      %1239 = vmatprep.mubr.f32.mxu0 %v493
      %1240 = vmatmul.mubr.f32.gmra.mxu0 %v457
      %v1241 = vpop.f32.mrf.mxu0
      %v1242 = vadd.f32 %v1097, %v1241
      %v1243 = vpop.f32.mrf.mxu0
      %1244 = vmatprep.mubr.f32.mxu0 %v491
      %1245 = vmatmul.mubr.f32.gmra.mxu0 %v455
      %v1246 = vpop.f32.mrf.mxu0
      %v1247 = vadd.f32 %v1102, %v1246
      %v1248 = vpop.f32.mrf.mxu0
      %1249 = vmatprep.mubr.f32.mxu0 %v493
      %1250 = vmatmul.mubr.f32.gmra.mxu0 %v457
      %v1251 = vpop.f32.mrf.mxu0
      %v1252 = vadd.f32 %v1107, %v1251
      %v1253 = vpop.f32.mrf.mxu0
      %1254 = vmatprep.mubr.f32.mxu0 %v496
      %1255 = vmatmul.mubr.f32.gmra.mxu0 %v460
      %v1256 = vpop.f32.mrf.mxu0
      %v1257 = vadd.f32 %v1112, %v1256
      %v1258 = vpop.f32.mrf.mxu0
      %1259 = vmatprep.mubr.f32.mxu0 %v498
      %1260 = vmatmul.mubr.f32.gmra.mxu0 %v462
      %v1261 = vpop.f32.mrf.mxu0
      %v1262 = vadd.f32 %v1117, %v1261
      %v1263 = vpop.f32.mrf.mxu0
      %1264 = vmatprep.mubr.f32.mxu0 %v496
      %1265 = vmatmul.mubr.f32.gmra.mxu0 %v460
      %v1266 = vpop.f32.mrf.mxu0
      %v1267 = vadd.f32 %v1122, %v1266
      %v1268 = vpop.f32.mrf.mxu0
      %1269 = vmatprep.mubr.f32.mxu0 %v498
      %1270 = vmatmul.mubr.f32.gmra.mxu0 %v462
      %v1271 = vpop.f32.mrf.mxu0
      %v1272 = vadd.f32 %v1127, %v1271
      %v1273 = vpop.f32.mrf.mxu0
      %1274 = vmatprep.mubr.f32.mxu0 %v501
      %1275 = vmatmul.mubr.f32.gmra.mxu0 %v465
      %v1276 = vpop.f32.mrf.mxu0
      %v1277 = vadd.f32 %v1132, %v1276
      %v1278 = vpop.f32.mrf.mxu0
      %1279 = vmatprep.mubr.f32.mxu0 %v503
      %1280 = vmatmul.mubr.f32.gmra.mxu0 %v467
      %v1281 = vpop.f32.mrf.mxu0
      %v1282 = vadd.f32 %v1137, %v1281
      %v1283 = vpop.f32.mrf.mxu0
      %1284 = vmatprep.mubr.f32.mxu0 %v501
      %1285 = vmatmul.mubr.f32.gmra.mxu0 %v465
      %v1286 = vpop.f32.mrf.mxu0
      %v1287 = vadd.f32 %v1142, %v1286
      %v1288 = vpop.f32.mrf.mxu0
      %1289 = vmatprep.mubr.f32.mxu0 %v503
      %1290 = vmatmul.mubr.f32.gmra.mxu0 %v467
      %v1291 = vpop.f32.mrf.mxu0
      %v1292 = vadd.f32 %v1147, %v1291
      %v1293 = vpop.f32.mrf.mxu0
      %1294 = vmatprep.mubr.f32.mxu0 %v562
      %1295 = vmatmul.mubr.f32.gmra.mxu0 %v555
      %v1296 = vpop.f32.mrf.mxu0
      %v1297 = vadd.f32 %v1152, %v1296
      %v1298 = vpop.f32.mrf.mxu0
      %1299 = vmatprep.mubr.f32.mxu0 %v564
      %1300 = vmatmul.mubr.f32.gmra.mxu0 %v557
      %v1301 = vpop.f32.mrf.mxu0
      %v1302 = vadd.f32 %v1157, %v1301
      %v1303 = vpop.f32.mrf.mxu0
      %1304 = vdwg.mxu0
      %1305 = vmatprep.subr.mxu0 0.0
      %1306 = vmatpush1.msra.mxu0 %v717
      %1307 = vmatprep.subr.mxu0 0.0
      %1308 = vmatpush1.msra.mxu0 %v716
      %1309 = vmatprep.subr.mxu0 0.0
      %1310 = vmatpush1.msra.mxu0 %v715
      %1311 = vmatprep.subr.mxu0 0.0
      %1312 = vmatpush1.msra.mxu0 %v714
      %1313 = vmatprep.subr.mxu0 0.0
      %1314 = vmatpush1.msra.mxu0 %v713
      %1315 = vmatprep.subr.mxu0 0.0
      %1316 = vmatpush1.msra.mxu0 %v712
      %1317 = vmatprep.subr.mxu0 0.0
      %1318 = vmatpush1.msra.mxu0 %v711
      %1319 = vmatprep.subr.mxu0 0.0
      %1320 = vmatpush1.msra.mxu0 %v710
      %1321 = vmatprep.subr.mxu0 0.0
      %1322 = vmatpush1.msra.mxu0 %v709
      %1323 = vmatprep.subr.mxu0 0.0
      %1324 = vmatpush1.msra.mxu0 %v708
      %1325 = vmatprep.subr.mxu0 0.0
      %1326 = vmatpush1.msra.mxu0 %v707
      %1327 = vmatprep.subr.mxu0 0.0
      %1328 = vmatpush1.msra.mxu0 %v706
      %1329 = vmatprep.subr.mxu0 0.0
      %1330 = vmatpush1.msra.mxu0 %v705
      %1331 = vmatprep.subr.mxu0 0.0
      %1332 = vmatpush1.msra.mxu0 %v704
      %1333 = vmatprep.subr.mxu0 0.0
      %1334 = vmatpush1.msra.mxu0 %v703
      %1335 = vmatprep.subr.mxu0 0.0
      %1336 = vmatpush1.msra.mxu0 %v702
      %1337 = vmatprep.subr.mxu0 0.0
      %1338 = vmatpush2.msra.mxu0 0.0
      %1339 = vmatprep.subr.mxu0 0.0
      %1340 = vmatpush2.msra.mxu0 0.0
      %1341 = vmatprep.subr.mxu0 0.0
      %1342 = vmatpush2.msra.mxu0 0.0
      %1343 = vmatprep.subr.mxu0 0.0
      %1344 = vmatpush2.msra.mxu0 0.0
      %1345 = vmatprep.subr.mxu0 0.0
      %1346 = vmatpush2.msra.mxu0 0.0
      %1347 = vmatprep.subr.mxu0 0.0
      %1348 = vmatpush2.msra.mxu0 0.0
      %1349 = vmatprep.subr.mxu0 0.0
      %1350 = vmatpush2.msra.mxu0 0.0
      %1351 = vmatprep.subr.mxu0 0.0
      %1352 = vmatpush2.msra.mxu0 0.0
      %1353 = vmatprep.subr.mxu0 0.0
      %1354 = vmatpush2.msra.mxu0 0.0
      %1355 = vmatprep.subr.mxu0 0.0
      %1356 = vmatpush2.msra.mxu0 0.0
      %1357 = vmatprep.subr.mxu0 0.0
      %1358 = vmatpush2.msra.mxu0 0.0
      %1359 = vmatprep.subr.mxu0 0.0
      %1360 = vmatpush2.msra.mxu0 0.0
      %1361 = vmatprep.subr.mxu0 0.0
      %1362 = vmatpush2.msra.mxu0 0.0
      %1363 = vmatprep.subr.mxu0 0.0
      %1364 = vmatpush2.msra.mxu0 0.0
      %1365 = vmatprep.subr.mxu0 0.0
      %1366 = vmatpush2.msra.mxu0 0.0
      %1367 = vmatprep.subr.mxu0 0.0
      %1368 = vmatpush2.msra.mxu0 0.0
      %1369 = vmatprep.mubr.f32.mxu0 0.0
      %1370 = vmatmul.mubr.f32.gmra.mxu0 %v522
      %v1371 = vpop.f32.mrf.mxu0
      %v1372 = vadd.f32 %v1227, %v1371
      %v1373 = vpop.f32.mrf.mxu0
      %1374 = vmatprep.mubr.f32.mxu0 0.0
      %1375 = vmatmul.mubr.f32.gmra.mxu0 %v524
      %v1376 = vpop.f32.mrf.mxu0
      %v1377 = vadd.f32 %v1232, %v1376
      %v1378 = vpop.f32.mrf.mxu0
      %1379 = vmatprep.mubr.f32.mxu0 0.0
      %1380 = vmatmul.mubr.f32.gmra.mxu0 %v527
      %v1381 = vpop.f32.mrf.mxu0
      %v1382 = vadd.f32 %v1237, %v1381
      %v1383 = vpop.f32.mrf.mxu0
      %1384 = vmatprep.mubr.f32.mxu0 0.0
      %1385 = vmatmul.mubr.f32.gmra.mxu0 %v529
      %v1386 = vpop.f32.mrf.mxu0
      %v1387 = vadd.f32 %v1242, %v1386
      %v1388 = vpop.f32.mrf.mxu0
      %1389 = vmatprep.mubr.f32.mxu0 0.0
      %1390 = vmatmul.mubr.f32.gmra.mxu0 %v527
      %v1391 = vpop.f32.mrf.mxu0
      %v1392 = vadd.f32 %v1247, %v1391
      %v1393 = vpop.f32.mrf.mxu0
      %1394 = vmatprep.mubr.f32.mxu0 0.0
      %1395 = vmatmul.mubr.f32.gmra.mxu0 %v529
      %v1396 = vpop.f32.mrf.mxu0
      %v1397 = vadd.f32 %v1252, %v1396
      %v1398 = vpop.f32.mrf.mxu0
      %1399 = vmatprep.mubr.f32.mxu0 0.0
      %1400 = vmatmul.mubr.f32.gmra.mxu0 %v532
      %v1401 = vpop.f32.mrf.mxu0
      %v1402 = vadd.f32 %v1257, %v1401
      %v1403 = vpop.f32.mrf.mxu0
      %1404 = vmatprep.mubr.f32.mxu0 0.0
      %1405 = vmatmul.mubr.f32.gmra.mxu0 %v534
      %v1406 = vpop.f32.mrf.mxu0
      %v1407 = vadd.f32 %v1262, %v1406
      %v1408 = vpop.f32.mrf.mxu0
      %1409 = vmatprep.mubr.f32.mxu0 0.0
      %1410 = vmatmul.mubr.f32.gmra.mxu0 %v532
      %v1411 = vpop.f32.mrf.mxu0
      %v1412 = vadd.f32 %v1267, %v1411
      %v1413 = vpop.f32.mrf.mxu0
      %1414 = vmatprep.mubr.f32.mxu0 0.0
      %1415 = vmatmul.mubr.f32.gmra.mxu0 %v534
      %v1416 = vpop.f32.mrf.mxu0
      %v1417 = vadd.f32 %v1272, %v1416
      %v1418 = vpop.f32.mrf.mxu0
      %1419 = vmatprep.mubr.f32.mxu0 0.0
      %1420 = vmatmul.mubr.f32.gmra.mxu0 %v537
      %v1421 = vpop.f32.mrf.mxu0
      %v1422 = vadd.f32 %v1277, %v1421
      %v1423 = vpop.f32.mrf.mxu0
      %1424 = vmatprep.mubr.f32.mxu0 0.0
      %1425 = vmatmul.mubr.f32.gmra.mxu0 %v539
      %v1426 = vpop.f32.mrf.mxu0
      %v1427 = vadd.f32 %v1282, %v1426
      %v1428 = vpop.f32.mrf.mxu0
      %1429 = vmatprep.mubr.f32.mxu0 0.0
      %1430 = vmatmul.mubr.f32.gmra.mxu0 %v537
      %v1431 = vpop.f32.mrf.mxu0
      %v1432 = vadd.f32 %v1287, %v1431
      %v1433 = vpop.f32.mrf.mxu0
      %1434 = vmatprep.mubr.f32.mxu0 0.0
      %1435 = vmatmul.mubr.f32.gmra.mxu0 %v539
      %v1436 = vpop.f32.mrf.mxu0
      %v1437 = vadd.f32 %v1292, %v1436
      %v1438 = vpop.f32.mrf.mxu0
      %1439 = vmatprep.mubr.f32.mxu0 0.0
      %1440 = vmatmul.mubr.f32.gmra.mxu0 %v569
      %v1441 = vpop.f32.mrf.mxu0
      %v1442 = vadd.f32 %v1297, %v1441
      %v1443 = vpop.f32.mrf.mxu0
      %1444 = vmatprep.mubr.f32.mxu0 0.0
      %1445 = vmatmul.mubr.f32.gmra.mxu0 %v571
      %v1446 = vpop.f32.mrf.mxu0
      %v1447 = vadd.f32 %v1302, %v1446
      %v1448 = vpop.f32.mrf.mxu0
      %1449 = vdwg.mxu0
      %1450 = vst [vmem:[%s248] sm:$0xff] %v1372
      %1451 = vst [vmem:[%s248 + $0x8] sm:$0xff] %v1377
      %1452 = vst [vmem:[%s248 + $0x10] sm:$0xff] %v1382
      %1453 = vst [vmem:[%s248 + $0x18] sm:$0xff] %v1387
      %1454 = vst [vmem:[%s248 + $0x20] sm:$0xff] %v1392
      %1455 = vst [vmem:[%s248 + $0x28] sm:$0xff] %v1397
      %1456 = vst [vmem:[%s248 + $0x30] sm:$0xff] %v1402
      %1457 = vst [vmem:[%s248 + $0x38] sm:$0xff] %v1407
      %1458 = vst [vmem:[%s248 + $0x40] sm:$0xff] %v1412
      %1459 = vst [vmem:[%s248 + $0x48] sm:$0xff] %v1417
      %1460 = vst [vmem:[%s248 + $0x50] sm:$0xff] %v1422
      %1461 = vst [vmem:[%s248 + $0x58] sm:$0xff] %v1427
      %1462 = vst [vmem:[%s248 + $0x60] sm:$0xff] %v1432
      %1463 = vst [vmem:[%s248 + $0x68] sm:$0xff] %v1437
      %1464 = vst [vmem:[%s248 + $0x70] sm:$0xff] %v1442
      %1465 = vst [vmem:[%s248 + $0x78] sm:$0xff] %v1447
      %s1466 = smul.u32 8, %s21
      %p1467 = scmp.lt.s32.totalorder %s20, 1
      %s1468 = scalar_select %p1467, %s20, 1
      %p1469 = scmp.lt.s32.totalorder %s1466, 15
      %s1470 = scalar_select %p1469, %s1466, 15
      %s1471 = smul.addr %s1470, 2
      %s1472 = smul.addr %s1468, 32
      %s1473 = sadd.s32 %s1471, %s1472
      %s1474 = smul.addr %s1473, 8
      %s1475 = scalar_lea.vmem %s5, %s1474
      // Predicated region
      $region41: #{resblock_forward.5} parent=39 // pred_check
        %p1476 = pneg %p158
      $region42: #{resblock_forward.5} parent=39 // pred_check_branch
        %1478 = sbr.rel (%p1476) target = $region44
      $region43: #{resblock_forward.5} parent=39 // pred_region
        %s1479 = smul.u32 8, %s21
      $region44: #{resblock_forward.5} parent=39 // pred_fallthru
        _
    $region40: #{resblock_forward.5} parent=5 // pred_fallthru
      _
    %p1480 = scmp.le.s32.totalorder 2, %s11
    // Predicated region
    $region45: #{resblock_forward.5} parent=5 // pred_check
      %p1481 = pneg %p1480
    $region46: #{resblock_forward.5} parent=5 // pred_check_branch
      %1483 = sbr.rel (%p1481) target = $region48
    $region47: #{resblock_forward.5} parent=5 // pred_region
      %s1484 = ssub.s32 %s11, 2
      // Predicated region
      $region49: #{resblock_forward.5} parent=47 // pred_check
        %p1485 = pneg %p164
      $region50: #{resblock_forward.5} parent=47 // pred_check_branch
        %1487 = sbr.rel (%p1485) target = $region52
      $region51: #{resblock_forward.5} parent=47 // pred_region
        %s1488 = smul.u32 8, %s23
        %p1489 = scmp.lt.s32.totalorder %s22, 1
        %s1490 = scalar_select %p1489, %s22, 1
        %p1491 = scmp.lt.s32.totalorder %s1488, 15
        %s1492 = scalar_select %p1491, %s1488, 15
        %s1493 = smul.addr %s1492, 2
        %s1494 = smul.addr %s1490, 32
        %s1495 = sadd.s32 %s1493, %s1494
        %s1496 = smul.addr %s1495, 8
        %s1497 = scalar_lea.vmem %s5, %s1496
      $region52: #{resblock_forward.5} parent=47 // pred_fallthru
        _
    $region48: #{resblock_forward.5} parent=5 // pred_fallthru
      _
  $region6: #{resblock_forward.5} parent=0 // loop_footer
    %s15 = sadd.s32 1, %s11
  $region7: #{resblock_forward.5} parent=0 // loop_footer_branch
    %10 = sbr.rel target = $region3
  $region8: #{resblock_forward.5} parent=0 // loop_exit
    _

// kernel: resblock_forward.7
$region0: #{resblock_forward.7}
  #allocation0 [shape = 'u32[]', space=smem, size = 0x4, offset = 0x4, fixed_abs, tag = 'smem constant byte address 0x4 - core index']
  #allocation1 [shape = 'u32[144,128]{1,0:T(1,128)}', space=vmem, size = 0x12000, scoped, tag = 'internal scratch']
  %s0 = inlined_call_operand.vmem [shape: f32[2,18,18,128], index: 0, kind: input, shape index: {}]
  %s1 = inlined_call_operand.vmem [shape: f32[1,128], index: 1, kind: input, shape index: {}]
  %s2 = inlined_call_operand.vmem [shape: f32[1,128], index: 2, kind: input, shape index: {}]
  %s3 = inlined_call_operand.vmem [shape: f32[1152,128], index: 3, kind: input, shape index: {}]
  %s4 = inlined_call_operand.vmem [shape: f32[1,128], index: 4, kind: input, shape index: {}]
  %s5 = inlined_call_operand.vmem [shape: f32[2,10,20,128], index: 5, kind: input, shape index: {}]
  %s6 = inlined_call_operand.vmem [shape: f32[128,128], index: 6, kind: input, shape index: {}]
  %s7 = inlined_call_operand.vmem [shape: f32[1,128], index: 7, kind: input, shape index: {}]
  %s8 = inlined_call_operand.hbm [shape: f32[2,16,16,128], index: 8, kind: output, shape index: {}]
  %s9 = sld [smem:[#allocation0]]
  $region65: #{resblock_forward.7} parent=0
    _
  %s11 = ssub.s32 1, %s9
  %s12 = scalar_select 0, %s11, %s9
  $region1: #{resblock_forward.7} parent=0
    #allocation2 [shape = 'u8[131072]{0}', space=vmem, size = 0x20000, scoped, tag = 'output window, operand 0']
    #allocation3 [shape = 's32[2]{0}', space=sflag, size = 0x8, scoped, tag = 'scoped memory for resblock_forward.7']
    %13 = vsyncpa [#allocation3], 0
    %s14 = scalar_lea.sflag [#allocation3], 1
    %15 = vsyncpa %s14, 0
    loop: start=0, step=1, limit=6
    $region2: #{resblock_forward.7} parent=1 // loop_pre_header
      _
    $region3: #{resblock_forward.7} parent=1 // loop_header
      %s17 = sphi 0, %s21
      %p18 = scmp.ge.s32.totalorder %s17, 6
      %s24 = sphi 0, %s36
      %s25 = sphi 0, %s32
      %s26 = sphi 0, %s24
      %s27 = sphi 0, %s25
      %s28 = sphi 0, %s26
      %s29 = sphi 0, %s27
      %s39 = sphi 0, %s41
      %s42 = sphi 0, %s39
      %s43 = sphi 0, %s42
      %s59 = sphi 0, %s43
      %s63 = sphi 0, %s63
      %s65 = sphi 0, %s63
      %s66 = sphi 0, %s65
      %s80 = sphi 0, %s66
      %s84 = sphi 0, %s84
      %s86 = sphi 0, %s84
      %s87 = sphi 0, %s86
      %s101 = sphi 0, %s87
      %s105 = sphi 0, %s105
      %s107 = sphi 0, %s105
      %s108 = sphi 0, %s107
      %s122 = sphi 0, %s108
      %s126 = sphi 0, %s126
      %s128 = sphi 0, %s126
      %s129 = sphi 0, %s128
      %s143 = sphi 0, %s129
      %s149 = sphi 0, %s151
      %s152 = sphi 0, %s149
      %s153 = sphi 0, %s152
      %s169 = sphi 0, %s153
      %s173 = sphi 0, %s173
      %s175 = sphi 0, %s173
      %s176 = sphi 0, %s175
      %s190 = sphi 0, %s176
      %s194 = sphi 0, %s194
      %s196 = sphi 0, %s194
      %s197 = sphi 0, %s196
      %s211 = sphi 0, %s197
      %s219 = sphi 0, %s221
      %s222 = sphi 0, %s219
      %s223 = sphi 0, %s222
      %s239 = sphi 0, %s223
    $region4: #{resblock_forward.7} parent=1 // loop_header_branch
      %20 = sbr.rel (%p18) target = $region8
    $region5: #{resblock_forward.7} parent=1 // loop_body
      %s22 = ssub.s32 %s17, 1
      %s23 = ssub.s32 %s17, 2
      %s30 = sadd.s32 1, %s25
      %p31 = scmp.ge.s32.totalorder %s30, 2
      %s32 = scalar_select %p31, 0, %s30
      %s33 = sadd.s32 1, %s24
      %s34 = scalar_select %p31, %s33, %s24
      %p35 = scmp.ge.s32.totalorder %s34, 2
      %s36 = scalar_select %p35, 0, %s34
      %s37 = ssub.s32 %s24, %s36
      %p38 = scmp.eq.s32.totalorder %s37, 0
      %s40 = sadd.s32 %s39, 1
      %s41 = scalar_select %p38, %s39, %s40
      %p44 = pneg %p38
      %p45 = scmp.eq.s32.totalorder %s17, 3
      %p46 = por %p44, %p45
      %p47 = scmp.ne.s32.totalorder %s39, %s42
      %p48 = scmp.eq.s32.totalorder %s17, 0
      %p49 = por %p47, %p48
      %p50 = scmp.ne.s32.totalorder %s39, %s42
      %p51 = scmp.eq.s32.totalorder %s22, 3
      %p52 = por %p50, %p51
      %p53 = scmp.ne.s32.totalorder %s42, %s43
      %p54 = scmp.eq.s32.totalorder %s22, 0
      %p55 = por %p53, %p54
      %p56 = scmp.ne.s32.totalorder %s42, %s43
      %p57 = scmp.eq.s32.totalorder %s23, 3
      %p58 = por %p56, %p57
      %p60 = scmp.ne.s32.totalorder %s43, %s59
      %p61 = scmp.eq.s32.totalorder %s23, 0
      %p62 = por %p60, %p61
      %s64 = sadd.s32 %s63, 1
      %p67 = scmp.eq.s32.totalorder %s17, 3
      %p68 = scmp.ne.s32.totalorder %s63, %s65
      %p69 = scmp.eq.s32.totalorder %s17, 0
      %p70 = por %p68, %p69
      %p71 = scmp.ne.s32.totalorder %s63, %s65
      %p72 = scmp.eq.s32.totalorder %s22, 3
      %p73 = por %p71, %p72
      %p74 = scmp.ne.s32.totalorder %s65, %s66
      %p75 = scmp.eq.s32.totalorder %s22, 0
      %p76 = por %p74, %p75
      %p77 = scmp.ne.s32.totalorder %s65, %s66
      %p78 = scmp.eq.s32.totalorder %s23, 3
      %p79 = por %p77, %p78
      %p81 = scmp.ne.s32.totalorder %s66, %s80
      %p82 = scmp.eq.s32.totalorder %s23, 0
      %p83 = por %p81, %p82
      %s85 = sadd.s32 %s84, 1
      %p88 = scmp.eq.s32.totalorder %s17, 3
      %p89 = scmp.ne.s32.totalorder %s84, %s86
      %p90 = scmp.eq.s32.totalorder %s17, 0
      %p91 = por %p89, %p90
      %p92 = scmp.ne.s32.totalorder %s84, %s86
      %p93 = scmp.eq.s32.totalorder %s22, 3
      %p94 = por %p92, %p93
      %p95 = scmp.ne.s32.totalorder %s86, %s87
      %p96 = scmp.eq.s32.totalorder %s22, 0
      %p97 = por %p95, %p96
      %p98 = scmp.ne.s32.totalorder %s86, %s87
      %p99 = scmp.eq.s32.totalorder %s23, 3
      %p100 = por %p98, %p99
      %p102 = scmp.ne.s32.totalorder %s87, %s101
      %p103 = scmp.eq.s32.totalorder %s23, 0
      %p104 = por %p102, %p103
      %s106 = sadd.s32 %s105, 1
      %p109 = scmp.eq.s32.totalorder %s17, 3
      %p110 = scmp.ne.s32.totalorder %s105, %s107
      %p111 = scmp.eq.s32.totalorder %s17, 0
      %p112 = por %p110, %p111
      %p113 = scmp.ne.s32.totalorder %s105, %s107
      %p114 = scmp.eq.s32.totalorder %s22, 3
      %p115 = por %p113, %p114
      %p116 = scmp.ne.s32.totalorder %s107, %s108
      %p117 = scmp.eq.s32.totalorder %s22, 0
      %p118 = por %p116, %p117
      %p119 = scmp.ne.s32.totalorder %s107, %s108
      %p120 = scmp.eq.s32.totalorder %s23, 3
      %p121 = por %p119, %p120
      %p123 = scmp.ne.s32.totalorder %s108, %s122
      %p124 = scmp.eq.s32.totalorder %s23, 0
      %p125 = por %p123, %p124
      %s127 = sadd.s32 %s126, 1
      %p130 = scmp.eq.s32.totalorder %s17, 3
      %p131 = scmp.ne.s32.totalorder %s126, %s128
      %p132 = scmp.eq.s32.totalorder %s17, 0
      %p133 = por %p131, %p132
      %p134 = scmp.ne.s32.totalorder %s126, %s128
      %p135 = scmp.eq.s32.totalorder %s22, 3
      %p136 = por %p134, %p135
      %p137 = scmp.ne.s32.totalorder %s128, %s129
      %p138 = scmp.eq.s32.totalorder %s22, 0
      %p139 = por %p137, %p138
      %p140 = scmp.ne.s32.totalorder %s128, %s129
      %p141 = scmp.eq.s32.totalorder %s23, 3
      %p142 = por %p140, %p141
      %p144 = scmp.ne.s32.totalorder %s129, %s143
      %p145 = scmp.eq.s32.totalorder %s23, 0
      %p146 = por %p144, %p145
      %s147 = ssub.s32 %s24, %s36
      %p148 = scmp.eq.s32.totalorder %s147, 0
      %s150 = sadd.s32 %s149, 1
      %s151 = scalar_select %p148, %s149, %s150
      %p154 = pneg %p148
      %p155 = scmp.eq.s32.totalorder %s17, 3
      %p156 = por %p154, %p155
      %p157 = scmp.ne.s32.totalorder %s149, %s152
      %p158 = scmp.eq.s32.totalorder %s17, 0
      %p159 = por %p157, %p158
      %p160 = scmp.ne.s32.totalorder %s149, %s152
      %p161 = scmp.eq.s32.totalorder %s22, 3
      %p162 = por %p160, %p161
      %p163 = scmp.ne.s32.totalorder %s152, %s153
      %p164 = scmp.eq.s32.totalorder %s22, 0
      %p165 = por %p163, %p164
      %p166 = scmp.ne.s32.totalorder %s152, %s153
      %p167 = scmp.eq.s32.totalorder %s23, 3
      %p168 = por %p166, %p167
      %p170 = scmp.ne.s32.totalorder %s153, %s169
      %p171 = scmp.eq.s32.totalorder %s23, 0
      %p172 = por %p170, %p171
      %s174 = sadd.s32 %s173, 1
      %p177 = scmp.eq.s32.totalorder %s17, 3
      %p178 = scmp.ne.s32.totalorder %s173, %s175
      %p179 = scmp.eq.s32.totalorder %s17, 0
      %p180 = por %p178, %p179
      %p181 = scmp.ne.s32.totalorder %s173, %s175
      %p182 = scmp.eq.s32.totalorder %s22, 3
      %p183 = por %p181, %p182
      %p184 = scmp.ne.s32.totalorder %s175, %s176
      %p185 = scmp.eq.s32.totalorder %s22, 0
      %p186 = por %p184, %p185
      %p187 = scmp.ne.s32.totalorder %s175, %s176
      %p188 = scmp.eq.s32.totalorder %s23, 3
      %p189 = por %p187, %p188
      %p191 = scmp.ne.s32.totalorder %s176, %s190
      %p192 = scmp.eq.s32.totalorder %s23, 0
      %p193 = por %p191, %p192
      %s195 = sadd.s32 %s194, 1
      %p198 = scmp.eq.s32.totalorder %s17, 3
      %p199 = scmp.ne.s32.totalorder %s194, %s196
      %p200 = scmp.eq.s32.totalorder %s17, 0
      %p201 = por %p199, %p200
      %p202 = scmp.ne.s32.totalorder %s194, %s196
      %p203 = scmp.eq.s32.totalorder %s22, 3
      %p204 = por %p202, %p203
      %p205 = scmp.ne.s32.totalorder %s196, %s197
      %p206 = scmp.eq.s32.totalorder %s22, 0
      %p207 = por %p205, %p206
      %p208 = scmp.ne.s32.totalorder %s196, %s197
      %p209 = scmp.eq.s32.totalorder %s23, 3
      %p210 = por %p208, %p209
      %p212 = scmp.ne.s32.totalorder %s197, %s211
      %p213 = scmp.eq.s32.totalorder %s23, 0
      %p214 = por %p212, %p213
      %s215 = ssub.s32 %s24, %s36
      %s216 = ssub.s32 %s25, %s32
      %s217 = sor.u32 %s215, %s216
      %p218 = scmp.eq.s32.totalorder %s217, 0
      %s220 = sadd.s32 %s219, 1
      %s221 = scalar_select %p218, %s219, %s220
      %p224 = pneg %p218
      %p225 = scmp.eq.s32.totalorder %s17, 3
      %p226 = por %p224, %p225
      %p227 = scmp.ne.s32.totalorder %s219, %s222
      %p228 = scmp.eq.s32.totalorder %s17, 0
      %p229 = por %p227, %p228
      %p230 = scmp.ne.s32.totalorder %s219, %s222
      %p231 = scmp.eq.s32.totalorder %s22, 3
      %p232 = por %p230, %p231
      %p233 = scmp.ne.s32.totalorder %s222, %s223
      %p234 = scmp.eq.s32.totalorder %s22, 0
      %p235 = por %p233, %p234
      %p236 = scmp.ne.s32.totalorder %s222, %s223
      %p237 = scmp.eq.s32.totalorder %s23, 3
      %p238 = por %p236, %p237
      %p240 = scmp.ne.s32.totalorder %s223, %s239
      %p241 = scmp.eq.s32.totalorder %s23, 0
      %p242 = por %p240, %p241
      %p243 = scmp.le.s32.totalorder 1, %s17
      %p244 = scmp.lt.s32.totalorder %s17, 5
      %p245 = pnand %p243, %p244
      %p246 = pneg %p245
      // Predicated region
      $region9: #{resblock_forward.7} parent=5 // pred_check
        _
      $region10: #{resblock_forward.7} parent=5 // pred_check_branch
        %248 = sbr.rel (%p245) target = $region12
      $region11: #{resblock_forward.7} parent=5 // pred_region
        %s249 = ssub.s32 %s17, 1
        // Predicated region
        $region13: #{resblock_forward.7} parent=11 // pred_check
          %p250 = pneg %p76
        $region14: #{resblock_forward.7} parent=11 // pred_check_branch
          %252 = sbr.rel (%p250) target = $region16
        $region15: #{resblock_forward.7} parent=11 // pred_region
          _
        $region16: #{resblock_forward.7} parent=11 // pred_fallthru
          _
        // Predicated region
        $region17: #{resblock_forward.7} parent=11 // pred_check
          %p253 = pneg %p97
        $region18: #{resblock_forward.7} parent=11 // pred_check_branch
          %255 = sbr.rel (%p253) target = $region20
        $region19: #{resblock_forward.7} parent=11 // pred_region
          _
        $region20: #{resblock_forward.7} parent=11 // pred_fallthru
          _
        // Predicated region
        $region21: #{resblock_forward.7} parent=11 // pred_check
          %p256 = pneg %p118
        $region22: #{resblock_forward.7} parent=11 // pred_check_branch
          %258 = sbr.rel (%p256) target = $region24
        $region23: #{resblock_forward.7} parent=11 // pred_region
          _
        $region24: #{resblock_forward.7} parent=11 // pred_fallthru
          _
        // Predicated region
        $region25: #{resblock_forward.7} parent=11 // pred_check
          %p259 = pneg %p139
        $region26: #{resblock_forward.7} parent=11 // pred_check_branch
          %261 = sbr.rel (%p259) target = $region28
        $region27: #{resblock_forward.7} parent=11 // pred_region
          _
        $region28: #{resblock_forward.7} parent=11 // pred_fallthru
          _
        // Predicated region
        $region29: #{resblock_forward.7} parent=11 // pred_check
          %p262 = pneg %p186
        $region30: #{resblock_forward.7} parent=11 // pred_check_branch
          %264 = sbr.rel (%p262) target = $region32
        $region31: #{resblock_forward.7} parent=11 // pred_region
          _
        $region32: #{resblock_forward.7} parent=11 // pred_fallthru
          _
        // Predicated region
        $region33: #{resblock_forward.7} parent=11 // pred_check
          %p265 = pneg %p207
        $region34: #{resblock_forward.7} parent=11 // pred_check_branch
          %267 = sbr.rel (%p265) target = $region36
        $region35: #{resblock_forward.7} parent=11 // pred_region
          _
        $region36: #{resblock_forward.7} parent=11 // pred_fallthru
          _
      $region12: #{resblock_forward.7} parent=5 // pred_fallthru
        _
      %p268 = scmp.lt.s32.totalorder %s17, 4
      // Predicated region
      $region37: #{resblock_forward.7} parent=5 // pred_check
        %p269 = pneg %p268
      $region38: #{resblock_forward.7} parent=5 // pred_check_branch
        %271 = sbr.rel (%p269) target = $region40
      $region39: #{resblock_forward.7} parent=5 // pred_region
        // Predicated region
        $region41: #{resblock_forward.7} parent=39 // pred_check
          %p272 = pneg %p49
        $region42: #{resblock_forward.7} parent=39 // pred_check_branch
          %274 = sbr.rel (%p272) target = $region44
        $region43: #{resblock_forward.7} parent=39 // pred_region
          %p275 = scmp.lt.s32.totalorder %s24, 1
          %s276 = scalar_select %p275, %s24, 1
          %s277 = smul.addr %s276, 54
          %s278 = smul.addr %s277, 8
          %s279 = scalar_lea.vmem %s0, %s278
        $region44: #{resblock_forward.7} parent=39 // pred_fallthru
          _
        // Predicated region
        $region45: #{resblock_forward.7} parent=39 // pred_check
          %p280 = pneg %p159
        $region46: #{resblock_forward.7} parent=39 // pred_check_branch
          %282 = sbr.rel (%p280) target = $region48
        $region47: #{resblock_forward.7} parent=39 // pred_region
          %p283 = scmp.lt.s32.totalorder %s24, 1
          %s284 = scalar_select %p283, %s24, 1
          %s285 = smul.addr %s284, 30
          %s286 = smul.addr %s285, 8
          %s287 = scalar_lea.vmem %s5, %s286
        $region48: #{resblock_forward.7} parent=39 // pred_fallthru
          _
      $region40: #{resblock_forward.7} parent=5 // pred_fallthru
        _
      %p288 = scmp.le.s32.totalorder 1, %s17
      %p289 = scmp.lt.s32.totalorder %s17, 5
      %p290 = pnand %p288, %p289
      %p291 = pneg %p290
      // Predicated region
      $region49: #{resblock_forward.7} parent=5 // pred_check
        _
      $region50: #{resblock_forward.7} parent=5 // pred_check_branch
        %293 = sbr.rel (%p290) target = $region52
      $region51: #{resblock_forward.7} parent=5 // pred_region
        %s294 = ssub.s32 %s17, 1
        %p295 = scmp.lt.s32.totalorder %s26, 1
        %s296 = scalar_select %p295, %s26, 1
        %s297 = smul.addr %s296, 54
        %s298 = smul.addr %s297, 8
        %s299 = scalar_lea.vmem %s0, %s298
        %p300 = pneg %p55
        %p301 = pneg %p52
        %p302 = pneg %p76
        %p303 = pneg %p73
        %p304 = pneg %p97
        %p305 = pneg %p94
        %p306 = pneg %p118
        %p307 = pneg %p115
        %p308 = pneg %p139
        %p309 = pneg %p136
        %p310 = scmp.lt.s32.totalorder %s26, 1
        %s311 = scalar_select %p310, %s26, 1
        %s312 = smul.addr %s311, 30
        %s313 = smul.addr %s312, 8
        %s314 = scalar_lea.vmem %s5, %s313
        %p315 = pneg %p165
        %p316 = pneg %p162
        %p317 = pneg %p186
        %p318 = pneg %p183
        %p319 = pneg %p207
        %p320 = pneg %p204
        %p321 = pneg %p235
        %p322 = pneg %p232
        %s323 = sand.u32 %s222, 1
        %s324 = scalar_lea.sflag [#allocation3], %s323
        %s325 = sand.u32 %s222, 1
        %s326 = smul.addr %s325, 128
        %s327 = scalar_lea.vmem [#allocation2], %s326
        %p328 = scmp.lt.s32.totalorder %s26, 1
        %s329 = scalar_select %p328, %s26, 1
        %s330 = smul.addr %s329, 54
        %s331 = smul.addr %s330, 8
        %s332 = scalar_lea.vmem %s0, %s331
        %p333 = scmp.lt.s32.totalorder %s26, 1
        %s334 = scalar_select %p333, %s26, 1
        %s335 = smul.addr %s334, 30
        %s336 = smul.addr %s335, 8
        %s337 = scalar_lea.vmem %s5, %s336
        %s338 = smul.u32 8, %s27
        %s339 = smul.u32 %s27, 8
        %s340 = smul.u32 %s339, 24
        %s341 = scalar_lea.vmem %s332, %s340
        %v342 = vld [vmem:[%s341] sm:$0xff]
        %v343 = vld [vmem:[%s341 + $0x8] sm:$0xff]
        %v344 = vld [vmem:[%s341 + $0x10] sm:$0x3]
        %v345 = vld [vmem:[%s341 + $0x18] sm:$0xff]
        %v346 = vld [vmem:[%s341 + $0x20] sm:$0xff]
        %v347 = vld [vmem:[%s341 + $0x28] sm:$0x3]
        %v348 = vld [vmem:[%s341 + $0x30] sm:$0xff]
        %v349 = vld [vmem:[%s341 + $0x38] sm:$0xff]
        %v350 = vld [vmem:[%s341 + $0x40] sm:$0x3]
        %v351 = vld [vmem:[%s341 + $0x48] sm:$0xff]
        %v352 = vld [vmem:[%s341 + $0x50] sm:$0xff]
        %v353 = vld [vmem:[%s341 + $0x58] sm:$0x3]
        %v354 = vld [vmem:[%s341 + $0x60] sm:$0xff]
        %v355 = vld [vmem:[%s341 + $0x68] sm:$0xff]
        %v356 = vld [vmem:[%s341 + $0x70] sm:$0x3]
        %v357 = vld [vmem:[%s341 + $0x78] sm:$0xff]
        %v358 = vld [vmem:[%s341 + $0x80] sm:$0xff]
        %v359 = vld [vmem:[%s341 + $0x88] sm:$0x3]
        %v360 = vld [vmem:[%s341 + $0x90] sm:$0xff]
        %v361 = vld [vmem:[%s341 + $0x98] sm:$0xff]
        %v362 = vld [vmem:[%s341 + $0xa0] sm:$0x3]
        %v363 = vld [vmem:[%s341 + $0xa8] sm:$0xff]
        %v364 = vld [vmem:[%s341 + $0xb0] sm:$0xff]
        %v365 = vld [vmem:[%s341 + $0xb8] sm:$0x3]
        %v366 = vld [vmem:[%s341 + $0xc0] sm:$0xff]
        %v367 = vld [vmem:[%s341 + $0xc8] sm:$0xff]
        %v368 = vld [vmem:[%s341 + $0xd0] sm:$0x3]
        %v369 = vld [vmem:[%s341 + $0xd8] sm:$0xff]
        %v370 = vld [vmem:[%s341 + $0xe0] sm:$0xff]
        %v371 = vld [vmem:[%s341 + $0xe8] sm:$0x3]
        %v372 = vld [vmem:[%s1] sm:$0x1]
        %v374 = vlaneseq
        %v375 = vshrl.u32 %v374, 7
        %v376 = vsub.s32 0, %v375
        %v377 = vrot.slane %v372, %v376
        %v379 = vmul.f32 %v342, %v377
        %v380 = vmul.f32 %v343, %v377
        %v381 = vmul.f32 %v344, %v377
        %v382 = vmul.f32 %v345, %v377
        %v383 = vmul.f32 %v346, %v377
        %v384 = vmul.f32 %v347, %v377
        %v385 = vmul.f32 %v348, %v377
        %v386 = vmul.f32 %v349, %v377
        %v387 = vmul.f32 %v350, %v377
        %v388 = vmul.f32 %v351, %v377
        %v389 = vmul.f32 %v352, %v377
        %v390 = vmul.f32 %v353, %v377
        %v391 = vmul.f32 %v354, %v377
        %v392 = vmul.f32 %v355, %v377
        %v393 = vmul.f32 %v356, %v377
        %v394 = vmul.f32 %v357, %v377
        %v395 = vmul.f32 %v358, %v377
        %v396 = vmul.f32 %v359, %v377
        %v397 = vmul.f32 %v360, %v377
        %v398 = vmul.f32 %v361, %v377
        %v399 = vmul.f32 %v362, %v377
        %v400 = vmul.f32 %v363, %v377
        %v401 = vmul.f32 %v364, %v377
        %v402 = vmul.f32 %v365, %v377
        %v403 = vmul.f32 %v366, %v377
        %v404 = vmul.f32 %v367, %v377
        %v405 = vmul.f32 %v368, %v377
        %v406 = vmul.f32 %v369, %v377
        %v407 = vmul.f32 %v370, %v377
        %v408 = vmul.f32 %v371, %v377
        %v409 = vld [vmem:[%s2] sm:$0x1]
        %v411 = vlaneseq
        %v412 = vshrl.u32 %v411, 7
        %v413 = vsub.s32 0, %v412
        %v414 = vrot.slane %v409, %v413
        %v416 = vadd.f32 %v379, %v414
        %v417 = vadd.f32 %v380, %v414
        %v418 = vadd.f32 %v381, %v414
        %v419 = vadd.f32 %v382, %v414
        %v420 = vadd.f32 %v383, %v414
        %v421 = vadd.f32 %v384, %v414
        %v422 = vadd.f32 %v385, %v414
        %v423 = vadd.f32 %v386, %v414
        %v424 = vadd.f32 %v387, %v414
        %v425 = vadd.f32 %v388, %v414
        %v426 = vadd.f32 %v389, %v414
        %v427 = vadd.f32 %v390, %v414
        %v428 = vadd.f32 %v391, %v414
        %v429 = vadd.f32 %v392, %v414
        %v430 = vadd.f32 %v393, %v414
        %v431 = vadd.f32 %v394, %v414
        %v432 = vadd.f32 %v395, %v414
        %v433 = vadd.f32 %v396, %v414
        %v434 = vadd.f32 %v397, %v414
        %v435 = vadd.f32 %v398, %v414
        %v436 = vadd.f32 %v399, %v414
        %v437 = vadd.f32 %v400, %v414
        %v438 = vadd.f32 %v401, %v414
        %v439 = vadd.f32 %v402, %v414
        %v440 = vadd.f32 %v403, %v414
        %v441 = vadd.f32 %v404, %v414
        %v442 = vadd.f32 %v405, %v414
        %v443 = vadd.f32 %v406, %v414
        %v444 = vadd.f32 %v407, %v414
        %v445 = vadd.f32 %v408, %v414
        %v446 = vmax.f32 %v416, 0.0
        %v447 = vmax.f32 %v417, 0.0
        %v448 = vmax.f32 %v418, 0.0
        %v449 = vmax.f32 %v419, 0.0
        %v450 = vmax.f32 %v420, 0.0
        %v451 = vmax.f32 %v421, 0.0
        %v452 = vmax.f32 %v422, 0.0
        %v453 = vmax.f32 %v423, 0.0
        %v454 = vmax.f32 %v424, 0.0
        %v455 = vmax.f32 %v425, 0.0
        %v456 = vmax.f32 %v426, 0.0
        %v457 = vmax.f32 %v427, 0.0
        %v458 = vmax.f32 %v428, 0.0
        %v459 = vmax.f32 %v429, 0.0
        %v460 = vmax.f32 %v430, 0.0
        %v461 = vmax.f32 %v431, 0.0
        %v462 = vmax.f32 %v432, 0.0
        %v463 = vmax.f32 %v433, 0.0
        %v464 = vmax.f32 %v434, 0.0
        %v465 = vmax.f32 %v435, 0.0
        %v466 = vmax.f32 %v436, 0.0
        %v467 = vmax.f32 %v437, 0.0
        %v468 = vmax.f32 %v438, 0.0
        %v469 = vmax.f32 %v439, 0.0
        %v470 = vmax.f32 %v440, 0.0
        %v471 = vmax.f32 %v441, 0.0
        %v472 = vmax.f32 %v442, 0.0
        %v473 = vmax.f32 %v443, 0.0
        %v474 = vmax.f32 %v444, 0.0
        %v475 = vmax.f32 %v445, 0.0
        %v476 = vstv %s339
        %v477 = vadd.s32 %v476, 1
        %v478 = vadd.s32 %v476, 2
        %v479 = vadd.s32 %v476, 3
        %v480 = vadd.s32 %v476, 4
        %v481 = vadd.s32 %v476, 5
        %v482 = vadd.s32 %v476, 6
        %v483 = vadd.s32 %v476, 7
        %v484 = vadd.s32 %v476, 8
        %v485 = vadd.s32 %v476, 9
        %v486 = vlaneseq
        %v487 = vshrl.u32 %v486, 7
        %v488 = vadd.s32 %v487, 8
        %v489 = vadd.s32 %v487, 16
        %vm490 = vcmp.ge.s32.totalorder %v476, 1
        %vm491 = vcmp.ge.s32.totalorder %v477, 1
        %vm492 = vcmp.ge.s32.totalorder %v478, 1
        %vm493 = vcmp.ge.s32.totalorder %v479, 1
        %vm494 = vcmp.ge.s32.totalorder %v480, 1
        %vm495 = vcmp.ge.s32.totalorder %v481, 1
        %vm496 = vcmp.ge.s32.totalorder %v482, 1
        %vm497 = vcmp.ge.s32.totalorder %v483, 1
        %vm498 = vcmp.ge.s32.totalorder %v484, 1
        %vm499 = vcmp.ge.s32.totalorder %v485, 1
        %vm500 = vcmp.le.s32.totalorder %v476, 16
        %vm501 = vcmp.le.s32.totalorder %v477, 16
        %vm502 = vcmp.le.s32.totalorder %v478, 16
        %vm503 = vcmp.le.s32.totalorder %v479, 16
        %vm504 = vcmp.le.s32.totalorder %v480, 16
        %vm505 = vcmp.le.s32.totalorder %v481, 16
        %vm506 = vcmp.le.s32.totalorder %v482, 16
        %vm507 = vcmp.le.s32.totalorder %v483, 16
        %vm508 = vcmp.le.s32.totalorder %v484, 16
        %vm509 = vcmp.le.s32.totalorder %v485, 16
        %vm510 = vmand %vm490, %vm500
        %vm511 = vmand %vm491, %vm501
        %vm512 = vmand %vm492, %vm502
        %vm513 = vmand %vm493, %vm503
        %vm514 = vmand %vm494, %vm504
        %vm515 = vmand %vm495, %vm505
        %vm516 = vmand %vm496, %vm506
        %vm517 = vmand %vm497, %vm507
        %vm518 = vmand %vm498, %vm508
        %vm519 = vmand %vm499, %vm509
        %vm520 = vcmp.ge.s32.totalorder %v487, 1
        %vm521 = vcmp.ge.s32.totalorder %v488, 1
        %vm522 = vcmp.ge.s32.totalorder %v489, 1
        %vm523 = vmand %vm510, %vm520
        %vm524 = vmand %vm510, %vm521
        %vm525 = vmand %vm510, %vm522
        %vm526 = vmand %vm511, %vm520
        %vm527 = vmand %vm511, %vm521
        %vm528 = vmand %vm511, %vm522
        %vm529 = vmand %vm512, %vm520
        %vm530 = vmand %vm512, %vm521
        %vm531 = vmand %vm512, %vm522
        %vm532 = vmand %vm513, %vm520
        %vm533 = vmand %vm513, %vm521
        %vm534 = vmand %vm513, %vm522
        %vm535 = vmand %vm514, %vm520
        %vm536 = vmand %vm514, %vm521
        %vm537 = vmand %vm514, %vm522
        %vm538 = vmand %vm515, %vm520
        %vm539 = vmand %vm515, %vm521
        %vm540 = vmand %vm515, %vm522
        %vm541 = vmand %vm516, %vm520
        %vm542 = vmand %vm516, %vm521
        %vm543 = vmand %vm516, %vm522
        %vm544 = vmand %vm517, %vm520
        %vm545 = vmand %vm517, %vm521
        %vm546 = vmand %vm517, %vm522
        %vm547 = vmand %vm518, %vm520
        %vm548 = vmand %vm518, %vm521
        %vm549 = vmand %vm518, %vm522
        %vm550 = vmand %vm519, %vm520
        %vm551 = vmand %vm519, %vm521
        %vm552 = vmand %vm519, %vm522
        %vm553 = vcmp.le.s32.totalorder %v487, 16
        %vm554 = vcmp.le.s32.totalorder %v488, 16
        %vm555 = vcmp.le.s32.totalorder %v489, 16
        %vm556 = vmand %vm523, %vm553
        %vm557 = vmand %vm524, %vm554
        %vm558 = vmand %vm525, %vm555
        %vm559 = vmand %vm526, %vm553
        %vm560 = vmand %vm527, %vm554
        %vm561 = vmand %vm528, %vm555
        %vm562 = vmand %vm529, %vm553
        %vm563 = vmand %vm530, %vm554
        %vm564 = vmand %vm531, %vm555
        %vm565 = vmand %vm532, %vm553
        %vm566 = vmand %vm533, %vm554
        %vm567 = vmand %vm534, %vm555
        %vm568 = vmand %vm535, %vm553
        %vm569 = vmand %vm536, %vm554
        %vm570 = vmand %vm537, %vm555
        %vm571 = vmand %vm538, %vm553
        %vm572 = vmand %vm539, %vm554
        %vm573 = vmand %vm540, %vm555
        %vm574 = vmand %vm541, %vm553
        %vm575 = vmand %vm542, %vm554
        %vm576 = vmand %vm543, %vm555
        %vm577 = vmand %vm544, %vm553
        %vm578 = vmand %vm545, %vm554
        %vm579 = vmand %vm546, %vm555
        %vm580 = vmand %vm547, %vm553
        %vm581 = vmand %vm548, %vm554
        %vm582 = vmand %vm549, %vm555
        %vm583 = vmand %vm550, %vm553
        %vm584 = vmand %vm551, %vm554
        %vm585 = vmand %vm552, %vm555
        %v586 = vsel %vm556, %v446, 0.0
        %v587 = vsel %vm557, %v447, 0.0
        %v588 = vsel %vm558, %v448, 0.0
        %v589 = vsel %vm559, %v449, 0.0
        %v590 = vsel %vm560, %v450, 0.0
        %v591 = vsel %vm561, %v451, 0.0
        %v592 = vsel %vm562, %v452, 0.0
        %v593 = vsel %vm563, %v453, 0.0
        %v594 = vsel %vm564, %v454, 0.0
        %v595 = vsel %vm565, %v455, 0.0
        %v596 = vsel %vm566, %v456, 0.0
        %v597 = vsel %vm567, %v457, 0.0
        %v598 = vsel %vm568, %v458, 0.0
        %v599 = vsel %vm569, %v459, 0.0
        %v600 = vsel %vm570, %v460, 0.0
        %v601 = vsel %vm571, %v461, 0.0
        %v602 = vsel %vm572, %v462, 0.0
        %v603 = vsel %vm573, %v463, 0.0
        %v604 = vsel %vm574, %v464, 0.0
        %v605 = vsel %vm575, %v465, 0.0
        %v606 = vsel %vm576, %v466, 0.0
        %v607 = vsel %vm577, %v467, 0.0
        %v608 = vsel %vm578, %v468, 0.0
        %v609 = vsel %vm579, %v469, 0.0
        %v610 = vsel %vm580, %v470, 0.0
        %v611 = vsel %vm581, %v471, 0.0
        %v612 = vsel %vm582, %v472, 0.0
        %v613 = vsel %vm583, %v473, 0.0
        %v614 = vsel %vm584, %v474, 0.0
        %v615 = vsel %vm585, %v475, 0.0
        %vm640 = vcmask 1046528
        %v641 = vrot.slane %v586, 1
        %v642 = vrot.slane %v587, 1
        %v643 = vsel %vm640, %v641, %v642
        %v644 = vrot.slane %v588, 1
        %v645 = vsel %vm640, %v642, %v644
        %v646 = vrot.slane %v589, 1
        %v647 = vrot.slane %v590, 1
        %v648 = vsel %vm640, %v646, %v647
        %v649 = vrot.slane %v591, 1
        %v650 = vsel %vm640, %v647, %v649
        %v651 = vrot.slane %v592, 1
        %v652 = vrot.slane %v593, 1
        %v653 = vsel %vm640, %v651, %v652
        %v654 = vrot.slane %v594, 1
        %v655 = vsel %vm640, %v652, %v654
        %v656 = vrot.slane %v595, 1
        %v657 = vrot.slane %v596, 1
        %v658 = vsel %vm640, %v656, %v657
        %v659 = vrot.slane %v597, 1
        %v660 = vsel %vm640, %v657, %v659
        %v661 = vrot.slane %v598, 1
        %v662 = vrot.slane %v599, 1
        %v663 = vsel %vm640, %v661, %v662
        %v664 = vrot.slane %v600, 1
        %v665 = vsel %vm640, %v662, %v664
        %v666 = vrot.slane %v601, 1
        %v667 = vrot.slane %v602, 1
        %v668 = vsel %vm640, %v666, %v667
        %v669 = vrot.slane %v603, 1
        %v670 = vsel %vm640, %v667, %v669
        %v671 = vrot.slane %v604, 1
        %v672 = vrot.slane %v605, 1
        %v673 = vsel %vm640, %v671, %v672
        %v674 = vrot.slane %v606, 1
        %v675 = vsel %vm640, %v672, %v674
        %v676 = vrot.slane %v607, 1
        %v677 = vrot.slane %v608, 1
        %v678 = vsel %vm640, %v676, %v677
        %v679 = vrot.slane %v609, 1
        %v680 = vsel %vm640, %v677, %v679
        %vm697 = vcmask 1045504
        %v698 = vrot.slane %v586, 2
        %v699 = vrot.slane %v587, 2
        %v700 = vsel %vm697, %v698, %v699
        %v701 = vrot.slane %v588, 2
        %v702 = vsel %vm697, %v699, %v701
        %v703 = vrot.slane %v589, 2
        %v704 = vrot.slane %v590, 2
        %v705 = vsel %vm697, %v703, %v704
        %v706 = vrot.slane %v591, 2
        %v707 = vsel %vm697, %v704, %v706
        %v708 = vrot.slane %v592, 2
        %v709 = vrot.slane %v593, 2
        %v710 = vsel %vm697, %v708, %v709
        %v711 = vrot.slane %v594, 2
        %v712 = vsel %vm697, %v709, %v711
        %v713 = vrot.slane %v595, 2
        %v714 = vrot.slane %v596, 2
        %v715 = vsel %vm697, %v713, %v714
        %v716 = vrot.slane %v597, 2
        %v717 = vsel %vm697, %v714, %v716
        %v718 = vrot.slane %v598, 2
        %v719 = vrot.slane %v599, 2
        %v720 = vsel %vm697, %v718, %v719
        %v721 = vrot.slane %v600, 2
        %v722 = vsel %vm697, %v719, %v721
        %v723 = vrot.slane %v601, 2
        %v724 = vrot.slane %v602, 2
        %v725 = vsel %vm697, %v723, %v724
        %v726 = vrot.slane %v603, 2
        %v727 = vsel %vm697, %v724, %v726
        %v728 = vrot.slane %v604, 2
        %v729 = vrot.slane %v605, 2
        %v730 = vsel %vm697, %v728, %v729
        %v731 = vrot.slane %v606, 2
        %v732 = vsel %vm697, %v729, %v731
        %v733 = vrot.slane %v607, 2
        %v734 = vrot.slane %v608, 2
        %v735 = vsel %vm697, %v733, %v734
        %v736 = vrot.slane %v609, 2
        %v737 = vsel %vm697, %v734, %v736
        %v757 = vrot.slane %v610, 1
        %v758 = vrot.slane %v611, 1
        %v759 = vsel %vm640, %v757, %v758
        %v760 = vrot.slane %v612, 1
        %v761 = vsel %vm640, %v758, %v760
        %v764 = vrot.slane %v610, 2
        %v765 = vrot.slane %v611, 2
        %v766 = vsel %vm697, %v764, %v765
        %v767 = vrot.slane %v612, 2
        %v768 = vsel %vm697, %v765, %v767
        %v774 = vrot.slane %v613, 1
        %v775 = vrot.slane %v614, 1
        %v776 = vsel %vm640, %v774, %v775
        %v777 = vrot.slane %v615, 1
        %v778 = vsel %vm640, %v775, %v777
        %v781 = vrot.slane %v613, 2
        %v782 = vrot.slane %v614, 2
        %v783 = vsel %vm697, %v781, %v782
        %v784 = vrot.slane %v615, 2
        %v785 = vsel %vm697, %v782, %v784
        %v788 = vld [vmem:[%s3] sm:$0xff]
        %v789 = vld [vmem:[%s3 + $0x8] sm:$0xff]
        %v790 = vld [vmem:[%s3 + $0x10] sm:$0xff]
        %v791 = vld [vmem:[%s3 + $0x18] sm:$0xff]
        %v792 = vld [vmem:[%s3 + $0x20] sm:$0xff]
        %v793 = vld [vmem:[%s3 + $0x28] sm:$0xff]
        %v794 = vld [vmem:[%s3 + $0x30] sm:$0xff]
        %v795 = vld [vmem:[%s3 + $0x38] sm:$0xff]
        %v796 = vld [vmem:[%s3 + $0x40] sm:$0xff]
        %v797 = vld [vmem:[%s3 + $0x48] sm:$0xff]
        %v798 = vld [vmem:[%s3 + $0x50] sm:$0xff]
        %v799 = vld [vmem:[%s3 + $0x58] sm:$0xff]
        %v800 = vld [vmem:[%s3 + $0x60] sm:$0xff]
        %v801 = vld [vmem:[%s3 + $0x68] sm:$0xff]
        %v802 = vld [vmem:[%s3 + $0x70] sm:$0xff]
        %v803 = vld [vmem:[%s3 + $0x78] sm:$0xff]
        %v804 = vld [vmem:[%s3 + $0x80] sm:$0xff]
        %v805 = vld [vmem:[%s3 + $0x88] sm:$0xff]
        %v806 = vld [vmem:[%s3 + $0x90] sm:$0xff]
        %v807 = vld [vmem:[%s3 + $0x98] sm:$0xff]
        %v808 = vld [vmem:[%s3 + $0xa0] sm:$0xff]
        %v809 = vld [vmem:[%s3 + $0xa8] sm:$0xff]
        %v810 = vld [vmem:[%s3 + $0xb0] sm:$0xff]
        %v811 = vld [vmem:[%s3 + $0xb8] sm:$0xff]
        %v812 = vld [vmem:[%s3 + $0xc0] sm:$0xff]
        %v813 = vld [vmem:[%s3 + $0xc8] sm:$0xff]
        %v814 = vld [vmem:[%s3 + $0xd0] sm:$0xff]
        %v815 = vld [vmem:[%s3 + $0xd8] sm:$0xff]
        %v816 = vld [vmem:[%s3 + $0xe0] sm:$0xff]
        %v817 = vld [vmem:[%s3 + $0xe8] sm:$0xff]
        %v818 = vld [vmem:[%s3 + $0xf0] sm:$0xff]
        %v819 = vld [vmem:[%s3 + $0xf8] sm:$0xff]
        %v820 = vld [vmem:[%s3 + $0x100] sm:$0xff]
        %v821 = vld [vmem:[%s3 + $0x108] sm:$0xff]
        %v822 = vld [vmem:[%s3 + $0x110] sm:$0xff]
        %v823 = vld [vmem:[%s3 + $0x118] sm:$0xff]
        %v824 = vld [vmem:[%s3 + $0x120] sm:$0xff]
        %v825 = vld [vmem:[%s3 + $0x128] sm:$0xff]
        %v826 = vld [vmem:[%s3 + $0x130] sm:$0xff]
        %v827 = vld [vmem:[%s3 + $0x138] sm:$0xff]
        %v828 = vld [vmem:[%s3 + $0x140] sm:$0xff]
        %v829 = vld [vmem:[%s3 + $0x148] sm:$0xff]
        %v830 = vld [vmem:[%s3 + $0x150] sm:$0xff]
        %v831 = vld [vmem:[%s3 + $0x158] sm:$0xff]
        %v832 = vld [vmem:[%s3 + $0x160] sm:$0xff]
        %v833 = vld [vmem:[%s3 + $0x168] sm:$0xff]
        %v834 = vld [vmem:[%s3 + $0x170] sm:$0xff]
        %v835 = vld [vmem:[%s3 + $0x178] sm:$0xff]
        %v836 = vld [vmem:[%s3 + $0x180] sm:$0xff]
        %v837 = vld [vmem:[%s3 + $0x188] sm:$0xff]
        %v838 = vld [vmem:[%s3 + $0x190] sm:$0xff]
        %v839 = vld [vmem:[%s3 + $0x198] sm:$0xff]
        %v840 = vld [vmem:[%s3 + $0x1a0] sm:$0xff]
        %v841 = vld [vmem:[%s3 + $0x1a8] sm:$0xff]
        %v842 = vld [vmem:[%s3 + $0x1b0] sm:$0xff]
        %v843 = vld [vmem:[%s3 + $0x1b8] sm:$0xff]
        %v844 = vld [vmem:[%s3 + $0x1c0] sm:$0xff]
        %v845 = vld [vmem:[%s3 + $0x1c8] sm:$0xff]
        %v846 = vld [vmem:[%s3 + $0x1d0] sm:$0xff]
        %v847 = vld [vmem:[%s3 + $0x1d8] sm:$0xff]
        %v848 = vld [vmem:[%s3 + $0x1e0] sm:$0xff]
        %v849 = vld [vmem:[%s3 + $0x1e8] sm:$0xff]
        %v850 = vld [vmem:[%s3 + $0x1f0] sm:$0xff]
        %v851 = vld [vmem:[%s3 + $0x1f8] sm:$0xff]
        %v852 = vld [vmem:[%s3 + $0x200] sm:$0xff]
        %v853 = vld [vmem:[%s3 + $0x208] sm:$0xff]
        %v854 = vld [vmem:[%s3 + $0x210] sm:$0xff]
        %v855 = vld [vmem:[%s3 + $0x218] sm:$0xff]
        %v856 = vld [vmem:[%s3 + $0x220] sm:$0xff]
        %v857 = vld [vmem:[%s3 + $0x228] sm:$0xff]
        %v858 = vld [vmem:[%s3 + $0x230] sm:$0xff]
        %v859 = vld [vmem:[%s3 + $0x238] sm:$0xff]
        %v860 = vld [vmem:[%s3 + $0x240] sm:$0xff]
        %v861 = vld [vmem:[%s3 + $0x248] sm:$0xff]
        %v862 = vld [vmem:[%s3 + $0x250] sm:$0xff]
        %v863 = vld [vmem:[%s3 + $0x258] sm:$0xff]
        %v864 = vld [vmem:[%s3 + $0x260] sm:$0xff]
        %v865 = vld [vmem:[%s3 + $0x268] sm:$0xff]
        %v866 = vld [vmem:[%s3 + $0x270] sm:$0xff]
        %v867 = vld [vmem:[%s3 + $0x278] sm:$0xff]
        %v868 = vld [vmem:[%s3 + $0x280] sm:$0xff]
        %v869 = vld [vmem:[%s3 + $0x288] sm:$0xff]
        %v870 = vld [vmem:[%s3 + $0x290] sm:$0xff]
        %v871 = vld [vmem:[%s3 + $0x298] sm:$0xff]
        %v872 = vld [vmem:[%s3 + $0x2a0] sm:$0xff]
        %v873 = vld [vmem:[%s3 + $0x2a8] sm:$0xff]
        %v874 = vld [vmem:[%s3 + $0x2b0] sm:$0xff]
        %v875 = vld [vmem:[%s3 + $0x2b8] sm:$0xff]
        %v876 = vld [vmem:[%s3 + $0x2c0] sm:$0xff]
        %v877 = vld [vmem:[%s3 + $0x2c8] sm:$0xff]
        %v878 = vld [vmem:[%s3 + $0x2d0] sm:$0xff]
        %v879 = vld [vmem:[%s3 + $0x2d8] sm:$0xff]
        %v880 = vld [vmem:[%s3 + $0x2e0] sm:$0xff]
        %v881 = vld [vmem:[%s3 + $0x2e8] sm:$0xff]
        %v882 = vld [vmem:[%s3 + $0x2f0] sm:$0xff]
        %v883 = vld [vmem:[%s3 + $0x2f8] sm:$0xff]
        %v884 = vld [vmem:[%s3 + $0x300] sm:$0xff]
        %v885 = vld [vmem:[%s3 + $0x308] sm:$0xff]
        %v886 = vld [vmem:[%s3 + $0x310] sm:$0xff]
        %v887 = vld [vmem:[%s3 + $0x318] sm:$0xff]
        %v888 = vld [vmem:[%s3 + $0x320] sm:$0xff]
        %v889 = vld [vmem:[%s3 + $0x328] sm:$0xff]
        %v890 = vld [vmem:[%s3 + $0x330] sm:$0xff]
        %v891 = vld [vmem:[%s3 + $0x338] sm:$0xff]
        %v892 = vld [vmem:[%s3 + $0x340] sm:$0xff]
        %v893 = vld [vmem:[%s3 + $0x348] sm:$0xff]
        %v894 = vld [vmem:[%s3 + $0x350] sm:$0xff]
        %v895 = vld [vmem:[%s3 + $0x358] sm:$0xff]
        %v896 = vld [vmem:[%s3 + $0x360] sm:$0xff]
        %v897 = vld [vmem:[%s3 + $0x368] sm:$0xff]
        %v898 = vld [vmem:[%s3 + $0x370] sm:$0xff]
        %v899 = vld [vmem:[%s3 + $0x378] sm:$0xff]
        %v900 = vld [vmem:[%s3 + $0x380] sm:$0xff]
        %v901 = vld [vmem:[%s3 + $0x388] sm:$0xff]
        %v902 = vld [vmem:[%s3 + $0x390] sm:$0xff]
        %v903 = vld [vmem:[%s3 + $0x398] sm:$0xff]
        %v904 = vld [vmem:[%s3 + $0x3a0] sm:$0xff]
        %v905 = vld [vmem:[%s3 + $0x3a8] sm:$0xff]
        %v906 = vld [vmem:[%s3 + $0x3b0] sm:$0xff]
        %v907 = vld [vmem:[%s3 + $0x3b8] sm:$0xff]
        %v908 = vld [vmem:[%s3 + $0x3c0] sm:$0xff]
        %v909 = vld [vmem:[%s3 + $0x3c8] sm:$0xff]
        %v910 = vld [vmem:[%s3 + $0x3d0] sm:$0xff]
        %v911 = vld [vmem:[%s3 + $0x3d8] sm:$0xff]
        %v912 = vld [vmem:[%s3 + $0x3e0] sm:$0xff]
        %v913 = vld [vmem:[%s3 + $0x3e8] sm:$0xff]
        %v914 = vld [vmem:[%s3 + $0x3f0] sm:$0xff]
        %v915 = vld [vmem:[%s3 + $0x3f8] sm:$0xff]
        %v916 = vld [vmem:[%s3 + $0x400] sm:$0xff]
        %v917 = vld [vmem:[%s3 + $0x408] sm:$0xff]
        %v918 = vld [vmem:[%s3 + $0x410] sm:$0xff]
        %v919 = vld [vmem:[%s3 + $0x418] sm:$0xff]
        %v920 = vld [vmem:[%s3 + $0x420] sm:$0xff]
        %v921 = vld [vmem:[%s3 + $0x428] sm:$0xff]
        %v922 = vld [vmem:[%s3 + $0x430] sm:$0xff]
        %v923 = vld [vmem:[%s3 + $0x438] sm:$0xff]
        %v924 = vld [vmem:[%s3 + $0x440] sm:$0xff]
        %v925 = vld [vmem:[%s3 + $0x448] sm:$0xff]
        %v926 = vld [vmem:[%s3 + $0x450] sm:$0xff]
        %v927 = vld [vmem:[%s3 + $0x458] sm:$0xff]
        %v928 = vld [vmem:[%s3 + $0x460] sm:$0xff]
        %v929 = vld [vmem:[%s3 + $0x468] sm:$0xff]
        %v930 = vld [vmem:[%s3 + $0x470] sm:$0xff]
        %v931 = vld [vmem:[%s3 + $0x478] sm:$0xff]
        %v932 = vld [vmem:[%s4] sm:$0x1]
        %v934 = vlaneseq
        %v935 = vshrl.u32 %v934, 7
        %v936 = vsub.s32 0, %v935
        %v937 = vrot.slane %v932, %v936
        %939 = vmatprep.subr.mxu0 0.0
        %940 = vmatpush1.msra.mxu0 %v803
        %941 = vmatprep.subr.mxu0 0.0
        %942 = vmatpush1.msra.mxu0 %v802
        %943 = vmatprep.subr.mxu0 0.0
        %944 = vmatpush1.msra.mxu0 %v801
        %945 = vmatprep.subr.mxu0 0.0
        %946 = vmatpush1.msra.mxu0 %v800
        %947 = vmatprep.subr.mxu0 0.0
        %948 = vmatpush1.msra.mxu0 %v799
        %949 = vmatprep.subr.mxu0 0.0
        %950 = vmatpush1.msra.mxu0 %v798
        %951 = vmatprep.subr.mxu0 0.0
        %952 = vmatpush1.msra.mxu0 %v797
        %953 = vmatprep.subr.mxu0 0.0
        %954 = vmatpush1.msra.mxu0 %v796
        %955 = vmatprep.subr.mxu0 0.0
        %956 = vmatpush1.msra.mxu0 %v795
        %957 = vmatprep.subr.mxu0 0.0
        %958 = vmatpush1.msra.mxu0 %v794
        %959 = vmatprep.subr.mxu0 0.0
        %960 = vmatpush1.msra.mxu0 %v793
        %961 = vmatprep.subr.mxu0 0.0
        %962 = vmatpush1.msra.mxu0 %v792
        %963 = vmatprep.subr.mxu0 0.0
        %964 = vmatpush1.msra.mxu0 %v791
        %965 = vmatprep.subr.mxu0 0.0
        %966 = vmatpush1.msra.mxu0 %v790
        %967 = vmatprep.subr.mxu0 0.0
        %968 = vmatpush1.msra.mxu0 %v789
        %969 = vmatprep.subr.mxu0 0.0
        %970 = vmatpush1.msra.mxu0 %v788
        %971 = vmatprep.subr.mxu0 0.0
        %972 = vmatpush2.msra.mxu0 %v819
        %973 = vmatprep.subr.mxu0 0.0
        %974 = vmatpush2.msra.mxu0 %v818
        %975 = vmatprep.subr.mxu0 0.0
        %976 = vmatpush2.msra.mxu0 %v817
        %977 = vmatprep.subr.mxu0 0.0
        %978 = vmatpush2.msra.mxu0 %v816
        %979 = vmatprep.subr.mxu0 0.0
        %980 = vmatpush2.msra.mxu0 %v815
        %981 = vmatprep.subr.mxu0 0.0
        %982 = vmatpush2.msra.mxu0 %v814
        %983 = vmatprep.subr.mxu0 0.0
        %984 = vmatpush2.msra.mxu0 %v813
        %985 = vmatprep.subr.mxu0 0.0
        %986 = vmatpush2.msra.mxu0 %v812
        %987 = vmatprep.subr.mxu0 0.0
        %988 = vmatpush2.msra.mxu0 %v811
        %989 = vmatprep.subr.mxu0 0.0
        %990 = vmatpush2.msra.mxu0 %v810
        %991 = vmatprep.subr.mxu0 0.0
        %992 = vmatpush2.msra.mxu0 %v809
        %993 = vmatprep.subr.mxu0 0.0
        %994 = vmatpush2.msra.mxu0 %v808
        %995 = vmatprep.subr.mxu0 0.0
        %996 = vmatpush2.msra.mxu0 %v807
        %997 = vmatprep.subr.mxu0 0.0
        %998 = vmatpush2.msra.mxu0 %v806
        %999 = vmatprep.subr.mxu0 0.0
        %1000 = vmatpush2.msra.mxu0 %v805
        %1001 = vmatprep.subr.mxu0 0.0
        %1002 = vmatpush2.msra.mxu0 %v804
        %1003 = vmatprep.mubr.f32.mxu0 %v643
        %1004 = vmatmul.mubr.f32.gmra.mxu0 %v586
        %v1005 = vpop.f32.mrf.mxu0
        %v1006 = vadd.f32 %v937, %v1005
        %v1007 = vpop.f32.mrf.mxu0
        %1008 = vmatprep.mubr.f32.mxu0 %v645
        %1009 = vmatmul.mubr.f32.gmra.mxu0 %v587
        %v1010 = vpop.f32.mrf.mxu0
        %v1011 = vadd.f32 %v937, %v1010
        %v1012 = vpop.f32.mrf.mxu0
        %1013 = vmatprep.mubr.f32.mxu0 %v648
        %1014 = vmatmul.mubr.f32.gmra.mxu0 %v589
        %v1015 = vpop.f32.mrf.mxu0
        %v1016 = vadd.f32 %v937, %v1015
        %v1017 = vpop.f32.mrf.mxu0
        %1018 = vmatprep.mubr.f32.mxu0 %v650
        %1019 = vmatmul.mubr.f32.gmra.mxu0 %v590
        %v1020 = vpop.f32.mrf.mxu0
        %v1021 = vadd.f32 %v937, %v1020
        %v1022 = vpop.f32.mrf.mxu0
        %1023 = vmatprep.mubr.f32.mxu0 %v653
        %1024 = vmatmul.mubr.f32.gmra.mxu0 %v592
        %v1025 = vpop.f32.mrf.mxu0
        %v1026 = vadd.f32 %v937, %v1025
        %v1027 = vpop.f32.mrf.mxu0
        %1028 = vmatprep.mubr.f32.mxu0 %v655
        %1029 = vmatmul.mubr.f32.gmra.mxu0 %v593
        %v1030 = vpop.f32.mrf.mxu0
        %v1031 = vadd.f32 %v937, %v1030
        %v1032 = vpop.f32.mrf.mxu0
        %1033 = vmatprep.mubr.f32.mxu0 %v658
        %1034 = vmatmul.mubr.f32.gmra.mxu0 %v595
        %v1035 = vpop.f32.mrf.mxu0
        %v1036 = vadd.f32 %v937, %v1035
        %v1037 = vpop.f32.mrf.mxu0
        %1038 = vmatprep.mubr.f32.mxu0 %v660
        %1039 = vmatmul.mubr.f32.gmra.mxu0 %v596
        %v1040 = vpop.f32.mrf.mxu0
        %v1041 = vadd.f32 %v937, %v1040
        %v1042 = vpop.f32.mrf.mxu0
        %1043 = vmatprep.mubr.f32.mxu0 %v663
        %1044 = vmatmul.mubr.f32.gmra.mxu0 %v598
        %v1045 = vpop.f32.mrf.mxu0
        %v1046 = vadd.f32 %v937, %v1045
        %v1047 = vpop.f32.mrf.mxu0
        %1048 = vmatprep.mubr.f32.mxu0 %v665
        %1049 = vmatmul.mubr.f32.gmra.mxu0 %v599
        %v1050 = vpop.f32.mrf.mxu0
        %v1051 = vadd.f32 %v937, %v1050
        %v1052 = vpop.f32.mrf.mxu0
        %1053 = vmatprep.mubr.f32.mxu0 %v668
        %1054 = vmatmul.mubr.f32.gmra.mxu0 %v601
        %v1055 = vpop.f32.mrf.mxu0
        %v1056 = vadd.f32 %v937, %v1055
        %v1057 = vpop.f32.mrf.mxu0
        %1058 = vmatprep.mubr.f32.mxu0 %v670
        %1059 = vmatmul.mubr.f32.gmra.mxu0 %v602
        %v1060 = vpop.f32.mrf.mxu0
        %v1061 = vadd.f32 %v937, %v1060
        %v1062 = vpop.f32.mrf.mxu0
        %1063 = vmatprep.mubr.f32.mxu0 %v673
        %1064 = vmatmul.mubr.f32.gmra.mxu0 %v604
        %v1065 = vpop.f32.mrf.mxu0
        %v1066 = vadd.f32 %v937, %v1065
        %v1067 = vpop.f32.mrf.mxu0
        %1068 = vmatprep.mubr.f32.mxu0 %v675
        %1069 = vmatmul.mubr.f32.gmra.mxu0 %v605
        %v1070 = vpop.f32.mrf.mxu0
        %v1071 = vadd.f32 %v937, %v1070
        %v1072 = vpop.f32.mrf.mxu0
        %1073 = vmatprep.mubr.f32.mxu0 %v678
        %1074 = vmatmul.mubr.f32.gmra.mxu0 %v607
        %v1075 = vpop.f32.mrf.mxu0
        %v1076 = vadd.f32 %v937, %v1075
        %v1077 = vpop.f32.mrf.mxu0
        %1078 = vmatprep.mubr.f32.mxu0 %v680
        %1079 = vmatmul.mubr.f32.gmra.mxu0 %v608
        %v1080 = vpop.f32.mrf.mxu0
        %v1081 = vadd.f32 %v937, %v1080
        %v1082 = vpop.f32.mrf.mxu0
        %1083 = vdwg.mxu0
        %1084 = vmatprep.subr.mxu0 0.0
        %1085 = vmatpush1.msra.mxu0 %v835
        %1086 = vmatprep.subr.mxu0 0.0
        %1087 = vmatpush1.msra.mxu0 %v834
        %1088 = vmatprep.subr.mxu0 0.0
        %1089 = vmatpush1.msra.mxu0 %v833
        %1090 = vmatprep.subr.mxu0 0.0
        %1091 = vmatpush1.msra.mxu0 %v832
        %1092 = vmatprep.subr.mxu0 0.0
        %1093 = vmatpush1.msra.mxu0 %v831
        %1094 = vmatprep.subr.mxu0 0.0
        %1095 = vmatpush1.msra.mxu0 %v830
        %1096 = vmatprep.subr.mxu0 0.0
        %1097 = vmatpush1.msra.mxu0 %v829
        %1098 = vmatprep.subr.mxu0 0.0
        %1099 = vmatpush1.msra.mxu0 %v828
        %1100 = vmatprep.subr.mxu0 0.0
        %1101 = vmatpush1.msra.mxu0 %v827
        %1102 = vmatprep.subr.mxu0 0.0
        %1103 = vmatpush1.msra.mxu0 %v826
        %1104 = vmatprep.subr.mxu0 0.0
        %1105 = vmatpush1.msra.mxu0 %v825
        %1106 = vmatprep.subr.mxu0 0.0
        %1107 = vmatpush1.msra.mxu0 %v824
        %1108 = vmatprep.subr.mxu0 0.0
        %1109 = vmatpush1.msra.mxu0 %v823
        %1110 = vmatprep.subr.mxu0 0.0
        %1111 = vmatpush1.msra.mxu0 %v822
        %1112 = vmatprep.subr.mxu0 0.0
        %1113 = vmatpush1.msra.mxu0 %v821
        %1114 = vmatprep.subr.mxu0 0.0
        %1115 = vmatpush1.msra.mxu0 %v820
        %1116 = vmatprep.subr.mxu0 0.0
        %1117 = vmatpush2.msra.mxu0 %v851
        %1118 = vmatprep.subr.mxu0 0.0
        %1119 = vmatpush2.msra.mxu0 %v850
        %1120 = vmatprep.subr.mxu0 0.0
        %1121 = vmatpush2.msra.mxu0 %v849
        %1122 = vmatprep.subr.mxu0 0.0
        %1123 = vmatpush2.msra.mxu0 %v848
        %1124 = vmatprep.subr.mxu0 0.0
        %1125 = vmatpush2.msra.mxu0 %v847
        %1126 = vmatprep.subr.mxu0 0.0
        %1127 = vmatpush2.msra.mxu0 %v846
        %1128 = vmatprep.subr.mxu0 0.0
        %1129 = vmatpush2.msra.mxu0 %v845
        %1130 = vmatprep.subr.mxu0 0.0
        %1131 = vmatpush2.msra.mxu0 %v844
        %1132 = vmatprep.subr.mxu0 0.0
        %1133 = vmatpush2.msra.mxu0 %v843
        %1134 = vmatprep.subr.mxu0 0.0
        %1135 = vmatpush2.msra.mxu0 %v842
        %1136 = vmatprep.subr.mxu0 0.0
        %1137 = vmatpush2.msra.mxu0 %v841
        %1138 = vmatprep.subr.mxu0 0.0
        %1139 = vmatpush2.msra.mxu0 %v840
        %1140 = vmatprep.subr.mxu0 0.0
        %1141 = vmatpush2.msra.mxu0 %v839
        %1142 = vmatprep.subr.mxu0 0.0
        %1143 = vmatpush2.msra.mxu0 %v838
        %1144 = vmatprep.subr.mxu0 0.0
        %1145 = vmatpush2.msra.mxu0 %v837
        %1146 = vmatprep.subr.mxu0 0.0
        %1147 = vmatpush2.msra.mxu0 %v836
        %1148 = vmatprep.mubr.f32.mxu0 %v589
        %1149 = vmatmul.mubr.f32.gmra.mxu0 %v700
        %v1150 = vpop.f32.mrf.mxu0
        %v1151 = vadd.f32 %v1006, %v1150
        %v1152 = vpop.f32.mrf.mxu0
        %1153 = vmatprep.mubr.f32.mxu0 %v590
        %1154 = vmatmul.mubr.f32.gmra.mxu0 %v702
        %v1155 = vpop.f32.mrf.mxu0
        %v1156 = vadd.f32 %v1011, %v1155
        %v1157 = vpop.f32.mrf.mxu0
        %1158 = vmatprep.mubr.f32.mxu0 %v592
        %1159 = vmatmul.mubr.f32.gmra.mxu0 %v705
        %v1160 = vpop.f32.mrf.mxu0
        %v1161 = vadd.f32 %v1016, %v1160
        %v1162 = vpop.f32.mrf.mxu0
        %1163 = vmatprep.mubr.f32.mxu0 %v593
        %1164 = vmatmul.mubr.f32.gmra.mxu0 %v707
        %v1165 = vpop.f32.mrf.mxu0
        %v1166 = vadd.f32 %v1021, %v1165
        %v1167 = vpop.f32.mrf.mxu0
        %1168 = vmatprep.mubr.f32.mxu0 %v595
        %1169 = vmatmul.mubr.f32.gmra.mxu0 %v710
        %v1170 = vpop.f32.mrf.mxu0
        %v1171 = vadd.f32 %v1026, %v1170
        %v1172 = vpop.f32.mrf.mxu0
        %1173 = vmatprep.mubr.f32.mxu0 %v596
        %1174 = vmatmul.mubr.f32.gmra.mxu0 %v712
        %v1175 = vpop.f32.mrf.mxu0
        %v1176 = vadd.f32 %v1031, %v1175
        %v1177 = vpop.f32.mrf.mxu0
        %1178 = vmatprep.mubr.f32.mxu0 %v598
        %1179 = vmatmul.mubr.f32.gmra.mxu0 %v715
        %v1180 = vpop.f32.mrf.mxu0
        %v1181 = vadd.f32 %v1036, %v1180
        %v1182 = vpop.f32.mrf.mxu0
        %1183 = vmatprep.mubr.f32.mxu0 %v599
        %1184 = vmatmul.mubr.f32.gmra.mxu0 %v717
        %v1185 = vpop.f32.mrf.mxu0
        %v1186 = vadd.f32 %v1041, %v1185
        %v1187 = vpop.f32.mrf.mxu0
        %1188 = vmatprep.mubr.f32.mxu0 %v601
        %1189 = vmatmul.mubr.f32.gmra.mxu0 %v720
        %v1190 = vpop.f32.mrf.mxu0
        %v1191 = vadd.f32 %v1046, %v1190
        %v1192 = vpop.f32.mrf.mxu0
        %1193 = vmatprep.mubr.f32.mxu0 %v602
        %1194 = vmatmul.mubr.f32.gmra.mxu0 %v722
        %v1195 = vpop.f32.mrf.mxu0
        %v1196 = vadd.f32 %v1051, %v1195
        %v1197 = vpop.f32.mrf.mxu0
        %1198 = vmatprep.mubr.f32.mxu0 %v604
        %1199 = vmatmul.mubr.f32.gmra.mxu0 %v725
        %v1200 = vpop.f32.mrf.mxu0
        %v1201 = vadd.f32 %v1056, %v1200
        %v1202 = vpop.f32.mrf.mxu0
        %1203 = vmatprep.mubr.f32.mxu0 %v605
        %1204 = vmatmul.mubr.f32.gmra.mxu0 %v727
        %v1205 = vpop.f32.mrf.mxu0
        %v1206 = vadd.f32 %v1061, %v1205
        %v1207 = vpop.f32.mrf.mxu0
        %1208 = vmatprep.mubr.f32.mxu0 %v607
        %1209 = vmatmul.mubr.f32.gmra.mxu0 %v730
        %v1210 = vpop.f32.mrf.mxu0
        %v1211 = vadd.f32 %v1066, %v1210
        %v1212 = vpop.f32.mrf.mxu0
        %1213 = vmatprep.mubr.f32.mxu0 %v608
        %1214 = vmatmul.mubr.f32.gmra.mxu0 %v732
        %v1215 = vpop.f32.mrf.mxu0
        %v1216 = vadd.f32 %v1071, %v1215
        %v1217 = vpop.f32.mrf.mxu0
        %1218 = vmatprep.mubr.f32.mxu0 %v610
        %1219 = vmatmul.mubr.f32.gmra.mxu0 %v735
        %v1220 = vpop.f32.mrf.mxu0
        %v1221 = vadd.f32 %v1076, %v1220
        %v1222 = vpop.f32.mrf.mxu0
        %1223 = vmatprep.mubr.f32.mxu0 %v611
        %1224 = vmatmul.mubr.f32.gmra.mxu0 %v737
        %v1225 = vpop.f32.mrf.mxu0
        %v1226 = vadd.f32 %v1081, %v1225
        %v1227 = vpop.f32.mrf.mxu0
        %1228 = vdwg.mxu0
        %1229 = vmatprep.subr.mxu0 0.0
        %1230 = vmatpush1.msra.mxu0 %v867
        %1231 = vmatprep.subr.mxu0 0.0
        %1232 = vmatpush1.msra.mxu0 %v866
        %1233 = vmatprep.subr.mxu0 0.0
        %1234 = vmatpush1.msra.mxu0 %v865
        %1235 = vmatprep.subr.mxu0 0.0
        %1236 = vmatpush1.msra.mxu0 %v864
        %1237 = vmatprep.subr.mxu0 0.0
        %1238 = vmatpush1.msra.mxu0 %v863
        %1239 = vmatprep.subr.mxu0 0.0
        %1240 = vmatpush1.msra.mxu0 %v862
        %1241 = vmatprep.subr.mxu0 0.0
        %1242 = vmatpush1.msra.mxu0 %v861
        %1243 = vmatprep.subr.mxu0 0.0
        %1244 = vmatpush1.msra.mxu0 %v860
        %1245 = vmatprep.subr.mxu0 0.0
        %1246 = vmatpush1.msra.mxu0 %v859
        %1247 = vmatprep.subr.mxu0 0.0
        %1248 = vmatpush1.msra.mxu0 %v858
        %1249 = vmatprep.subr.mxu0 0.0
        %1250 = vmatpush1.msra.mxu0 %v857
        %1251 = vmatprep.subr.mxu0 0.0
        %1252 = vmatpush1.msra.mxu0 %v856
        %1253 = vmatprep.subr.mxu0 0.0
        %1254 = vmatpush1.msra.mxu0 %v855
        %1255 = vmatprep.subr.mxu0 0.0
        %1256 = vmatpush1.msra.mxu0 %v854
        %1257 = vmatprep.subr.mxu0 0.0
        %1258 = vmatpush1.msra.mxu0 %v853
        %1259 = vmatprep.subr.mxu0 0.0
        %1260 = vmatpush1.msra.mxu0 %v852
        %1261 = vmatprep.subr.mxu0 0.0
        %1262 = vmatpush2.msra.mxu0 %v883
        %1263 = vmatprep.subr.mxu0 0.0
        %1264 = vmatpush2.msra.mxu0 %v882
        %1265 = vmatprep.subr.mxu0 0.0
        %1266 = vmatpush2.msra.mxu0 %v881
        %1267 = vmatprep.subr.mxu0 0.0
        %1268 = vmatpush2.msra.mxu0 %v880
        %1269 = vmatprep.subr.mxu0 0.0
        %1270 = vmatpush2.msra.mxu0 %v879
        %1271 = vmatprep.subr.mxu0 0.0
        %1272 = vmatpush2.msra.mxu0 %v878
        %1273 = vmatprep.subr.mxu0 0.0
        %1274 = vmatpush2.msra.mxu0 %v877
        %1275 = vmatprep.subr.mxu0 0.0
        %1276 = vmatpush2.msra.mxu0 %v876
        %1277 = vmatprep.subr.mxu0 0.0
        %1278 = vmatpush2.msra.mxu0 %v875
        %1279 = vmatprep.subr.mxu0 0.0
        %1280 = vmatpush2.msra.mxu0 %v874
        %1281 = vmatprep.subr.mxu0 0.0
        %1282 = vmatpush2.msra.mxu0 %v873
        %1283 = vmatprep.subr.mxu0 0.0
        %1284 = vmatpush2.msra.mxu0 %v872
        %1285 = vmatprep.subr.mxu0 0.0
        %1286 = vmatpush2.msra.mxu0 %v871
        %1287 = vmatprep.subr.mxu0 0.0
        %1288 = vmatpush2.msra.mxu0 %v870
        %1289 = vmatprep.subr.mxu0 0.0
        %1290 = vmatpush2.msra.mxu0 %v869
        %1291 = vmatprep.subr.mxu0 0.0
        %1292 = vmatpush2.msra.mxu0 %v868
        %1293 = vmatprep.mubr.f32.mxu0 %v705
        %1294 = vmatmul.mubr.f32.gmra.mxu0 %v648
        %v1295 = vpop.f32.mrf.mxu0
        %v1296 = vadd.f32 %v1151, %v1295
        %v1297 = vpop.f32.mrf.mxu0
        %1298 = vmatprep.mubr.f32.mxu0 %v707
        %1299 = vmatmul.mubr.f32.gmra.mxu0 %v650
        %v1300 = vpop.f32.mrf.mxu0
        %v1301 = vadd.f32 %v1156, %v1300
        %v1302 = vpop.f32.mrf.mxu0
        %1303 = vmatprep.mubr.f32.mxu0 %v710
        %1304 = vmatmul.mubr.f32.gmra.mxu0 %v653
        %v1305 = vpop.f32.mrf.mxu0
        %v1306 = vadd.f32 %v1161, %v1305
        %v1307 = vpop.f32.mrf.mxu0
        %1308 = vmatprep.mubr.f32.mxu0 %v712
        %1309 = vmatmul.mubr.f32.gmra.mxu0 %v655
        %v1310 = vpop.f32.mrf.mxu0
        %v1311 = vadd.f32 %v1166, %v1310
        %v1312 = vpop.f32.mrf.mxu0
        %1313 = vmatprep.mubr.f32.mxu0 %v715
        %1314 = vmatmul.mubr.f32.gmra.mxu0 %v658
        %v1315 = vpop.f32.mrf.mxu0
        %v1316 = vadd.f32 %v1171, %v1315
        %v1317 = vpop.f32.mrf.mxu0
        %1318 = vmatprep.mubr.f32.mxu0 %v717
        %1319 = vmatmul.mubr.f32.gmra.mxu0 %v660
        %v1320 = vpop.f32.mrf.mxu0
        %v1321 = vadd.f32 %v1176, %v1320
        %v1322 = vpop.f32.mrf.mxu0
        %1323 = vmatprep.mubr.f32.mxu0 %v720
        %1324 = vmatmul.mubr.f32.gmra.mxu0 %v663
        %v1325 = vpop.f32.mrf.mxu0
        %v1326 = vadd.f32 %v1181, %v1325
        %v1327 = vpop.f32.mrf.mxu0
        %1328 = vmatprep.mubr.f32.mxu0 %v722
        %1329 = vmatmul.mubr.f32.gmra.mxu0 %v665
        %v1330 = vpop.f32.mrf.mxu0
        %v1331 = vadd.f32 %v1186, %v1330
        %v1332 = vpop.f32.mrf.mxu0
        %1333 = vmatprep.mubr.f32.mxu0 %v725
        %1334 = vmatmul.mubr.f32.gmra.mxu0 %v668
        %v1335 = vpop.f32.mrf.mxu0
        %v1336 = vadd.f32 %v1191, %v1335
        %v1337 = vpop.f32.mrf.mxu0
        %1338 = vmatprep.mubr.f32.mxu0 %v727
        %1339 = vmatmul.mubr.f32.gmra.mxu0 %v670
        %v1340 = vpop.f32.mrf.mxu0
        %v1341 = vadd.f32 %v1196, %v1340
        %v1342 = vpop.f32.mrf.mxu0
        %1343 = vmatprep.mubr.f32.mxu0 %v730
        %1344 = vmatmul.mubr.f32.gmra.mxu0 %v673
        %v1345 = vpop.f32.mrf.mxu0
        %v1346 = vadd.f32 %v1201, %v1345
        %v1347 = vpop.f32.mrf.mxu0
        %1348 = vmatprep.mubr.f32.mxu0 %v732
        %1349 = vmatmul.mubr.f32.gmra.mxu0 %v675
        %v1350 = vpop.f32.mrf.mxu0
        %v1351 = vadd.f32 %v1206, %v1350
        %v1352 = vpop.f32.mrf.mxu0
        %1353 = vmatprep.mubr.f32.mxu0 %v735
        %1354 = vmatmul.mubr.f32.gmra.mxu0 %v678
        %v1355 = vpop.f32.mrf.mxu0
        %v1356 = vadd.f32 %v1211, %v1355
        %v1357 = vpop.f32.mrf.mxu0
        %1358 = vmatprep.mubr.f32.mxu0 %v737
        %1359 = vmatmul.mubr.f32.gmra.mxu0 %v680
        %v1360 = vpop.f32.mrf.mxu0
        %v1361 = vadd.f32 %v1216, %v1360
        %v1362 = vpop.f32.mrf.mxu0
        %1363 = vmatprep.mubr.f32.mxu0 %v766
        %1364 = vmatmul.mubr.f32.gmra.mxu0 %v759
        %v1365 = vpop.f32.mrf.mxu0
        %v1366 = vadd.f32 %v1221, %v1365
        %v1367 = vpop.f32.mrf.mxu0
        %1368 = vmatprep.mubr.f32.mxu0 %v768
        %1369 = vmatmul.mubr.f32.gmra.mxu0 %v761
        %v1370 = vpop.f32.mrf.mxu0
        %v1371 = vadd.f32 %v1226, %v1370
        %v1372 = vpop.f32.mrf.mxu0
        %1373 = vdwg.mxu0
        %1374 = vmatprep.subr.mxu0 0.0
        %1375 = vmatpush1.msra.mxu0 %v899
        %1376 = vmatprep.subr.mxu0 0.0
        %1377 = vmatpush1.msra.mxu0 %v898
        %1378 = vmatprep.subr.mxu0 0.0
        %1379 = vmatpush1.msra.mxu0 %v897
        %1380 = vmatprep.subr.mxu0 0.0
        %1381 = vmatpush1.msra.mxu0 %v896
        %1382 = vmatprep.subr.mxu0 0.0
        %1383 = vmatpush1.msra.mxu0 %v895
        %1384 = vmatprep.subr.mxu0 0.0
        %1385 = vmatpush1.msra.mxu0 %v894
        %1386 = vmatprep.subr.mxu0 0.0
        %1387 = vmatpush1.msra.mxu0 %v893
        %1388 = vmatprep.subr.mxu0 0.0
        %1389 = vmatpush1.msra.mxu0 %v892
        %1390 = vmatprep.subr.mxu0 0.0
        %1391 = vmatpush1.msra.mxu0 %v891
        %1392 = vmatprep.subr.mxu0 0.0
        %1393 = vmatpush1.msra.mxu0 %v890
        %1394 = vmatprep.subr.mxu0 0.0
        %1395 = vmatpush1.msra.mxu0 %v889
        %1396 = vmatprep.subr.mxu0 0.0
        %1397 = vmatpush1.msra.mxu0 %v888
        %1398 = vmatprep.subr.mxu0 0.0
        %1399 = vmatpush1.msra.mxu0 %v887
        %1400 = vmatprep.subr.mxu0 0.0
        %1401 = vmatpush1.msra.mxu0 %v886
        %1402 = vmatprep.subr.mxu0 0.0
        %1403 = vmatpush1.msra.mxu0 %v885
        %1404 = vmatprep.subr.mxu0 0.0
        %1405 = vmatpush1.msra.mxu0 %v884
        %1406 = vmatprep.subr.mxu0 0.0
        %1407 = vmatpush2.msra.mxu0 %v915
        %1408 = vmatprep.subr.mxu0 0.0
        %1409 = vmatpush2.msra.mxu0 %v914
        %1410 = vmatprep.subr.mxu0 0.0
        %1411 = vmatpush2.msra.mxu0 %v913
        %1412 = vmatprep.subr.mxu0 0.0
        %1413 = vmatpush2.msra.mxu0 %v912
        %1414 = vmatprep.subr.mxu0 0.0
        %1415 = vmatpush2.msra.mxu0 %v911
        %1416 = vmatprep.subr.mxu0 0.0
        %1417 = vmatpush2.msra.mxu0 %v910
        %1418 = vmatprep.subr.mxu0 0.0
        %1419 = vmatpush2.msra.mxu0 %v909
        %1420 = vmatprep.subr.mxu0 0.0
        %1421 = vmatpush2.msra.mxu0 %v908
        %1422 = vmatprep.subr.mxu0 0.0
        %1423 = vmatpush2.msra.mxu0 %v907
        %1424 = vmatprep.subr.mxu0 0.0
        %1425 = vmatpush2.msra.mxu0 %v906
        %1426 = vmatprep.subr.mxu0 0.0
        %1427 = vmatpush2.msra.mxu0 %v905
        %1428 = vmatprep.subr.mxu0 0.0
        %1429 = vmatpush2.msra.mxu0 %v904
        %1430 = vmatprep.subr.mxu0 0.0
        %1431 = vmatpush2.msra.mxu0 %v903
        %1432 = vmatprep.subr.mxu0 0.0
        %1433 = vmatpush2.msra.mxu0 %v902
        %1434 = vmatprep.subr.mxu0 0.0
        %1435 = vmatpush2.msra.mxu0 %v901
        %1436 = vmatprep.subr.mxu0 0.0
        %1437 = vmatpush2.msra.mxu0 %v900
        %1438 = vmatprep.mubr.f32.mxu0 %v653
        %1439 = vmatmul.mubr.f32.gmra.mxu0 %v592
        %v1440 = vpop.f32.mrf.mxu0
        %v1441 = vadd.f32 %v1296, %v1440
        %v1442 = vpop.f32.mrf.mxu0
        %1443 = vmatprep.mubr.f32.mxu0 %v655
        %1444 = vmatmul.mubr.f32.gmra.mxu0 %v593
        %v1445 = vpop.f32.mrf.mxu0
        %v1446 = vadd.f32 %v1301, %v1445
        %v1447 = vpop.f32.mrf.mxu0
        %1448 = vmatprep.mubr.f32.mxu0 %v658
        %1449 = vmatmul.mubr.f32.gmra.mxu0 %v595
        %v1450 = vpop.f32.mrf.mxu0
        %v1451 = vadd.f32 %v1306, %v1450
        %v1452 = vpop.f32.mrf.mxu0
        %1453 = vmatprep.mubr.f32.mxu0 %v660
        %1454 = vmatmul.mubr.f32.gmra.mxu0 %v596
        %v1455 = vpop.f32.mrf.mxu0
        %v1456 = vadd.f32 %v1311, %v1455
        %v1457 = vpop.f32.mrf.mxu0
        %1458 = vmatprep.mubr.f32.mxu0 %v663
        %1459 = vmatmul.mubr.f32.gmra.mxu0 %v598
        %v1460 = vpop.f32.mrf.mxu0
        %v1461 = vadd.f32 %v1316, %v1460
        %v1462 = vpop.f32.mrf.mxu0
        %1463 = vmatprep.mubr.f32.mxu0 %v665
        %1464 = vmatmul.mubr.f32.gmra.mxu0 %v599
        %v1465 = vpop.f32.mrf.mxu0
        %v1466 = vadd.f32 %v1321, %v1465
        %v1467 = vpop.f32.mrf.mxu0
        %1468 = vmatprep.mubr.f32.mxu0 %v668
        %1469 = vmatmul.mubr.f32.gmra.mxu0 %v601
        %v1470 = vpop.f32.mrf.mxu0
        %v1471 = vadd.f32 %v1326, %v1470
        %v1472 = vpop.f32.mrf.mxu0
        %1473 = vmatprep.mubr.f32.mxu0 %v670
        %1474 = vmatmul.mubr.f32.gmra.mxu0 %v602
        %v1475 = vpop.f32.mrf.mxu0
        %v1476 = vadd.f32 %v1331, %v1475
        %v1477 = vpop.f32.mrf.mxu0
        %1478 = vmatprep.mubr.f32.mxu0 %v673
        %1479 = vmatmul.mubr.f32.gmra.mxu0 %v604
        %v1480 = vpop.f32.mrf.mxu0
        %v1481 = vadd.f32 %v1336, %v1480
        %v1482 = vpop.f32.mrf.mxu0
        %1483 = vmatprep.mubr.f32.mxu0 %v675
        %1484 = vmatmul.mubr.f32.gmra.mxu0 %v605
        %v1485 = vpop.f32.mrf.mxu0
        %v1486 = vadd.f32 %v1341, %v1485
        %v1487 = vpop.f32.mrf.mxu0
        %1488 = vmatprep.mubr.f32.mxu0 %v678
        %1489 = vmatmul.mubr.f32.gmra.mxu0 %v607
        %v1490 = vpop.f32.mrf.mxu0
        %v1491 = vadd.f32 %v1346, %v1490
        %v1492 = vpop.f32.mrf.mxu0
        %1493 = vmatprep.mubr.f32.mxu0 %v680
        %1494 = vmatmul.mubr.f32.gmra.mxu0 %v608
        %v1495 = vpop.f32.mrf.mxu0
        %v1496 = vadd.f32 %v1351, %v1495
        %v1497 = vpop.f32.mrf.mxu0
        %1498 = vmatprep.mubr.f32.mxu0 %v759
        %1499 = vmatmul.mubr.f32.gmra.mxu0 %v610
        %v1500 = vpop.f32.mrf.mxu0
        %v1501 = vadd.f32 %v1356, %v1500
        %v1502 = vpop.f32.mrf.mxu0
        %1503 = vmatprep.mubr.f32.mxu0 %v761
        %1504 = vmatmul.mubr.f32.gmra.mxu0 %v611
        %v1505 = vpop.f32.mrf.mxu0
        %v1506 = vadd.f32 %v1361, %v1505
        %v1507 = vpop.f32.mrf.mxu0
        %1508 = vmatprep.mubr.f32.mxu0 %v776
        %1509 = vmatmul.mubr.f32.gmra.mxu0 %v613
        %v1510 = vpop.f32.mrf.mxu0
        %v1511 = vadd.f32 %v1366, %v1510
        %v1512 = vpop.f32.mrf.mxu0
        %1513 = vmatprep.mubr.f32.mxu0 %v778
        %1514 = vmatmul.mubr.f32.gmra.mxu0 %v614
        %v1515 = vpop.f32.mrf.mxu0
        %v1516 = vadd.f32 %v1371, %v1515
        %v1517 = vpop.f32.mrf.mxu0
        %1518 = vdwg.mxu0
        %1519 = vmatprep.subr.mxu0 0.0
        %1520 = vmatpush1.msra.mxu0 %v931
        %1521 = vmatprep.subr.mxu0 0.0
        %1522 = vmatpush1.msra.mxu0 %v930
        %1523 = vmatprep.subr.mxu0 0.0
        %1524 = vmatpush1.msra.mxu0 %v929
        %1525 = vmatprep.subr.mxu0 0.0
        %1526 = vmatpush1.msra.mxu0 %v928
        %1527 = vmatprep.subr.mxu0 0.0
        %1528 = vmatpush1.msra.mxu0 %v927
        %1529 = vmatprep.subr.mxu0 0.0
        %1530 = vmatpush1.msra.mxu0 %v926
        %1531 = vmatprep.subr.mxu0 0.0
        %1532 = vmatpush1.msra.mxu0 %v925
        %1533 = vmatprep.subr.mxu0 0.0
        %1534 = vmatpush1.msra.mxu0 %v924
        %1535 = vmatprep.subr.mxu0 0.0
        %1536 = vmatpush1.msra.mxu0 %v923
        %1537 = vmatprep.subr.mxu0 0.0
        %1538 = vmatpush1.msra.mxu0 %v922
        %1539 = vmatprep.subr.mxu0 0.0
        %1540 = vmatpush1.msra.mxu0 %v921
        %1541 = vmatprep.subr.mxu0 0.0
        %1542 = vmatpush1.msra.mxu0 %v920
        %1543 = vmatprep.subr.mxu0 0.0
        %1544 = vmatpush1.msra.mxu0 %v919
        %1545 = vmatprep.subr.mxu0 0.0
        %1546 = vmatpush1.msra.mxu0 %v918
        %1547 = vmatprep.subr.mxu0 0.0
        %1548 = vmatpush1.msra.mxu0 %v917
        %1549 = vmatprep.subr.mxu0 0.0
        %1550 = vmatpush1.msra.mxu0 %v916
        %1551 = vmatprep.subr.mxu0 0.0
        %1552 = vmatpush2.msra.mxu0 0.0
        %1553 = vmatprep.subr.mxu0 0.0
        %1554 = vmatpush2.msra.mxu0 0.0
        %1555 = vmatprep.subr.mxu0 0.0
        %1556 = vmatpush2.msra.mxu0 0.0
        %1557 = vmatprep.subr.mxu0 0.0
        %1558 = vmatpush2.msra.mxu0 0.0
        %1559 = vmatprep.subr.mxu0 0.0
        %1560 = vmatpush2.msra.mxu0 0.0
        %1561 = vmatprep.subr.mxu0 0.0
        %1562 = vmatpush2.msra.mxu0 0.0
        %1563 = vmatprep.subr.mxu0 0.0
        %1564 = vmatpush2.msra.mxu0 0.0
        %1565 = vmatprep.subr.mxu0 0.0
        %1566 = vmatpush2.msra.mxu0 0.0
        %1567 = vmatprep.subr.mxu0 0.0
        %1568 = vmatpush2.msra.mxu0 0.0
        %1569 = vmatprep.subr.mxu0 0.0
        %1570 = vmatpush2.msra.mxu0 0.0
        %1571 = vmatprep.subr.mxu0 0.0
        %1572 = vmatpush2.msra.mxu0 0.0
        %1573 = vmatprep.subr.mxu0 0.0
        %1574 = vmatpush2.msra.mxu0 0.0
        %1575 = vmatprep.subr.mxu0 0.0
        %1576 = vmatpush2.msra.mxu0 0.0
        %1577 = vmatprep.subr.mxu0 0.0
        %1578 = vmatpush2.msra.mxu0 0.0
        %1579 = vmatprep.subr.mxu0 0.0
        %1580 = vmatpush2.msra.mxu0 0.0
        %1581 = vmatprep.subr.mxu0 0.0
        %1582 = vmatpush2.msra.mxu0 0.0
        %1583 = vmatprep.mubr.f32.mxu0 0.0
        %1584 = vmatmul.mubr.f32.gmra.mxu0 %v710
        %v1585 = vpop.f32.mrf.mxu0
        %v1586 = vadd.f32 %v1441, %v1585
        %v1587 = vpop.f32.mrf.mxu0
        %1588 = vmatprep.mubr.f32.mxu0 0.0
        %1589 = vmatmul.mubr.f32.gmra.mxu0 %v712
        %v1590 = vpop.f32.mrf.mxu0
        %v1591 = vadd.f32 %v1446, %v1590
        %v1592 = vpop.f32.mrf.mxu0
        %1593 = vmatprep.mubr.f32.mxu0 0.0
        %1594 = vmatmul.mubr.f32.gmra.mxu0 %v715
        %v1595 = vpop.f32.mrf.mxu0
        %v1596 = vadd.f32 %v1451, %v1595
        %v1597 = vpop.f32.mrf.mxu0
        %1598 = vmatprep.mubr.f32.mxu0 0.0
        %1599 = vmatmul.mubr.f32.gmra.mxu0 %v717
        %v1600 = vpop.f32.mrf.mxu0
        %v1601 = vadd.f32 %v1456, %v1600
        %v1602 = vpop.f32.mrf.mxu0
        %1603 = vmatprep.mubr.f32.mxu0 0.0
        %1604 = vmatmul.mubr.f32.gmra.mxu0 %v720
        %v1605 = vpop.f32.mrf.mxu0
        %v1606 = vadd.f32 %v1461, %v1605
        %v1607 = vpop.f32.mrf.mxu0
        %1608 = vmatprep.mubr.f32.mxu0 0.0
        %1609 = vmatmul.mubr.f32.gmra.mxu0 %v722
        %v1610 = vpop.f32.mrf.mxu0
        %v1611 = vadd.f32 %v1466, %v1610
        %v1612 = vpop.f32.mrf.mxu0
        %1613 = vmatprep.mubr.f32.mxu0 0.0
        %1614 = vmatmul.mubr.f32.gmra.mxu0 %v725
        %v1615 = vpop.f32.mrf.mxu0
        %v1616 = vadd.f32 %v1471, %v1615
        %v1617 = vpop.f32.mrf.mxu0
        %1618 = vmatprep.mubr.f32.mxu0 0.0
        %1619 = vmatmul.mubr.f32.gmra.mxu0 %v727
        %v1620 = vpop.f32.mrf.mxu0
        %v1621 = vadd.f32 %v1476, %v1620
        %v1622 = vpop.f32.mrf.mxu0
        %1623 = vmatprep.mubr.f32.mxu0 0.0
        %1624 = vmatmul.mubr.f32.gmra.mxu0 %v730
        %v1625 = vpop.f32.mrf.mxu0
        %v1626 = vadd.f32 %v1481, %v1625
        %v1627 = vpop.f32.mrf.mxu0
        %1628 = vmatprep.mubr.f32.mxu0 0.0
        %1629 = vmatmul.mubr.f32.gmra.mxu0 %v732
        %v1630 = vpop.f32.mrf.mxu0
        %v1631 = vadd.f32 %v1486, %v1630
        %v1632 = vpop.f32.mrf.mxu0
        %1633 = vmatprep.mubr.f32.mxu0 0.0
        %1634 = vmatmul.mubr.f32.gmra.mxu0 %v735
        %v1635 = vpop.f32.mrf.mxu0
        %v1636 = vadd.f32 %v1491, %v1635
        %v1637 = vpop.f32.mrf.mxu0
        %1638 = vmatprep.mubr.f32.mxu0 0.0
        %1639 = vmatmul.mubr.f32.gmra.mxu0 %v737
        %v1640 = vpop.f32.mrf.mxu0
        %v1641 = vadd.f32 %v1496, %v1640
        %v1642 = vpop.f32.mrf.mxu0
        %1643 = vmatprep.mubr.f32.mxu0 0.0
        %1644 = vmatmul.mubr.f32.gmra.mxu0 %v766
        %v1645 = vpop.f32.mrf.mxu0
        %v1646 = vadd.f32 %v1501, %v1645
        %v1647 = vpop.f32.mrf.mxu0
        %1648 = vmatprep.mubr.f32.mxu0 0.0
        %1649 = vmatmul.mubr.f32.gmra.mxu0 %v768
        %v1650 = vpop.f32.mrf.mxu0
        %v1651 = vadd.f32 %v1506, %v1650
        %v1652 = vpop.f32.mrf.mxu0
        %1653 = vmatprep.mubr.f32.mxu0 0.0
        %1654 = vmatmul.mubr.f32.gmra.mxu0 %v783
        %v1655 = vpop.f32.mrf.mxu0
        %v1656 = vadd.f32 %v1511, %v1655
        %v1657 = vpop.f32.mrf.mxu0
        %1658 = vmatprep.mubr.f32.mxu0 0.0
        %1659 = vmatmul.mubr.f32.gmra.mxu0 %v785
        %v1660 = vpop.f32.mrf.mxu0
        %v1661 = vadd.f32 %v1516, %v1660
        %v1662 = vpop.f32.mrf.mxu0
        %1663 = vdwg.mxu0
        %s1664 = smul.u32 %s27, 4
        %s1665 = sadd.s32 %s1664, 1
        %s1666 = smul.u32 %s1665, 24
        %s1667 = scalar_lea.vmem %s337, %s1666
        %v1668 = vld [vmem:[%s1667] sm:$0xff]
        %v1669 = vld [vmem:[%s1667 + $0x8] sm:$0xff]
        %v1670 = vld [vmem:[%s1667 + $0x10] sm:$0xf]
        %v1671 = vld [vmem:[%s1667 + $0x18] sm:$0xff]
        %v1672 = vld [vmem:[%s1667 + $0x20] sm:$0xff]
        %v1673 = vld [vmem:[%s1667 + $0x28] sm:$0xf]
        %v1674 = vld [vmem:[%s1667 + $0x30] sm:$0xff]
        %v1675 = vld [vmem:[%s1667 + $0x38] sm:$0xff]
        %v1676 = vld [vmem:[%s1667 + $0x40] sm:$0xf]
        %v1677 = vld [vmem:[%s1667 + $0x48] sm:$0xff]
        %v1678 = vld [vmem:[%s1667 + $0x50] sm:$0xff]
        %v1679 = vld [vmem:[%s1667 + $0x58] sm:$0xf]
        %v1692 = vrot.slane %v1668, 2
        %v1693 = vrot.slane %v1669, 2
        %v1694 = vsel %vm697, %v1692, %v1693
        %v1695 = vrot.slane %v1670, 2
        %v1696 = vsel %vm697, %v1693, %v1695
        %v1697 = vrot.slane %v1671, 2
        %v1698 = vrot.slane %v1672, 2
        %v1699 = vsel %vm697, %v1697, %v1698
        %v1700 = vrot.slane %v1673, 2
        %v1701 = vsel %vm697, %v1698, %v1700
        %v1702 = vrot.slane %v1674, 2
        %v1703 = vrot.slane %v1675, 2
        %v1704 = vsel %vm697, %v1702, %v1703
        %v1705 = vrot.slane %v1676, 2
        %v1706 = vsel %vm697, %v1703, %v1705
        %v1707 = vrot.slane %v1677, 2
        %v1708 = vrot.slane %v1678, 2
        %v1709 = vsel %vm697, %v1707, %v1708
        %v1710 = vrot.slane %v1679, 2
        %v1711 = vsel %vm697, %v1708, %v1710
        %v1720 = vld [vmem:[%s6] sm:$0xff]
        %v1721 = vld [vmem:[%s6 + $0x8] sm:$0xff]
        %v1722 = vld [vmem:[%s6 + $0x10] sm:$0xff]
        %v1723 = vld [vmem:[%s6 + $0x18] sm:$0xff]
        %v1724 = vld [vmem:[%s6 + $0x20] sm:$0xff]
        %v1725 = vld [vmem:[%s6 + $0x28] sm:$0xff]
        %v1726 = vld [vmem:[%s6 + $0x30] sm:$0xff]
        %v1727 = vld [vmem:[%s6 + $0x38] sm:$0xff]
        %v1728 = vld [vmem:[%s6 + $0x40] sm:$0xff]
        %v1729 = vld [vmem:[%s6 + $0x48] sm:$0xff]
        %v1730 = vld [vmem:[%s6 + $0x50] sm:$0xff]
        %v1731 = vld [vmem:[%s6 + $0x58] sm:$0xff]
        %v1732 = vld [vmem:[%s6 + $0x60] sm:$0xff]
        %v1733 = vld [vmem:[%s6 + $0x68] sm:$0xff]
        %v1734 = vld [vmem:[%s6 + $0x70] sm:$0xff]
        %v1735 = vld [vmem:[%s6 + $0x78] sm:$0xff]
        %1736 = vmatprep.subr.mxu0 0.0
        %1737 = vmatpush1.msra.mxu0 %v1735
        %1738 = vmatprep.subr.mxu0 0.0
        %1739 = vmatpush1.msra.mxu0 %v1734
        %1740 = vmatprep.subr.mxu0 0.0
        %1741 = vmatpush1.msra.mxu0 %v1733
        %1742 = vmatprep.subr.mxu0 0.0
        %1743 = vmatpush1.msra.mxu0 %v1732
        %1744 = vmatprep.subr.mxu0 0.0
        %1745 = vmatpush1.msra.mxu0 %v1731
        %1746 = vmatprep.subr.mxu0 0.0
        %1747 = vmatpush1.msra.mxu0 %v1730
        %1748 = vmatprep.subr.mxu0 0.0
        %1749 = vmatpush1.msra.mxu0 %v1729
        %1750 = vmatprep.subr.mxu0 0.0
        %1751 = vmatpush1.msra.mxu0 %v1728
        %1752 = vmatprep.subr.mxu0 0.0
        %1753 = vmatpush1.msra.mxu0 %v1727
        %1754 = vmatprep.subr.mxu0 0.0
        %1755 = vmatpush1.msra.mxu0 %v1726
        %1756 = vmatprep.subr.mxu0 0.0
        %1757 = vmatpush1.msra.mxu0 %v1725
        %1758 = vmatprep.subr.mxu0 0.0
        %1759 = vmatpush1.msra.mxu0 %v1724
        %1760 = vmatprep.subr.mxu0 0.0
        %1761 = vmatpush1.msra.mxu0 %v1723
        %1762 = vmatprep.subr.mxu0 0.0
        %1763 = vmatpush1.msra.mxu0 %v1722
        %1764 = vmatprep.subr.mxu0 0.0
        %1765 = vmatpush1.msra.mxu0 %v1721
        %1766 = vmatprep.subr.mxu0 0.0
        %1767 = vmatpush1.msra.mxu0 %v1720
        %1768 = vmatprep.subr.mxu0 0.0
        %1769 = vmatpush2.msra.mxu0 0.0
        %1770 = vmatprep.subr.mxu0 0.0
        %1771 = vmatpush2.msra.mxu0 0.0
        %1772 = vmatprep.subr.mxu0 0.0
        %1773 = vmatpush2.msra.mxu0 0.0
        %1774 = vmatprep.subr.mxu0 0.0
        %1775 = vmatpush2.msra.mxu0 0.0
        %1776 = vmatprep.subr.mxu0 0.0
        %1777 = vmatpush2.msra.mxu0 0.0
        %1778 = vmatprep.subr.mxu0 0.0
        %1779 = vmatpush2.msra.mxu0 0.0
        %1780 = vmatprep.subr.mxu0 0.0
        %1781 = vmatpush2.msra.mxu0 0.0
        %1782 = vmatprep.subr.mxu0 0.0
        %1783 = vmatpush2.msra.mxu0 0.0
        %1784 = vmatprep.subr.mxu0 0.0
        %1785 = vmatpush2.msra.mxu0 0.0
        %1786 = vmatprep.subr.mxu0 0.0
        %1787 = vmatpush2.msra.mxu0 0.0
        %1788 = vmatprep.subr.mxu0 0.0
        %1789 = vmatpush2.msra.mxu0 0.0
        %1790 = vmatprep.subr.mxu0 0.0
        %1791 = vmatpush2.msra.mxu0 0.0
        %1792 = vmatprep.subr.mxu0 0.0
        %1793 = vmatpush2.msra.mxu0 0.0
        %1794 = vmatprep.subr.mxu0 0.0
        %1795 = vmatpush2.msra.mxu0 0.0
        %1796 = vmatprep.subr.mxu0 0.0
        %1797 = vmatpush2.msra.mxu0 0.0
        %1798 = vmatprep.subr.mxu0 0.0
        %1799 = vmatpush2.msra.mxu0 0.0
        %1800 = vmatprep.mubr.f32.mxu0 0.0
        %1801 = vmatmul.mubr.f32.gmra.mxu0 %v1694
        %v1802 = vpop.f32.mrf.mxu0
        %v1803 = vadd.f32 0.0, %v1802
        %v1804 = vpop.f32.mrf.mxu0
        %1805 = vmatprep.mubr.f32.mxu0 0.0
        %1806 = vmatmul.mubr.f32.gmra.mxu0 %v1696
        %v1807 = vpop.f32.mrf.mxu0
        %v1808 = vadd.f32 0.0, %v1807
        %v1809 = vpop.f32.mrf.mxu0
        %1810 = vmatprep.mubr.f32.mxu0 0.0
        %1811 = vmatmul.mubr.f32.gmra.mxu0 %v1694
        %v1812 = vpop.f32.mrf.mxu0
        %v1813 = vadd.f32 0.0, %v1812
        %v1814 = vpop.f32.mrf.mxu0
        %1815 = vmatprep.mubr.f32.mxu0 0.0
        %1816 = vmatmul.mubr.f32.gmra.mxu0 %v1696
        %v1817 = vpop.f32.mrf.mxu0
        %v1818 = vadd.f32 0.0, %v1817
        %v1819 = vpop.f32.mrf.mxu0
        %1820 = vmatprep.mubr.f32.mxu0 0.0
        %1821 = vmatmul.mubr.f32.gmra.mxu0 %v1699
        %v1822 = vpop.f32.mrf.mxu0
        %v1823 = vadd.f32 0.0, %v1822
        %v1824 = vpop.f32.mrf.mxu0
        %1825 = vmatprep.mubr.f32.mxu0 0.0
        %1826 = vmatmul.mubr.f32.gmra.mxu0 %v1701
        %v1827 = vpop.f32.mrf.mxu0
        %v1828 = vadd.f32 0.0, %v1827
        %v1829 = vpop.f32.mrf.mxu0
        %1830 = vmatprep.mubr.f32.mxu0 0.0
        %1831 = vmatmul.mubr.f32.gmra.mxu0 %v1699
        %v1832 = vpop.f32.mrf.mxu0
        %v1833 = vadd.f32 0.0, %v1832
        %v1834 = vpop.f32.mrf.mxu0
        %1835 = vmatprep.mubr.f32.mxu0 0.0
        %1836 = vmatmul.mubr.f32.gmra.mxu0 %v1701
        %v1837 = vpop.f32.mrf.mxu0
        %v1838 = vadd.f32 0.0, %v1837
        %v1839 = vpop.f32.mrf.mxu0
        %1840 = vmatprep.mubr.f32.mxu0 0.0
        %1841 = vmatmul.mubr.f32.gmra.mxu0 %v1704
        %v1842 = vpop.f32.mrf.mxu0
        %v1843 = vadd.f32 0.0, %v1842
        %v1844 = vpop.f32.mrf.mxu0
        %1845 = vmatprep.mubr.f32.mxu0 0.0
        %1846 = vmatmul.mubr.f32.gmra.mxu0 %v1706
        %v1847 = vpop.f32.mrf.mxu0
        %v1848 = vadd.f32 0.0, %v1847
        %v1849 = vpop.f32.mrf.mxu0
        %1850 = vmatprep.mubr.f32.mxu0 0.0
        %1851 = vmatmul.mubr.f32.gmra.mxu0 %v1704
        %v1852 = vpop.f32.mrf.mxu0
        %v1853 = vadd.f32 0.0, %v1852
        %v1854 = vpop.f32.mrf.mxu0
        %1855 = vmatprep.mubr.f32.mxu0 0.0
        %1856 = vmatmul.mubr.f32.gmra.mxu0 %v1706
        %v1857 = vpop.f32.mrf.mxu0
        %v1858 = vadd.f32 0.0, %v1857
        %v1859 = vpop.f32.mrf.mxu0
        %1860 = vmatprep.mubr.f32.mxu0 0.0
        %1861 = vmatmul.mubr.f32.gmra.mxu0 %v1709
        %v1862 = vpop.f32.mrf.mxu0
        %v1863 = vadd.f32 0.0, %v1862
        %v1864 = vpop.f32.mrf.mxu0
        %1865 = vmatprep.mubr.f32.mxu0 0.0
        %1866 = vmatmul.mubr.f32.gmra.mxu0 %v1711
        %v1867 = vpop.f32.mrf.mxu0
        %v1868 = vadd.f32 0.0, %v1867
        %v1869 = vpop.f32.mrf.mxu0
        %1870 = vmatprep.mubr.f32.mxu0 0.0
        %1871 = vmatmul.mubr.f32.gmra.mxu0 %v1709
        %v1872 = vpop.f32.mrf.mxu0
        %v1873 = vadd.f32 0.0, %v1872
        %v1874 = vpop.f32.mrf.mxu0
        %1875 = vmatprep.mubr.f32.mxu0 0.0
        %1876 = vmatmul.mubr.f32.gmra.mxu0 %v1711
        %v1877 = vpop.f32.mrf.mxu0
        %v1878 = vadd.f32 0.0, %v1877
        %v1879 = vpop.f32.mrf.mxu0
        %1880 = vdwg.mxu0
        %v1881 = vadd.f32 %v1586, %v1803
        %v1882 = vadd.f32 %v1591, %v1808
        %v1883 = vadd.f32 %v1596, %v1813
        %v1884 = vadd.f32 %v1601, %v1818
        %v1885 = vadd.f32 %v1606, %v1823
        %v1886 = vadd.f32 %v1611, %v1828
        %v1887 = vadd.f32 %v1616, %v1833
        %v1888 = vadd.f32 %v1621, %v1838
        %v1889 = vadd.f32 %v1626, %v1843
        %v1890 = vadd.f32 %v1631, %v1848
        %v1891 = vadd.f32 %v1636, %v1853
        %v1892 = vadd.f32 %v1641, %v1858
        %v1893 = vadd.f32 %v1646, %v1863
        %v1894 = vadd.f32 %v1651, %v1868
        %v1895 = vadd.f32 %v1656, %v1873
        %v1896 = vadd.f32 %v1661, %v1878
        %v1897 = vld [vmem:[%s7] sm:$0x1]
        %v1899 = vlaneseq
        %v1900 = vshrl.u32 %v1899, 7
        %v1901 = vsub.s32 0, %v1900
        %v1902 = vrot.slane %v1897, %v1901
        %v1904 = vadd.f32 %v1881, %v1902
        %v1905 = vadd.f32 %v1882, %v1902
        %v1906 = vadd.f32 %v1883, %v1902
        %v1907 = vadd.f32 %v1884, %v1902
        %v1908 = vadd.f32 %v1885, %v1902
        %v1909 = vadd.f32 %v1886, %v1902
        %v1910 = vadd.f32 %v1887, %v1902
        %v1911 = vadd.f32 %v1888, %v1902
        %v1912 = vadd.f32 %v1889, %v1902
        %v1913 = vadd.f32 %v1890, %v1902
        %v1914 = vadd.f32 %v1891, %v1902
        %v1915 = vadd.f32 %v1892, %v1902
        %v1916 = vadd.f32 %v1893, %v1902
        %v1917 = vadd.f32 %v1894, %v1902
        %v1918 = vadd.f32 %v1895, %v1902
        %v1919 = vadd.f32 %v1896, %v1902
        %1920 = vst [vmem:[%s327] sm:$0xff] %v1904
        %1921 = vst [vmem:[%s327 + $0x8] sm:$0xff] %v1905
        %1922 = vst [vmem:[%s327 + $0x10] sm:$0xff] %v1906
        %1923 = vst [vmem:[%s327 + $0x18] sm:$0xff] %v1907
        %1924 = vst [vmem:[%s327 + $0x20] sm:$0xff] %v1908
        %1925 = vst [vmem:[%s327 + $0x28] sm:$0xff] %v1909
        %1926 = vst [vmem:[%s327 + $0x30] sm:$0xff] %v1910
        %1927 = vst [vmem:[%s327 + $0x38] sm:$0xff] %v1911
        %1928 = vst [vmem:[%s327 + $0x40] sm:$0xff] %v1912
        %1929 = vst [vmem:[%s327 + $0x48] sm:$0xff] %v1913
        %1930 = vst [vmem:[%s327 + $0x50] sm:$0xff] %v1914
        %1931 = vst [vmem:[%s327 + $0x58] sm:$0xff] %v1915
        %1932 = vst [vmem:[%s327 + $0x60] sm:$0xff] %v1916
        %1933 = vst [vmem:[%s327 + $0x68] sm:$0xff] %v1917
        %1934 = vst [vmem:[%s327 + $0x70] sm:$0xff] %v1918
        %1935 = vst [vmem:[%s327 + $0x78] sm:$0xff] %v1919
        %s1936 = sand.u32 %s222, 1
        %s1937 = scalar_lea.sflag [#allocation3], %s1936
        %s1938 = sand.u32 %s222, 1
        %s1939 = smul.addr %s1938, 128
        %s1940 = scalar_lea.vmem [#allocation2], %s1939
        // Predicated region
        $region53: #{resblock_forward.7} parent=51 // pred_check
          %p1941 = pneg %p232
        $region54: #{resblock_forward.7} parent=51 // pred_check_branch
          %1943 = sbr.rel (%p1941) target = $region56
        $region55: #{resblock_forward.7} parent=51 // pred_region
          %s1944 = smul.u32 8, %s27
          %s1946 = ssub.s32 2048, 2048
          %1947 = vsyncadd %s1937, %s1946
          %s1948 = smul.addr %s1944, 2
          %s1949 = smul.addr %s26, 32
          %s1950 = sadd.s32 %s1948, %s1949
          %s1951 = smul.addr %s1950, 128
          %s1952 = scalar_lea.hbm %s8, %s1951
          %s1953 = sshll.u32 %s1940, 4
          %s1954 = int_to_ptr.vmem [resolvable:$true] %s1953
          %1959 = dma.vmem_to_hbm [thread:$0]  %s1954, 2048, %s1952, %s1937, 128, 128, 8
        $region56: #{resblock_forward.7} parent=51 // pred_fallthru
          _
      $region52: #{resblock_forward.7} parent=5 // pred_fallthru
        _
      %p1960 = scmp.le.s32.totalorder 2, %s17
      // Predicated region
      $region57: #{resblock_forward.7} parent=5 // pred_check
        %p1961 = pneg %p1960
      $region58: #{resblock_forward.7} parent=5 // pred_check_branch
        %1963 = sbr.rel (%p1961) target = $region60
      $region59: #{resblock_forward.7} parent=5 // pred_region
        %s1964 = ssub.s32 %s17, 2
        // Predicated region
        $region61: #{resblock_forward.7} parent=59 // pred_check
          %p1965 = pneg %p238
        $region62: #{resblock_forward.7} parent=59 // pred_check_branch
          %1967 = sbr.rel (%p1965) target = $region64
        $region63: #{resblock_forward.7} parent=59 // pred_region
          %s1968 = sand.u32 %s223, 1
          %s1969 = scalar_lea.sflag [#allocation3], %s1968
          %s1970 = sand.u32 %s223, 1
          %s1971 = smul.addr %s1970, 128
          %s1972 = scalar_lea.vmem [#allocation2], %s1971
          %1973 = dma.done %s1969, 2048
        $region64: #{resblock_forward.7} parent=59 // pred_fallthru
          _
      $region60: #{resblock_forward.7} parent=5 // pred_fallthru
        _
    $region6: #{resblock_forward.7} parent=1 // loop_footer
      %s21 = sadd.s32 1, %s17
    $region7: #{resblock_forward.7} parent=1 // loop_footer_branch
      %16 = sbr.rel target = $region3
    $region8: #{resblock_forward.7} parent=1 // loop_exit
      _
    %1974 = vsyncpa [#allocation3], 1
    %s1975 = scalar_lea.sflag [#allocation3], 1
    %1976 = vsyncpa %s1975, 1

</llo_original>
